<compile_context>
chip_gen: v7x
topology: tpu7x:2x2x1
jax: 0.10.0
libtpu: 0.0.40
codegen_flags: <defaults>
</compile_context>

<pallas_src>
import functools

import jax
import jax.numpy as jnp
from jax.experimental import pallas as pl
from jax.experimental.pallas import tpu as pltpu


# ----------------------------------------------------------------------------
# Fused Pallas kernel (whole encoder/decoder forward pass, no grid)
# ----------------------------------------------------------------------------
def _make_fused_kernel(num_layers, batch, seq_len):
    """Builds the fused encoder/decoder kernel for fixed (L, B, T)."""
    L, B, T = num_layers, batch, seq_len

    def kernel(*refs):
        # ---- unpack refs (order matches pack_params) ----
        x_ref = refs[0]                              # (T*B, I) bf16, time-major
        idx = 1
        enc_wx_r, enc_wh_r, enc_b_r = [], [], []
        for _ in range(L):
            enc_wx_r.append(refs[idx])               # (F_in, 4H) bf16  (= W_ih^T)
            enc_wh_r.append(refs[idx + 1])           # (H, 4H)    bf16  (= W_hh^T)
            enc_b_r.append(refs[idx + 2])            # (1, 4H)    f32   (= b_ih+b_hh)
            idx += 3
        edw_r, edb_r = refs[idx], refs[idx + 1]      # (H, O) bf16, (1, O) f32
        idx += 2
        dec_wx_r, dec_wh_r, dec_b_r = [], [], []
        for _ in range(L):
            dec_wx_r.append(refs[idx])
            dec_wh_r.append(refs[idx + 1])
            dec_b_r.append(refs[idx + 2])
            idx += 3
        fcw_r, fcb_r = refs[idx], refs[idx + 1]      # (H, O) bf16, (1, O) f32
        idx += 2
        out_ref = refs[idx]                          # (B, O) f32

        H = enc_wh_r[0].shape[0]

        # ---- hoist all weight/bias loads out of the unrolled time loop ----
        enc_wx = [r[...] for r in enc_wx_r]
        enc_wh = [r[...] for r in enc_wh_r]
        enc_b = [r[...] for r in enc_b_r]
        dec_wx = [r[...] for r in dec_wx_r]
        dec_wh = [r[...] for r in dec_wh_r]
        dec_b = [r[...] for r in dec_b_r]
        edw, edb = edw_r[...], edb_r[...]
        fcw, fcb = fcw_r[...], fcb_r[...]

        # ---- encoder layer-0 input projection for ALL timesteps at once ----
        # (no recurrent dependence -> one larger MXU matmul instead of T tiny
        #  ones on the critical path; bias folded in)
        xproj0 = (jnp.dot(x_ref[...], enc_wx[0],
                          preferred_element_type=jnp.float32)
                  + enc_b[0])                        # (T*B, 4H) f32

        def cell(gates_x, h, c, wh):
            # gates_x already contains x @ W_ih^T + b; add the recurrent term.
            gates = gates_x + jnp.dot(h.astype(jnp.bfloat16), wh,
                                      preferred_element_type=jnp.float32)
            i = jax.nn.sigmoid(gates[:, 0 * H:1 * H])
            f = jax.nn.sigmoid(gates[:, 1 * H:2 * H])
            g = jnp.tanh(gates[:, 2 * H:3 * H])
            o = jax.nn.sigmoid(gates[:, 3 * H:4 * H])
            c_new = f * c + i * g
            h_new = o * jnp.tanh(c_new)
            return h_new, c_new

        zeros = jnp.zeros((B, H), jnp.float32)
        enc_h = [zeros] * L
        enc_c = [zeros] * L
        dec_h = [zeros] * L
        dec_c = [zeros] * L

        # Fully-unrolled time loop (T is small & static) -> all slices static.
        for t in range(T):
            # ---- encoder stack ----
            gx = xproj0[t * B:(t + 1) * B]           # static row slice
            enc_h[0], enc_c[0] = cell(gx, enc_h[0], enc_c[0], enc_wh[0])
            inp = enc_h[0].astype(jnp.bfloat16)
            for l in range(1, L):
                gx = (jnp.dot(inp, enc_wx[l],
                              preferred_element_type=jnp.float32) + enc_b[l])
                enc_h[l], enc_c[l] = cell(gx, enc_h[l], enc_c[l], enc_wh[l])
                inp = enc_h[l].astype(jnp.bfloat16)
            # ---- encoder dense (applied every timestep) ----
            enc_out = (jnp.dot(inp, edw, preferred_element_type=jnp.float32)
                       + edb)
            inp = enc_out.astype(jnp.bfloat16)
            # ---- decoder stack (consumes encoder output of the same step) ----
            for l in range(L):
                gx = (jnp.dot(inp, dec_wx[l],
                              preferred_element_type=jnp.float32) + dec_b[l])
                dec_h[l], dec_c[l] = cell(gx, dec_h[l], dec_c[l], dec_wh[l])
                inp = dec_h[l].astype(jnp.bfloat16)

        # TODO(synk): training-mode dropout before fc not implemented (identity in eval).
        out_ref[...] = (jnp.dot(dec_h[L - 1].astype(jnp.bfloat16), fcw,
                                preferred_element_type=jnp.float32) + fcb)

    return kernel


# ----------------------------------------------------------------------------
# Parameter handling
# ----------------------------------------------------------------------------
def init_params(cfg, key):
    """Deterministic parameter init, PyTorch-style U(-1/sqrt(H), 1/sqrt(H))."""
    H = cfg["hidden_size"]
    I = cfg["input_size"]
    O = cfg["out_size"]
    L = cfg["num_layers"]
    stdv = 1.0 / jnp.sqrt(jnp.float32(H))

    params = {}

    def u(key, shape):
        return jax.random.uniform(key, shape, jnp.float32, -stdv, stdv)

    keys = jax.random.split(key, 4 * L * 2 + 4)
    k = iter(keys)

    for l in range(L):                       # encoder LSTM
        in_f = I if l == 0 else H
        params[f"enc_wih{l}"] = u(next(k), (4 * H, in_f))
        params[f"enc_whh{l}"] = u(next(k), (4 * H, H))
        params[f"enc_b{l}"] = u(next(k), (4 * H,)) + u(next(k), (4 * H,))
    params["enc_dense_w"] = u(next(k), (O, H))
    params["enc_dense_b"] = u(next(k), (O,))

    for l in range(L):                       # decoder LSTM
        in_f = O if l == 0 else H
        params[f"dec_wih{l}"] = u(next(k), (4 * H, in_f))
        params[f"dec_whh{l}"] = u(next(k), (4 * H, H))
        params[f"dec_b{l}"] = u(next(k), (4 * H,)) + u(next(k), (4 * H,))
    params["dec_fc_w"] = u(next(k), (O, H))
    params["dec_fc_b"] = u(next(k), (O,))
    return params


def pack_params(params, num_layers):
    """Pre-transpose weights once (W^T, lane-dense 4H/O last dim) and cast to bf16.

    Biases stay f32 (added after the f32-accumulated matmul)."""
    packed = []
    for prefix in ("enc", "dec"):
        for l in range(num_layers):
            packed.append(jnp.asarray(params[f"{prefix}_wih{l}"].T, jnp.bfloat16))
            packed.append(jnp.asarray(params[f"{prefix}_whh{l}"].T, jnp.bfloat16))
            packed.append(params[f"{prefix}_b{l}"].reshape(1, -1).astype(jnp.float32))
        if prefix == "enc":
            packed.append(jnp.asarray(params["enc_dense_w"].T, jnp.bfloat16))
            packed.append(params["enc_dense_b"].reshape(1, -1).astype(jnp.float32))
        else:
            packed.append(jnp.asarray(params["dec_fc_w"].T, jnp.bfloat16))
            packed.append(params["dec_fc_b"].reshape(1, -1).astype(jnp.float32))
    return tuple(packed)


# ----------------------------------------------------------------------------
# Full model forward (one fused pallas_call)
# ----------------------------------------------------------------------------
@functools.partial(jax.jit, static_argnames=("num_layers",))
def lstm_encoder_decoder(x_btf, packed_params, num_layers):
    """x_btf: (B, T, input_size) batch-first, like the PyTorch module."""
    B, T, _ = x_btf.shape
    O = packed_params[-1].shape[-1]
    # time-major, flattened to (T*B, I), bf16 for the MXU (tiny one-time op)
    x_tbi = (jnp.transpose(x_btf, (1, 0, 2))
             .reshape(T * B, -1)
             .astype(jnp.bfloat16))

    kernel = _make_fused_kernel(num_layers, B, T)
    n_in = 1 + len(packed_params)
    return pl.pallas_call(
        kernel,
        out_shape=jax.ShapeDtypeStruct((B, O), jnp.float32),
        in_specs=[pl.BlockSpec(memory_space=pltpu.MemorySpace.VMEM)] * n_in,
        out_specs=pl.BlockSpec(memory_space=pltpu.MemorySpace.VMEM),
    )(x_tbi, *packed_params)


if __name__ == "__main__":
    cfg = {
        "input_size": 16,
        "hidden_size": 32,
        "out_size": 16,
        "num_layers": 2,
        "dropout_rate": 0.1,
    }
    B, T = 2, 8

    key = jax.random.PRNGKey(0)
    pkey, xkey = jax.random.split(key)
    params = init_params(cfg, pkey)
    packed = pack_params(params, cfg["num_layers"])
    x = jax.random.normal(xkey, (B, T, cfg["input_size"]), jnp.float32)

    out = lstm_encoder_decoder(x, packed, cfg["num_layers"])
    out = jax.block_until_ready(out)
    assert out.shape == (B, cfg["out_size"]), out.shape
    assert bool(jnp.all(jnp.isfinite(out)))
    print("KERNEL_OK")
</pallas_src>

<mosaic_0001>
module attributes {stable_mosaic.version = 11 : i64} {
  func.func @kernel(%arg0: memref<16x16xbf16, #tpu.memory_space<vmem>>, %arg1: memref<16x128xbf16, #tpu.memory_space<vmem>>, %arg2: memref<32x128xbf16, #tpu.memory_space<vmem>>, %arg3: memref<1x128xf32, #tpu.memory_space<vmem>>, %arg4: memref<32x128xbf16, #tpu.memory_space<vmem>>, %arg5: memref<32x128xbf16, #tpu.memory_space<vmem>>, %arg6: memref<1x128xf32, #tpu.memory_space<vmem>>, %arg7: memref<32x16xbf16, #tpu.memory_space<vmem>>, %arg8: memref<1x16xf32, #tpu.memory_space<vmem>>, %arg9: memref<16x128xbf16, #tpu.memory_space<vmem>>, %arg10: memref<32x128xbf16, #tpu.memory_space<vmem>>, %arg11: memref<1x128xf32, #tpu.memory_space<vmem>>, %arg12: memref<32x128xbf16, #tpu.memory_space<vmem>>, %arg13: memref<32x128xbf16, #tpu.memory_space<vmem>>, %arg14: memref<1x128xf32, #tpu.memory_space<vmem>>, %arg15: memref<32x16xbf16, #tpu.memory_space<vmem>>, %arg16: memref<1x16xf32, #tpu.memory_space<vmem>>, %arg17: memref<2x16xf32, #tpu.memory_space<vmem>>) attributes {dimension_semantics = [], scalar_prefetch = 0 : i64, scratch_operands = 0 : i64, tpu.core_type = #tpu.core_type<tc>} {
    %c0 = arith.constant 0 : index
    %c0_0 = arith.constant 0 : index
    %0 = vector.load %arg1[%c0, %c0_0] : memref<16x128xbf16, #tpu.memory_space<vmem>>, vector<16x128xbf16>
    %c0_1 = arith.constant 0 : index
    %c0_2 = arith.constant 0 : index
    %1 = vector.load %arg4[%c0_1, %c0_2] : memref<32x128xbf16, #tpu.memory_space<vmem>>, vector<32x128xbf16>
    %c0_3 = arith.constant 0 : index
    %c0_4 = arith.constant 0 : index
    %2 = vector.load %arg2[%c0_3, %c0_4] : memref<32x128xbf16, #tpu.memory_space<vmem>>, vector<32x128xbf16>
    %c0_5 = arith.constant 0 : index
    %c0_6 = arith.constant 0 : index
    %3 = vector.load %arg5[%c0_5, %c0_6] : memref<32x128xbf16, #tpu.memory_space<vmem>>, vector<32x128xbf16>
    %c0_7 = arith.constant 0 : index
    %c0_8 = arith.constant 0 : index
    %4 = vector.load %arg3[%c0_7, %c0_8] : memref<1x128xf32, #tpu.memory_space<vmem>>, vector<1x128xf32>
    %c0_9 = arith.constant 0 : index
    %c0_10 = arith.constant 0 : index
    %5 = vector.load %arg6[%c0_9, %c0_10] : memref<1x128xf32, #tpu.memory_space<vmem>>, vector<1x128xf32>
    %c0_11 = arith.constant 0 : index
    %c0_12 = arith.constant 0 : index
    %6 = vector.load %arg9[%c0_11, %c0_12] : memref<16x128xbf16, #tpu.memory_space<vmem>>, vector<16x128xbf16>
    %c0_13 = arith.constant 0 : index
    %c0_14 = arith.constant 0 : index
    %7 = vector.load %arg12[%c0_13, %c0_14] : memref<32x128xbf16, #tpu.memory_space<vmem>>, vector<32x128xbf16>
    %c0_15 = arith.constant 0 : index
    %c0_16 = arith.constant 0 : index
    %8 = vector.load %arg10[%c0_15, %c0_16] : memref<32x128xbf16, #tpu.memory_space<vmem>>, vector<32x128xbf16>
    %c0_17 = arith.constant 0 : index
    %c0_18 = arith.constant 0 : index
    %9 = vector.load %arg13[%c0_17, %c0_18] : memref<32x128xbf16, #tpu.memory_space<vmem>>, vector<32x128xbf16>
    %c0_19 = arith.constant 0 : index
    %c0_20 = arith.constant 0 : index
    %10 = vector.load %arg11[%c0_19, %c0_20] : memref<1x128xf32, #tpu.memory_space<vmem>>, vector<1x128xf32>
    %c0_21 = arith.constant 0 : index
    %c0_22 = arith.constant 0 : index
    %11 = vector.load %arg14[%c0_21, %c0_22] : memref<1x128xf32, #tpu.memory_space<vmem>>, vector<1x128xf32>
    %c0_23 = arith.constant 0 : index
    %c0_24 = arith.constant 0 : index
    %12 = vector.load %arg7[%c0_23, %c0_24] : memref<32x16xbf16, #tpu.memory_space<vmem>>, vector<32x16xbf16>
    %c0_25 = arith.constant 0 : index
    %c0_26 = arith.constant 0 : index
    %13 = vector.load %arg8[%c0_25, %c0_26] : memref<1x16xf32, #tpu.memory_space<vmem>>, vector<1x16xf32>
    %c0_27 = arith.constant 0 : index
    %c0_28 = arith.constant 0 : index
    %14 = vector.load %arg15[%c0_27, %c0_28] : memref<32x16xbf16, #tpu.memory_space<vmem>>, vector<32x16xbf16>
    %c0_29 = arith.constant 0 : index
    %c0_30 = arith.constant 0 : index
    %15 = vector.load %arg16[%c0_29, %c0_30] : memref<1x16xf32, #tpu.memory_space<vmem>>, vector<1x16xf32>
    %c0_31 = arith.constant 0 : index
    %c0_32 = arith.constant 0 : index
    %16 = vector.load %arg0[%c0_31, %c0_32] : memref<16x16xbf16, #tpu.memory_space<vmem>>, vector<16x16xbf16>
    %cst = arith.constant dense<0.000000e+00> : vector<16x128xf32>
    %17 = tpu.matmul %16, %0, %cst {dimension_numbers = #tpu.dot_dimension_numbers<[1], [0], [0], [1], [0, 0, 1, 1], [], []>} : vector<16x16xbf16>, vector<16x128xbf16>, vector<16x128xf32> -> vector<16x128xf32>
    %18 = vector.broadcast %4 : vector<1x128xf32> to vector<16x128xf32>
    %19 = arith.addf %17, %18 : vector<16x128xf32>
    %cst_33 = arith.constant 0.000000e+00 : f32
    %20 = vector.broadcast %cst_33 : f32 to vector<2x32xf32>
    %21 = vector.extract_strided_slice %19 {offsets = [0, 0], sizes = [2, 128], strides = [1, 1]} : vector<16x128xf32> to vector<2x128xf32>
    %22 = arith.truncf %20 : vector<2x32xf32> to vector<2x32xbf16>
    %cst_34 = arith.constant dense<0.000000e+00> : vector<2x128xf32>
    %23 = tpu.matmul %22, %2, %cst_34 {dimension_numbers = #tpu.dot_dimension_numbers<[1], [0], [0], [1], [0, 0, 1, 1], [], []>} : vector<2x32xbf16>, vector<32x128xbf16>, vector<2x128xf32> -> vector<2x128xf32>
    %24 = arith.addf %21, %23 : vector<2x128xf32>
    %25 = vector.extract_strided_slice %24 {offsets = [0, 0], sizes = [2, 32], strides = [1, 1]} : vector<2x128xf32> to vector<2x32xf32>
    %26 = arith.negf %25 : vector<2x32xf32>
    %27 = math.exp %26 : vector<2x32xf32>
    %cst_35 = arith.constant 1.000000e+00 : f32
    %28 = vector.broadcast %cst_35 : f32 to vector<2x32xf32>
    %29 = arith.addf %28, %27 : vector<2x32xf32>
    %30 = arith.divf %28, %29 : vector<2x32xf32>
    %31 = vector.extract_strided_slice %24 {offsets = [0, 32], sizes = [2, 32], strides = [1, 1]} : vector<2x128xf32> to vector<2x32xf32>
    %32 = arith.negf %31 : vector<2x32xf32>
    %33 = math.exp %32 : vector<2x32xf32>
    %cst_36 = arith.constant 1.000000e+00 : f32
    %34 = vector.broadcast %cst_36 : f32 to vector<2x32xf32>
    %35 = arith.addf %34, %33 : vector<2x32xf32>
    %36 = arith.divf %34, %35 : vector<2x32xf32>
    %37 = vector.extract_strided_slice %24 {offsets = [0, 64], sizes = [2, 32], strides = [1, 1]} : vector<2x128xf32> to vector<2x32xf32>
    %38 = math.tanh %37 : vector<2x32xf32>
    %39 = vector.extract_strided_slice %24 {offsets = [0, 96], sizes = [2, 32], strides = [1, 1]} : vector<2x128xf32> to vector<2x32xf32>
    %40 = arith.negf %39 : vector<2x32xf32>
    %41 = math.exp %40 : vector<2x32xf32>
    %cst_37 = arith.constant 1.000000e+00 : f32
    %42 = vector.broadcast %cst_37 : f32 to vector<2x32xf32>
    %43 = arith.addf %42, %41 : vector<2x32xf32>
    %44 = arith.divf %42, %43 : vector<2x32xf32>
    %45 = arith.mulf %36, %20 : vector<2x32xf32>
    %46 = arith.mulf %30, %38 : vector<2x32xf32>
    %47 = arith.addf %45, %46 : vector<2x32xf32>
    %48 = math.tanh %47 : vector<2x32xf32>
    %49 = arith.mulf %44, %48 : vector<2x32xf32>
    %50 = arith.truncf %49 : vector<2x32xf32> to vector<2x32xbf16>
    %cst_38 = arith.constant dense<0.000000e+00> : vector<2x128xf32>
    %51 = tpu.matmul %50, %1, %cst_38 {dimension_numbers = #tpu.dot_dimension_numbers<[1], [0], [0], [1], [0, 0, 1, 1], [], []>} : vector<2x32xbf16>, vector<32x128xbf16>, vector<2x128xf32> -> vector<2x128xf32>
    %52 = vector.broadcast %5 : vector<1x128xf32> to vector<2x128xf32>
    %53 = arith.addf %51, %52 : vector<2x128xf32>
    %54 = arith.truncf %20 : vector<2x32xf32> to vector<2x32xbf16>
    %cst_39 = arith.constant dense<0.000000e+00> : vector<2x128xf32>
    %55 = tpu.matmul %54, %3, %cst_39 {dimension_numbers = #tpu.dot_dimension_numbers<[1], [0], [0], [1], [0, 0, 1, 1], [], []>} : vector<2x32xbf16>, vector<32x128xbf16>, vector<2x128xf32> -> vector<2x128xf32>
    %56 = arith.addf %53, %55 : vector<2x128xf32>
    %57 = vector.extract_strided_slice %56 {offsets = [0, 0], sizes = [2, 32], strides = [1, 1]} : vector<2x128xf32> to vector<2x32xf32>
    %58 = arith.negf %57 : vector<2x32xf32>
    %59 = math.exp %58 : vector<2x32xf32>
    %cst_40 = arith.constant 1.000000e+00 : f32
    %60 = vector.broadcast %cst_40 : f32 to vector<2x32xf32>
    %61 = arith.addf %60, %59 : vector<2x32xf32>
    %62 = arith.divf %60, %61 : vector<2x32xf32>
    %63 = vector.extract_strided_slice %56 {offsets = [0, 32], sizes = [2, 32], strides = [1, 1]} : vector<2x128xf32> to vector<2x32xf32>
    %64 = arith.negf %63 : vector<2x32xf32>
    %65 = math.exp %64 : vector<2x32xf32>
    %cst_41 = arith.constant 1.000000e+00 : f32
    %66 = vector.broadcast %cst_41 : f32 to vector<2x32xf32>
    %67 = arith.addf %66, %65 : vector<2x32xf32>
    %68 = arith.divf %66, %67 : vector<2x32xf32>
    %69 = vector.extract_strided_slice %56 {offsets = [0, 64], sizes = [2, 32], strides = [1, 1]} : vector<2x128xf32> to vector<2x32xf32>
    %70 = math.tanh %69 : vector<2x32xf32>
    %71 = vector.extract_strided_slice %56 {offsets = [0, 96], sizes = [2, 32], strides = [1, 1]} : vector<2x128xf32> to vector<2x32xf32>
    %72 = arith.negf %71 : vector<2x32xf32>
    %73 = math.exp %72 : vector<2x32xf32>
    %cst_42 = arith.constant 1.000000e+00 : f32
    %74 = vector.broadcast %cst_42 : f32 to vector<2x32xf32>
    %75 = arith.addf %74, %73 : vector<2x32xf32>
    %76 = arith.divf %74, %75 : vector<2x32xf32>
    %77 = arith.mulf %68, %20 : vector<2x32xf32>
    %78 = arith.mulf %62, %70 : vector<2x32xf32>
    %79 = arith.addf %77, %78 : vector<2x32xf32>
    %80 = math.tanh %79 : vector<2x32xf32>
    %81 = arith.mulf %76, %80 : vector<2x32xf32>
    %82 = arith.truncf %81 : vector<2x32xf32> to vector<2x32xbf16>
    %cst_43 = arith.constant dense<0.000000e+00> : vector<2x16xf32>
    %83 = tpu.matmul %82, %12, %cst_43 {dimension_numbers = #tpu.dot_dimension_numbers<[1], [0], [0], [1], [0, 0, 1, 1], [], []>} : vector<2x32xbf16>, vector<32x16xbf16>, vector<2x16xf32> -> vector<2x16xf32>
    %84 = vector.broadcast %13 : vector<1x16xf32> to vector<2x16xf32>
    %85 = arith.addf %83, %84 : vector<2x16xf32>
    %86 = arith.truncf %85 : vector<2x16xf32> to vector<2x16xbf16>
    %cst_44 = arith.constant dense<0.000000e+00> : vector<2x128xf32>
    %87 = tpu.matmul %86, %6, %cst_44 {dimension_numbers = #tpu.dot_dimension_numbers<[1], [0], [0], [1], [0, 0, 1, 1], [], []>} : vector<2x16xbf16>, vector<16x128xbf16>, vector<2x128xf32> -> vector<2x128xf32>
    %88 = vector.broadcast %10 : vector<1x128xf32> to vector<2x128xf32>
    %89 = arith.addf %87, %88 : vector<2x128xf32>
    %90 = arith.truncf %20 : vector<2x32xf32> to vector<2x32xbf16>
    %cst_45 = arith.constant dense<0.000000e+00> : vector<2x128xf32>
    %91 = tpu.matmul %90, %8, %cst_45 {dimension_numbers = #tpu.dot_dimension_numbers<[1], [0], [0], [1], [0, 0, 1, 1], [], []>} : vector<2x32xbf16>, vector<32x128xbf16>, vector<2x128xf32> -> vector<2x128xf32>
    %92 = arith.addf %89, %91 : vector<2x128xf32>
    %93 = vector.extract_strided_slice %92 {offsets = [0, 0], sizes = [2, 32], strides = [1, 1]} : vector<2x128xf32> to vector<2x32xf32>
    %94 = arith.negf %93 : vector<2x32xf32>
    %95 = math.exp %94 : vector<2x32xf32>
    %cst_46 = arith.constant 1.000000e+00 : f32
    %96 = vector.broadcast %cst_46 : f32 to vector<2x32xf32>
    %97 = arith.addf %96, %95 : vector<2x32xf32>
    %98 = arith.divf %96, %97 : vector<2x32xf32>
    %99 = vector.extract_strided_slice %92 {offsets = [0, 32], sizes = [2, 32], strides = [1, 1]} : vector<2x128xf32> to vector<2x32xf32>
    %100 = arith.negf %99 : vector<2x32xf32>
    %101 = math.exp %100 : vector<2x32xf32>
    %cst_47 = arith.constant 1.000000e+00 : f32
    %102 = vector.broadcast %cst_47 : f32 to vector<2x32xf32>
    %103 = arith.addf %102, %101 : vector<2x32xf32>
    %104 = arith.divf %102, %103 : vector<2x32xf32>
    %105 = vector.extract_strided_slice %92 {offsets = [0, 64], sizes = [2, 32], strides = [1, 1]} : vector<2x128xf32> to vector<2x32xf32>
    %106 = math.tanh %105 : vector<2x32xf32>
    %107 = vector.extract_strided_slice %92 {offsets = [0, 96], sizes = [2, 32], strides = [1, 1]} : vector<2x128xf32> to vector<2x32xf32>
    %108 = arith.negf %107 : vector<2x32xf32>
    %109 = math.exp %108 : vector<2x32xf32>
    %cst_48 = arith.constant 1.000000e+00 : f32
    %110 = vector.broadcast %cst_48 : f32 to vector<2x32xf32>
    %111 = arith.addf %110, %109 : vector<2x32xf32>
    %112 = arith.divf %110, %111 : vector<2x32xf32>
    %113 = arith.mulf %104, %20 : vector<2x32xf32>
    %114 = arith.mulf %98, %106 : vector<2x32xf32>
    %115 = arith.addf %113, %114 : vector<2x32xf32>
    %116 = math.tanh %115 : vector<2x32xf32>
    %117 = arith.mulf %112, %116 : vector<2x32xf32>
    %118 = arith.truncf %117 : vector<2x32xf32> to vector<2x32xbf16>
    %cst_49 = arith.constant dense<0.000000e+00> : vector<2x128xf32>
    %119 = tpu.matmul %118, %7, %cst_49 {dimension_numbers = #tpu.dot_dimension_numbers<[1], [0], [0], [1], [0, 0, 1, 1], [], []>} : vector<2x32xbf16>, vector<32x128xbf16>, vector<2x128xf32> -> vector<2x128xf32>
    %120 = vector.broadcast %11 : vector<1x128xf32> to vector<2x128xf32>
    %121 = arith.addf %119, %120 : vector<2x128xf32>
    %122 = arith.truncf %20 : vector<2x32xf32> to vector<2x32xbf16>
    %cst_50 = arith.constant dense<0.000000e+00> : vector<2x128xf32>
    %123 = tpu.matmul %122, %9, %cst_50 {dimension_numbers = #tpu.dot_dimension_numbers<[1], [0], [0], [1], [0, 0, 1, 1], [], []>} : vector<2x32xbf16>, vector<32x128xbf16>, vector<2x128xf32> -> vector<2x128xf32>
    %124 = arith.addf %121, %123 : vector<2x128xf32>
    %125 = vector.extract_strided_slice %124 {offsets = [0, 0], sizes = [2, 32], strides = [1, 1]} : vector<2x128xf32> to vector<2x32xf32>
    %126 = arith.negf %125 : vector<2x32xf32>
    %127 = math.exp %126 : vector<2x32xf32>
    %cst_51 = arith.constant 1.000000e+00 : f32
    %128 = vector.broadcast %cst_51 : f32 to vector<2x32xf32>
    %129 = arith.addf %128, %127 : vector<2x32xf32>
    %130 = arith.divf %128, %129 : vector<2x32xf32>
    %131 = vector.extract_strided_slice %124 {offsets = [0, 32], sizes = [2, 32], strides = [1, 1]} : vector<2x128xf32> to vector<2x32xf32>
    %132 = arith.negf %131 : vector<2x32xf32>
    %133 = math.exp %132 : vector<2x32xf32>
    %cst_52 = arith.constant 1.000000e+00 : f32
    %134 = vector.broadcast %cst_52 : f32 to vector<2x32xf32>
    %135 = arith.addf %134, %133 : vector<2x32xf32>
    %136 = arith.divf %134, %135 : vector<2x32xf32>
    %137 = vector.extract_strided_slice %124 {offsets = [0, 64], sizes = [2, 32], strides = [1, 1]} : vector<2x128xf32> to vector<2x32xf32>
    %138 = math.tanh %137 : vector<2x32xf32>
    %139 = vector.extract_strided_slice %124 {offsets = [0, 96], sizes = [2, 32], strides = [1, 1]} : vector<2x128xf32> to vector<2x32xf32>
    %140 = arith.negf %139 : vector<2x32xf32>
    %141 = math.exp %140 : vector<2x32xf32>
    %cst_53 = arith.constant 1.000000e+00 : f32
    %142 = vector.broadcast %cst_53 : f32 to vector<2x32xf32>
    %143 = arith.addf %142, %141 : vector<2x32xf32>
    %144 = arith.divf %142, %143 : vector<2x32xf32>
    %145 = arith.mulf %136, %20 : vector<2x32xf32>
    %146 = arith.mulf %130, %138 : vector<2x32xf32>
    %147 = arith.addf %145, %146 : vector<2x32xf32>
    %148 = math.tanh %147 : vector<2x32xf32>
    %149 = arith.mulf %144, %148 : vector<2x32xf32>
    %150 = vector.extract_strided_slice %19 {offsets = [2, 0], sizes = [2, 128], strides = [1, 1]} : vector<16x128xf32> to vector<2x128xf32>
    %151 = arith.truncf %49 : vector<2x32xf32> to vector<2x32xbf16>
    %cst_54 = arith.constant dense<0.000000e+00> : vector<2x128xf32>
    %152 = tpu.matmul %151, %2, %cst_54 {dimension_numbers = #tpu.dot_dimension_numbers<[1], [0], [0], [1], [0, 0, 1, 1], [], []>} : vector<2x32xbf16>, vector<32x128xbf16>, vector<2x128xf32> -> vector<2x128xf32>
    %153 = arith.addf %150, %152 : vector<2x128xf32>
    %154 = vector.extract_strided_slice %153 {offsets = [0, 0], sizes = [2, 32], strides = [1, 1]} : vector<2x128xf32> to vector<2x32xf32>
    %155 = arith.negf %154 : vector<2x32xf32>
    %156 = math.exp %155 : vector<2x32xf32>
    %cst_55 = arith.constant 1.000000e+00 : f32
    %157 = vector.broadcast %cst_55 : f32 to vector<2x32xf32>
    %158 = arith.addf %157, %156 : vector<2x32xf32>
    %159 = arith.divf %157, %158 : vector<2x32xf32>
    %160 = vector.extract_strided_slice %153 {offsets = [0, 32], sizes = [2, 32], strides = [1, 1]} : vector<2x128xf32> to vector<2x32xf32>
    %161 = arith.negf %160 : vector<2x32xf32>
    %162 = math.exp %161 : vector<2x32xf32>
    %cst_56 = arith.constant 1.000000e+00 : f32
    %163 = vector.broadcast %cst_56 : f32 to vector<2x32xf32>
    %164 = arith.addf %163, %162 : vector<2x32xf32>
    %165 = arith.divf %163, %164 : vector<2x32xf32>
    %166 = vector.extract_strided_slice %153 {offsets = [0, 64], sizes = [2, 32], strides = [1, 1]} : vector<2x128xf32> to vector<2x32xf32>
    %167 = math.tanh %166 : vector<2x32xf32>
    %168 = vector.extract_strided_slice %153 {offsets = [0, 96], sizes = [2, 32], strides = [1, 1]} : vector<2x128xf32> to vector<2x32xf32>
    %169 = arith.negf %168 : vector<2x32xf32>
    %170 = math.exp %169 : vector<2x32xf32>
    %cst_57 = arith.constant 1.000000e+00 : f32
    %171 = vector.broadcast %cst_57 : f32 to vector<2x32xf32>
    %172 = arith.addf %171, %170 : vector<2x32xf32>
    %173 = arith.divf %171, %172 : vector<2x32xf32>
    %174 = arith.mulf %165, %47 : vector<2x32xf32>
    %175 = arith.mulf %159, %167 : vector<2x32xf32>
    %176 = arith.addf %174, %175 : vector<2x32xf32>
    %177 = math.tanh %176 : vector<2x32xf32>
    %178 = arith.mulf %173, %177 : vector<2x32xf32>
    %179 = arith.truncf %178 : vector<2x32xf32> to vector<2x32xbf16>
    %cst_58 = arith.constant dense<0.000000e+00> : vector<2x128xf32>
    %180 = tpu.matmul %179, %1, %cst_58 {dimension_numbers = #tpu.dot_dimension_numbers<[1], [0], [0], [1], [0, 0, 1, 1], [], []>} : vector<2x32xbf16>, vector<32x128xbf16>, vector<2x128xf32> -> vector<2x128xf32>
    %181 = vector.broadcast %5 : vector<1x128xf32> to vector<2x128xf32>
    %182 = arith.addf %180, %181 : vector<2x128xf32>
    %183 = arith.truncf %81 : vector<2x32xf32> to vector<2x32xbf16>
    %cst_59 = arith.constant dense<0.000000e+00> : vector<2x128xf32>
    %184 = tpu.matmul %183, %3, %cst_59 {dimension_numbers = #tpu.dot_dimension_numbers<[1], [0], [0], [1], [0, 0, 1, 1], [], []>} : vector<2x32xbf16>, vector<32x128xbf16>, vector<2x128xf32> -> vector<2x128xf32>
    %185 = arith.addf %182, %184 : vector<2x128xf32>
    %186 = vector.extract_strided_slice %185 {offsets = [0, 0], sizes = [2, 32], strides = [1, 1]} : vector<2x128xf32> to vector<2x32xf32>
    %187 = arith.negf %186 : vector<2x32xf32>
    %188 = math.exp %187 : vector<2x32xf32>
    %cst_60 = arith.constant 1.000000e+00 : f32
    %189 = vector.broadcast %cst_60 : f32 to vector<2x32xf32>
    %190 = arith.addf %189, %188 : vector<2x32xf32>
    %191 = arith.divf %189, %190 : vector<2x32xf32>
    %192 = vector.extract_strided_slice %185 {offsets = [0, 32], sizes = [2, 32], strides = [1, 1]} : vector<2x128xf32> to vector<2x32xf32>
    %193 = arith.negf %192 : vector<2x32xf32>
    %194 = math.exp %193 : vector<2x32xf32>
    %cst_61 = arith.constant 1.000000e+00 : f32
    %195 = vector.broadcast %cst_61 : f32 to vector<2x32xf32>
    %196 = arith.addf %195, %194 : vector<2x32xf32>
    %197 = arith.divf %195, %196 : vector<2x32xf32>
    %198 = vector.extract_strided_slice %185 {offsets = [0, 64], sizes = [2, 32], strides = [1, 1]} : vector<2x128xf32> to vector<2x32xf32>
    %199 = math.tanh %198 : vector<2x32xf32>
    %200 = vector.extract_strided_slice %185 {offsets = [0, 96], sizes = [2, 32], strides = [1, 1]} : vector<2x128xf32> to vector<2x32xf32>
    %201 = arith.negf %200 : vector<2x32xf32>
    %202 = math.exp %201 : vector<2x32xf32>
    %cst_62 = arith.constant 1.000000e+00 : f32
    %203 = vector.broadcast %cst_62 : f32 to vector<2x32xf32>
    %204 = arith.addf %203, %202 : vector<2x32xf32>
    %205 = arith.divf %203, %204 : vector<2x32xf32>
    %206 = arith.mulf %197, %79 : vector<2x32xf32>
    %207 = arith.mulf %191, %199 : vector<2x32xf32>
    %208 = arith.addf %206, %207 : vector<2x32xf32>
    %209 = math.tanh %208 : vector<2x32xf32>
    %210 = arith.mulf %205, %209 : vector<2x32xf32>
    %211 = arith.truncf %210 : vector<2x32xf32> to vector<2x32xbf16>
    %cst_63 = arith.constant dense<0.000000e+00> : vector<2x16xf32>
    %212 = tpu.matmul %211, %12, %cst_63 {dimension_numbers = #tpu.dot_dimension_numbers<[1], [0], [0], [1], [0, 0, 1, 1], [], []>} : vector<2x32xbf16>, vector<32x16xbf16>, vector<2x16xf32> -> vector<2x16xf32>
    %213 = vector.broadcast %13 : vector<1x16xf32> to vector<2x16xf32>
    %214 = arith.addf %212, %213 : vector<2x16xf32>
    %215 = arith.truncf %214 : vector<2x16xf32> to vector<2x16xbf16>
    %cst_64 = arith.constant dense<0.000000e+00> : vector<2x128xf32>
    %216 = tpu.matmul %215, %6, %cst_64 {dimension_numbers = #tpu.dot_dimension_numbers<[1], [0], [0], [1], [0, 0, 1, 1], [], []>} : vector<2x16xbf16>, vector<16x128xbf16>, vector<2x128xf32> -> vector<2x128xf32>
    %217 = vector.broadcast %10 : vector<1x128xf32> to vector<2x128xf32>
    %218 = arith.addf %216, %217 : vector<2x128xf32>
    %219 = arith.truncf %117 : vector<2x32xf32> to vector<2x32xbf16>
    %cst_65 = arith.constant dense<0.000000e+00> : vector<2x128xf32>
    %220 = tpu.matmul %219, %8, %cst_65 {dimension_numbers = #tpu.dot_dimension_numbers<[1], [0], [0], [1], [0, 0, 1, 1], [], []>} : vector<2x32xbf16>, vector<32x128xbf16>, vector<2x128xf32> -> vector<2x128xf32>
    %221 = arith.addf %218, %220 : vector<2x128xf32>
    %222 = vector.extract_strided_slice %221 {offsets = [0, 0], sizes = [2, 32], strides = [1, 1]} : vector<2x128xf32> to vector<2x32xf32>
    %223 = arith.negf %222 : vector<2x32xf32>
    %224 = math.exp %223 : vector<2x32xf32>
    %cst_66 = arith.constant 1.000000e+00 : f32
    %225 = vector.broadcast %cst_66 : f32 to vector<2x32xf32>
    %226 = arith.addf %225, %224 : vector<2x32xf32>
    %227 = arith.divf %225, %226 : vector<2x32xf32>
    %228 = vector.extract_strided_slice %221 {offsets = [0, 32], sizes = [2, 32], strides = [1, 1]} : vector<2x128xf32> to vector<2x32xf32>
    %229 = arith.negf %228 : vector<2x32xf32>
    %230 = math.exp %229 : vector<2x32xf32>
    %cst_67 = arith.constant 1.000000e+00 : f32
    %231 = vector.broadcast %cst_67 : f32 to vector<2x32xf32>
    %232 = arith.addf %231, %230 : vector<2x32xf32>
    %233 = arith.divf %231, %232 : vector<2x32xf32>
    %234 = vector.extract_strided_slice %221 {offsets = [0, 64], sizes = [2, 32], strides = [1, 1]} : vector<2x128xf32> to vector<2x32xf32>
    %235 = math.tanh %234 : vector<2x32xf32>
    %236 = vector.extract_strided_slice %221 {offsets = [0, 96], sizes = [2, 32], strides = [1, 1]} : vector<2x128xf32> to vector<2x32xf32>
    %237 = arith.negf %236 : vector<2x32xf32>
    %238 = math.exp %237 : vector<2x32xf32>
    %cst_68 = arith.constant 1.000000e+00 : f32
    %239 = vector.broadcast %cst_68 : f32 to vector<2x32xf32>
    %240 = arith.addf %239, %238 : vector<2x32xf32>
    %241 = arith.divf %239, %240 : vector<2x32xf32>
    %242 = arith.mulf %233, %115 : vector<2x32xf32>
    %243 = arith.mulf %227, %235 : vector<2x32xf32>
    %244 = arith.addf %242, %243 : vector<2x32xf32>
    %245 = math.tanh %244 : vector<2x32xf32>
    %246 = arith.mulf %241, %245 : vector<2x32xf32>
    %247 = arith.truncf %246 : vector<2x32xf32> to vector<2x32xbf16>
    %cst_69 = arith.constant dense<0.000000e+00> : vector<2x128xf32>
    %248 = tpu.matmul %247, %7, %cst_69 {dimension_numbers = #tpu.dot_dimension_numbers<[1], [0], [0], [1], [0, 0, 1, 1], [], []>} : vector<2x32xbf16>, vector<32x128xbf16>, vector<2x128xf32> -> vector<2x128xf32>
    %249 = vector.broadcast %11 : vector<1x128xf32> to vector<2x128xf32>
    %250 = arith.addf %248, %249 : vector<2x128xf32>
    %251 = arith.truncf %149 : vector<2x32xf32> to vector<2x32xbf16>
    %cst_70 = arith.constant dense<0.000000e+00> : vector<2x128xf32>
    %252 = tpu.matmul %251, %9, %cst_70 {dimension_numbers = #tpu.dot_dimension_numbers<[1], [0], [0], [1], [0, 0, 1, 1], [], []>} : vector<2x32xbf16>, vector<32x128xbf16>, vector<2x128xf32> -> vector<2x128xf32>
    %253 = arith.addf %250, %252 : vector<2x128xf32>
    %254 = vector.extract_strided_slice %253 {offsets = [0, 0], sizes = [2, 32], strides = [1, 1]} : vector<2x128xf32> to vector<2x32xf32>
    %255 = arith.negf %254 : vector<2x32xf32>
    %256 = math.exp %255 : vector<2x32xf32>
    %cst_71 = arith.constant 1.000000e+00 : f32
    %257 = vector.broadcast %cst_71 : f32 to vector<2x32xf32>
    %258 = arith.addf %257, %256 : vector<2x32xf32>
    %259 = arith.divf %257, %258 : vector<2x32xf32>
    %260 = vector.extract_strided_slice %253 {offsets = [0, 32], sizes = [2, 32], strides = [1, 1]} : vector<2x128xf32> to vector<2x32xf32>
    %261 = arith.negf %260 : vector<2x32xf32>
    %262 = math.exp %261 : vector<2x32xf32>
    %cst_72 = arith.constant 1.000000e+00 : f32
    %263 = vector.broadcast %cst_72 : f32 to vector<2x32xf32>
    %264 = arith.addf %263, %262 : vector<2x32xf32>
    %265 = arith.divf %263, %264 : vector<2x32xf32>
    %266 = vector.extract_strided_slice %253 {offsets = [0, 64], sizes = [2, 32], strides = [1, 1]} : vector<2x128xf32> to vector<2x32xf32>
    %267 = math.tanh %266 : vector<2x32xf32>
    %268 = vector.extract_strided_slice %253 {offsets = [0, 96], sizes = [2, 32], strides = [1, 1]} : vector<2x128xf32> to vector<2x32xf32>
    %269 = arith.negf %268 : vector<2x32xf32>
    %270 = math.exp %269 : vector<2x32xf32>
    %cst_73 = arith.constant 1.000000e+00 : f32
    %271 = vector.broadcast %cst_73 : f32 to vector<2x32xf32>
    %272 = arith.addf %271, %270 : vector<2x32xf32>
    %273 = arith.divf %271, %272 : vector<2x32xf32>
    %274 = arith.mulf %265, %147 : vector<2x32xf32>
    %275 = arith.mulf %259, %267 : vector<2x32xf32>
    %276 = arith.addf %274, %275 : vector<2x32xf32>
    %277 = math.tanh %276 : vector<2x32xf32>
    %278 = arith.mulf %273, %277 : vector<2x32xf32>
    %279 = vector.extract_strided_slice %19 {offsets = [4, 0], sizes = [2, 128], strides = [1, 1]} : vector<16x128xf32> to vector<2x128xf32>
    %280 = arith.truncf %178 : vector<2x32xf32> to vector<2x32xbf16>
    %cst_74 = arith.constant dense<0.000000e+00> : vector<2x128xf32>
    %281 = tpu.matmul %280, %2, %cst_74 {dimension_numbers = #tpu.dot_dimension_numbers<[1], [0], [0], [1], [0, 0, 1, 1], [], []>} : vector<2x32xbf16>, vector<32x128xbf16>, vector<2x128xf32> -> vector<2x128xf32>
    %282 = arith.addf %279, %281 : vector<2x128xf32>
    %283 = vector.extract_strided_slice %282 {offsets = [0, 0], sizes = [2, 32], strides = [1, 1]} : vector<2x128xf32> to vector<2x32xf32>
    %284 = arith.negf %283 : vector<2x32xf32>
    %285 = math.exp %284 : vector<2x32xf32>
    %cst_75 = arith.constant 1.000000e+00 : f32
    %286 = vector.broadcast %cst_75 : f32 to vector<2x32xf32>
    %287 = arith.addf %286, %285 : vector<2x32xf32>
    %288 = arith.divf %286, %287 : vector<2x32xf32>
    %289 = vector.extract_strided_slice %282 {offsets = [0, 32], sizes = [2, 32], strides = [1, 1]} : vector<2x128xf32> to vector<2x32xf32>
    %290 = arith.negf %289 : vector<2x32xf32>
    %291 = math.exp %290 : vector<2x32xf32>
    %cst_76 = arith.constant 1.000000e+00 : f32
    %292 = vector.broadcast %cst_76 : f32 to vector<2x32xf32>
    %293 = arith.addf %292, %291 : vector<2x32xf32>
    %294 = arith.divf %292, %293 : vector<2x32xf32>
    %295 = vector.extract_strided_slice %282 {offsets = [0, 64], sizes = [2, 32], strides = [1, 1]} : vector<2x128xf32> to vector<2x32xf32>
    %296 = math.tanh %295 : vector<2x32xf32>
    %297 = vector.extract_strided_slice %282 {offsets = [0, 96], sizes = [2, 32], strides = [1, 1]} : vector<2x128xf32> to vector<2x32xf32>
    %298 = arith.negf %297 : vector<2x32xf32>
    %299 = math.exp %298 : vector<2x32xf32>
    %cst_77 = arith.constant 1.000000e+00 : f32
    %300 = vector.broadcast %cst_77 : f32 to vector<2x32xf32>
    %301 = arith.addf %300, %299 : vector<2x32xf32>
    %302 = arith.divf %300, %301 : vector<2x32xf32>
    %303 = arith.mulf %294, %176 : vector<2x32xf32>
    %304 = arith.mulf %288, %296 : vector<2x32xf32>
    %305 = arith.addf %303, %304 : vector<2x32xf32>
    %306 = math.tanh %305 : vector<2x32xf32>
    %307 = arith.mulf %302, %306 : vector<2x32xf32>
    %308 = arith.truncf %307 : vector<2x32xf32> to vector<2x32xbf16>
    %cst_78 = arith.constant dense<0.000000e+00> : vector<2x128xf32>
    %309 = tpu.matmul %308, %1, %cst_78 {dimension_numbers = #tpu.dot_dimension_numbers<[1], [0], [0], [1], [0, 0, 1, 1], [], []>} : vector<2x32xbf16>, vector<32x128xbf16>, vector<2x128xf32> -> vector<2x128xf32>
    %310 = vector.broadcast %5 : vector<1x128xf32> to vector<2x128xf32>
    %311 = arith.addf %309, %310 : vector<2x128xf32>
    %312 = arith.truncf %210 : vector<2x32xf32> to vector<2x32xbf16>
    %cst_79 = arith.constant dense<0.000000e+00> : vector<2x128xf32>
    %313 = tpu.matmul %312, %3, %cst_79 {dimension_numbers = #tpu.dot_dimension_numbers<[1], [0], [0], [1], [0, 0, 1, 1], [], []>} : vector<2x32xbf16>, vector<32x128xbf16>, vector<2x128xf32> -> vector<2x128xf32>
    %314 = arith.addf %311, %313 : vector<2x128xf32>
    %315 = vector.extract_strided_slice %314 {offsets = [0, 0], sizes = [2, 32], strides = [1, 1]} : vector<2x128xf32> to vector<2x32xf32>
    %316 = arith.negf %315 : vector<2x32xf32>
    %317 = math.exp %316 : vector<2x32xf32>
    %cst_80 = arith.constant 1.000000e+00 : f32
    %318 = vector.broadcast %cst_80 : f32 to vector<2x32xf32>
    %319 = arith.addf %318, %317 : vector<2x32xf32>
    %320 = arith.divf %318, %319 : vector<2x32xf32>
    %321 = vector.extract_strided_slice %314 {offsets = [0, 32], sizes = [2, 32], strides = [1, 1]} : vector<2x128xf32> to vector<2x32xf32>
    %322 = arith.negf %321 : vector<2x32xf32>
    %323 = math.exp %322 : vector<2x32xf32>
    %cst_81 = arith.constant 1.000000e+00 : f32
    %324 = vector.broadcast %cst_81 : f32 to vector<2x32xf32>
    %325 = arith.addf %324, %323 : vector<2x32xf32>
    %326 = arith.divf %324, %325 : vector<2x32xf32>
    %327 = vector.extract_strided_slice %314 {offsets = [0, 64], sizes = [2, 32], strides = [1, 1]} : vector<2x128xf32> to vector<2x32xf32>
    %328 = math.tanh %327 : vector<2x32xf32>
    %329 = vector.extract_strided_slice %314 {offsets = [0, 96], sizes = [2, 32], strides = [1, 1]} : vector<2x128xf32> to vector<2x32xf32>
    %330 = arith.negf %329 : vector<2x32xf32>
    %331 = math.exp %330 : vector<2x32xf32>
    %cst_82 = arith.constant 1.000000e+00 : f32
    %332 = vector.broadcast %cst_82 : f32 to vector<2x32xf32>
    %333 = arith.addf %332, %331 : vector<2x32xf32>
    %334 = arith.divf %332, %333 : vector<2x32xf32>
    %335 = arith.mulf %326, %208 : vector<2x32xf32>
    %336 = arith.mulf %320, %328 : vector<2x32xf32>
    %337 = arith.addf %335, %336 : vector<2x32xf32>
    %338 = math.tanh %337 : vector<2x32xf32>
    %339 = arith.mulf %334, %338 : vector<2x32xf32>
    %340 = arith.truncf %339 : vector<2x32xf32> to vector<2x32xbf16>
    %cst_83 = arith.constant dense<0.000000e+00> : vector<2x16xf32>
    %341 = tpu.matmul %340, %12, %cst_83 {dimension_numbers = #tpu.dot_dimension_numbers<[1], [0], [0], [1], [0, 0, 1, 1], [], []>} : vector<2x32xbf16>, vector<32x16xbf16>, vector<2x16xf32> -> vector<2x16xf32>
    %342 = vector.broadcast %13 : vector<1x16xf32> to vector<2x16xf32>
    %343 = arith.addf %341, %342 : vector<2x16xf32>
    %344 = arith.truncf %343 : vector<2x16xf32> to vector<2x16xbf16>
    %cst_84 = arith.constant dense<0.000000e+00> : vector<2x128xf32>
    %345 = tpu.matmul %344, %6, %cst_84 {dimension_numbers = #tpu.dot_dimension_numbers<[1], [0], [0], [1], [0, 0, 1, 1], [], []>} : vector<2x16xbf16>, vector<16x128xbf16>, vector<2x128xf32> -> vector<2x128xf32>
    %346 = vector.broadcast %10 : vector<1x128xf32> to vector<2x128xf32>
    %347 = arith.addf %345, %346 : vector<2x128xf32>
    %348 = arith.truncf %246 : vector<2x32xf32> to vector<2x32xbf16>
    %cst_85 = arith.constant dense<0.000000e+00> : vector<2x128xf32>
    %349 = tpu.matmul %348, %8, %cst_85 {dimension_numbers = #tpu.dot_dimension_numbers<[1], [0], [0], [1], [0, 0, 1, 1], [], []>} : vector<2x32xbf16>, vector<32x128xbf16>, vector<2x128xf32> -> vector<2x128xf32>
    %350 = arith.addf %347, %349 : vector<2x128xf32>
    %351 = vector.extract_strided_slice %350 {offsets = [0, 0], sizes = [2, 32], strides = [1, 1]} : vector<2x128xf32> to vector<2x32xf32>
    %352 = arith.negf %351 : vector<2x32xf32>
    %353 = math.exp %352 : vector<2x32xf32>
    %cst_86 = arith.constant 1.000000e+00 : f32
    %354 = vector.broadcast %cst_86 : f32 to vector<2x32xf32>
    %355 = arith.addf %354, %353 : vector<2x32xf32>
    %356 = arith.divf %354, %355 : vector<2x32xf32>
    %357 = vector.extract_strided_slice %350 {offsets = [0, 32], sizes = [2, 32], strides = [1, 1]} : vector<2x128xf32> to vector<2x32xf32>
    %358 = arith.negf %357 : vector<2x32xf32>
    %359 = math.exp %358 : vector<2x32xf32>
    %cst_87 = arith.constant 1.000000e+00 : f32
    %360 = vector.broadcast %cst_87 : f32 to vector<2x32xf32>
    %361 = arith.addf %360, %359 : vector<2x32xf32>
    %362 = arith.divf %360, %361 : vector<2x32xf32>
    %363 = vector.extract_strided_slice %350 {offsets = [0, 64], sizes = [2, 32], strides = [1, 1]} : vector<2x128xf32> to vector<2x32xf32>
    %364 = math.tanh %363 : vector<2x32xf32>
    %365 = vector.extract_strided_slice %350 {offsets = [0, 96], sizes = [2, 32], strides = [1, 1]} : vector<2x128xf32> to vector<2x32xf32>
    %366 = arith.negf %365 : vector<2x32xf32>
    %367 = math.exp %366 : vector<2x32xf32>
    %cst_88 = arith.constant 1.000000e+00 : f32
    %368 = vector.broadcast %cst_88 : f32 to vector<2x32xf32>
    %369 = arith.addf %368, %367 : vector<2x32xf32>
    %370 = arith.divf %368, %369 : vector<2x32xf32>
    %371 = arith.mulf %362, %244 : vector<2x32xf32>
    %372 = arith.mulf %356, %364 : vector<2x32xf32>
    %373 = arith.addf %371, %372 : vector<2x32xf32>
    %374 = math.tanh %373 : vector<2x32xf32>
    %375 = arith.mulf %370, %374 : vector<2x32xf32>
    %376 = arith.truncf %375 : vector<2x32xf32> to vector<2x32xbf16>
    %cst_89 = arith.constant dense<0.000000e+00> : vector<2x128xf32>
    %377 = tpu.matmul %376, %7, %cst_89 {dimension_numbers = #tpu.dot_dimension_numbers<[1], [0], [0], [1], [0, 0, 1, 1], [], []>} : vector<2x32xbf16>, vector<32x128xbf16>, vector<2x128xf32> -> vector<2x128xf32>
    %378 = vector.broadcast %11 : vector<1x128xf32> to vector<2x128xf32>
    %379 = arith.addf %377, %378 : vector<2x128xf32>
    %380 = arith.truncf %278 : vector<2x32xf32> to vector<2x32xbf16>
    %cst_90 = arith.constant dense<0.000000e+00> : vector<2x128xf32>
    %381 = tpu.matmul %380, %9, %cst_90 {dimension_numbers = #tpu.dot_dimension_numbers<[1], [0], [0], [1], [0, 0, 1, 1], [], []>} : vector<2x32xbf16>, vector<32x128xbf16>, vector<2x128xf32> -> vector<2x128xf32>
    %382 = arith.addf %379, %381 : vector<2x128xf32>
    %383 = vector.extract_strided_slice %382 {offsets = [0, 0], sizes = [2, 32], strides = [1, 1]} : vector<2x128xf32> to vector<2x32xf32>
    %384 = arith.negf %383 : vector<2x32xf32>
    %385 = math.exp %384 : vector<2x32xf32>
    %cst_91 = arith.constant 1.000000e+00 : f32
    %386 = vector.broadcast %cst_91 : f32 to vector<2x32xf32>
    %387 = arith.addf %386, %385 : vector<2x32xf32>
    %388 = arith.divf %386, %387 : vector<2x32xf32>
    %389 = vector.extract_strided_slice %382 {offsets = [0, 32], sizes = [2, 32], strides = [1, 1]} : vector<2x128xf32> to vector<2x32xf32>
    %390 = arith.negf %389 : vector<2x32xf32>
    %391 = math.exp %390 : vector<2x32xf32>
    %cst_92 = arith.constant 1.000000e+00 : f32
    %392 = vector.broadcast %cst_92 : f32 to vector<2x32xf32>
    %393 = arith.addf %392, %391 : vector<2x32xf32>
    %394 = arith.divf %392, %393 : vector<2x32xf32>
    %395 = vector.extract_strided_slice %382 {offsets = [0, 64], sizes = [2, 32], strides = [1, 1]} : vector<2x128xf32> to vector<2x32xf32>
    %396 = math.tanh %395 : vector<2x32xf32>
    %397 = vector.extract_strided_slice %382 {offsets = [0, 96], sizes = [2, 32], strides = [1, 1]} : vector<2x128xf32> to vector<2x32xf32>
    %398 = arith.negf %397 : vector<2x32xf32>
    %399 = math.exp %398 : vector<2x32xf32>
    %cst_93 = arith.constant 1.000000e+00 : f32
    %400 = vector.broadcast %cst_93 : f32 to vector<2x32xf32>
    %401 = arith.addf %400, %399 : vector<2x32xf32>
    %402 = arith.divf %400, %401 : vector<2x32xf32>
    %403 = arith.mulf %394, %276 : vector<2x32xf32>
    %404 = arith.mulf %388, %396 : vector<2x32xf32>
    %405 = arith.addf %403, %404 : vector<2x32xf32>
    %406 = math.tanh %405 : vector<2x32xf32>
    %407 = arith.mulf %402, %406 : vector<2x32xf32>
    %408 = vector.extract_strided_slice %19 {offsets = [6, 0], sizes = [2, 128], strides = [1, 1]} : vector<16x128xf32> to vector<2x128xf32>
    %409 = arith.truncf %307 : vector<2x32xf32> to vector<2x32xbf16>
    %cst_94 = arith.constant dense<0.000000e+00> : vector<2x128xf32>
    %410 = tpu.matmul %409, %2, %cst_94 {dimension_numbers = #tpu.dot_dimension_numbers<[1], [0], [0], [1], [0, 0, 1, 1], [], []>} : vector<2x32xbf16>, vector<32x128xbf16>, vector<2x128xf32> -> vector<2x128xf32>
    %411 = arith.addf %408, %410 : vector<2x128xf32>
    %412 = vector.extract_strided_slice %411 {offsets = [0, 0], sizes = [2, 32], strides = [1, 1]} : vector<2x128xf32> to vector<2x32xf32>
    %413 = arith.negf %412 : vector<2x32xf32>
    %414 = math.exp %413 : vector<2x32xf32>
    %cst_95 = arith.constant 1.000000e+00 : f32
    %415 = vector.broadcast %cst_95 : f32 to vector<2x32xf32>
    %416 = arith.addf %415, %414 : vector<2x32xf32>
    %417 = arith.divf %415, %416 : vector<2x32xf32>
    %418 = vector.extract_strided_slice %411 {offsets = [0, 32], sizes = [2, 32], strides = [1, 1]} : vector<2x128xf32> to vector<2x32xf32>
    %419 = arith.negf %418 : vector<2x32xf32>
    %420 = math.exp %419 : vector<2x32xf32>
    %cst_96 = arith.constant 1.000000e+00 : f32
    %421 = vector.broadcast %cst_96 : f32 to vector<2x32xf32>
    %422 = arith.addf %421, %420 : vector<2x32xf32>
    %423 = arith.divf %421, %422 : vector<2x32xf32>
    %424 = vector.extract_strided_slice %411 {offsets = [0, 64], sizes = [2, 32], strides = [1, 1]} : vector<2x128xf32> to vector<2x32xf32>
    %425 = math.tanh %424 : vector<2x32xf32>
    %426 = vector.extract_strided_slice %411 {offsets = [0, 96], sizes = [2, 32], strides = [1, 1]} : vector<2x128xf32> to vector<2x32xf32>
    %427 = arith.negf %426 : vector<2x32xf32>
    %428 = math.exp %427 : vector<2x32xf32>
    %cst_97 = arith.constant 1.000000e+00 : f32
    %429 = vector.broadcast %cst_97 : f32 to vector<2x32xf32>
    %430 = arith.addf %429, %428 : vector<2x32xf32>
    %431 = arith.divf %429, %430 : vector<2x32xf32>
    %432 = arith.mulf %423, %305 : vector<2x32xf32>
    %433 = arith.mulf %417, %425 : vector<2x32xf32>
    %434 = arith.addf %432, %433 : vector<2x32xf32>
    %435 = math.tanh %434 : vector<2x32xf32>
    %436 = arith.mulf %431, %435 : vector<2x32xf32>
    %437 = arith.truncf %436 : vector<2x32xf32> to vector<2x32xbf16>
    %cst_98 = arith.constant dense<0.000000e+00> : vector<2x128xf32>
    %438 = tpu.matmul %437, %1, %cst_98 {dimension_numbers = #tpu.dot_dimension_numbers<[1], [0], [0], [1], [0, 0, 1, 1], [], []>} : vector<2x32xbf16>, vector<32x128xbf16>, vector<2x128xf32> -> vector<2x128xf32>
    %439 = vector.broadcast %5 : vector<1x128xf32> to vector<2x128xf32>
    %440 = arith.addf %438, %439 : vector<2x128xf32>
    %441 = arith.truncf %339 : vector<2x32xf32> to vector<2x32xbf16>
    %cst_99 = arith.constant dense<0.000000e+00> : vector<2x128xf32>
    %442 = tpu.matmul %441, %3, %cst_99 {dimension_numbers = #tpu.dot_dimension_numbers<[1], [0], [0], [1], [0, 0, 1, 1], [], []>} : vector<2x32xbf16>, vector<32x128xbf16>, vector<2x128xf32> -> vector<2x128xf32>
    %443 = arith.addf %440, %442 : vector<2x128xf32>
    %444 = vector.extract_strided_slice %443 {offsets = [0, 0], sizes = [2, 32], strides = [1, 1]} : vector<2x128xf32> to vector<2x32xf32>
    %445 = arith.negf %444 : vector<2x32xf32>
    %446 = math.exp %445 : vector<2x32xf32>
    %cst_100 = arith.constant 1.000000e+00 : f32
    %447 = vector.broadcast %cst_100 : f32 to vector<2x32xf32>
    %448 = arith.addf %447, %446 : vector<2x32xf32>
    %449 = arith.divf %447, %448 : vector<2x32xf32>
    %450 = vector.extract_strided_slice %443 {offsets = [0, 32], sizes = [2, 32], strides = [1, 1]} : vector<2x128xf32> to vector<2x32xf32>
    %451 = arith.negf %450 : vector<2x32xf32>
    %452 = math.exp %451 : vector<2x32xf32>
    %cst_101 = arith.constant 1.000000e+00 : f32
    %453 = vector.broadcast %cst_101 : f32 to vector<2x32xf32>
    %454 = arith.addf %453, %452 : vector<2x32xf32>
    %455 = arith.divf %453, %454 : vector<2x32xf32>
    %456 = vector.extract_strided_slice %443 {offsets = [0, 64], sizes = [2, 32], strides = [1, 1]} : vector<2x128xf32> to vector<2x32xf32>
    %457 = math.tanh %456 : vector<2x32xf32>
    %458 = vector.extract_strided_slice %443 {offsets = [0, 96], sizes = [2, 32], strides = [1, 1]} : vector<2x128xf32> to vector<2x32xf32>
    %459 = arith.negf %458 : vector<2x32xf32>
    %460 = math.exp %459 : vector<2x32xf32>
    %cst_102 = arith.constant 1.000000e+00 : f32
    %461 = vector.broadcast %cst_102 : f32 to vector<2x32xf32>
    %462 = arith.addf %461, %460 : vector<2x32xf32>
    %463 = arith.divf %461, %462 : vector<2x32xf32>
    %464 = arith.mulf %455, %337 : vector<2x32xf32>
    %465 = arith.mulf %449, %457 : vector<2x32xf32>
    %466 = arith.addf %464, %465 : vector<2x32xf32>
    %467 = math.tanh %466 : vector<2x32xf32>
    %468 = arith.mulf %463, %467 : vector<2x32xf32>
    %469 = arith.truncf %468 : vector<2x32xf32> to vector<2x32xbf16>
    %cst_103 = arith.constant dense<0.000000e+00> : vector<2x16xf32>
    %470 = tpu.matmul %469, %12, %cst_103 {dimension_numbers = #tpu.dot_dimension_numbers<[1], [0], [0], [1], [0, 0, 1, 1], [], []>} : vector<2x32xbf16>, vector<32x16xbf16>, vector<2x16xf32> -> vector<2x16xf32>
    %471 = vector.broadcast %13 : vector<1x16xf32> to vector<2x16xf32>
    %472 = arith.addf %470, %471 : vector<2x16xf32>
    %473 = arith.truncf %472 : vector<2x16xf32> to vector<2x16xbf16>
    %cst_104 = arith.constant dense<0.000000e+00> : vector<2x128xf32>
    %474 = tpu.matmul %473, %6, %cst_104 {dimension_numbers = #tpu.dot_dimension_numbers<[1], [0], [0], [1], [0, 0, 1, 1], [], []>} : vector<2x16xbf16>, vector<16x128xbf16>, vector<2x128xf32> -> vector<2x128xf32>
    %475 = vector.broadcast %10 : vector<1x128xf32> to vector<2x128xf32>
    %476 = arith.addf %474, %475 : vector<2x128xf32>
    %477 = arith.truncf %375 : vector<2x32xf32> to vector<2x32xbf16>
    %cst_105 = arith.constant dense<0.000000e+00> : vector<2x128xf32>
    %478 = tpu.matmul %477, %8, %cst_105 {dimension_numbers = #tpu.dot_dimension_numbers<[1], [0], [0], [1], [0, 0, 1, 1], [], []>} : vector<2x32xbf16>, vector<32x128xbf16>, vector<2x128xf32> -> vector<2x128xf32>
    %479 = arith.addf %476, %478 : vector<2x128xf32>
    %480 = vector.extract_strided_slice %479 {offsets = [0, 0], sizes = [2, 32], strides = [1, 1]} : vector<2x128xf32> to vector<2x32xf32>
    %481 = arith.negf %480 : vector<2x32xf32>
    %482 = math.exp %481 : vector<2x32xf32>
    %cst_106 = arith.constant 1.000000e+00 : f32
    %483 = vector.broadcast %cst_106 : f32 to vector<2x32xf32>
    %484 = arith.addf %483, %482 : vector<2x32xf32>
    %485 = arith.divf %483, %484 : vector<2x32xf32>
    %486 = vector.extract_strided_slice %479 {offsets = [0, 32], sizes = [2, 32], strides = [1, 1]} : vector<2x128xf32> to vector<2x32xf32>
    %487 = arith.negf %486 : vector<2x32xf32>
    %488 = math.exp %487 : vector<2x32xf32>
    %cst_107 = arith.constant 1.000000e+00 : f32
    %489 = vector.broadcast %cst_107 : f32 to vector<2x32xf32>
    %490 = arith.addf %489, %488 : vector<2x32xf32>
    %491 = arith.divf %489, %490 : vector<2x32xf32>
    %492 = vector.extract_strided_slice %479 {offsets = [0, 64], sizes = [2, 32], strides = [1, 1]} : vector<2x128xf32> to vector<2x32xf32>
    %493 = math.tanh %492 : vector<2x32xf32>
    %494 = vector.extract_strided_slice %479 {offsets = [0, 96], sizes = [2, 32], strides = [1, 1]} : vector<2x128xf32> to vector<2x32xf32>
    %495 = arith.negf %494 : vector<2x32xf32>
    %496 = math.exp %495 : vector<2x32xf32>
    %cst_108 = arith.constant 1.000000e+00 : f32
    %497 = vector.broadcast %cst_108 : f32 to vector<2x32xf32>
    %498 = arith.addf %497, %496 : vector<2x32xf32>
    %499 = arith.divf %497, %498 : vector<2x32xf32>
    %500 = arith.mulf %491, %373 : vector<2x32xf32>
    %501 = arith.mulf %485, %493 : vector<2x32xf32>
    %502 = arith.addf %500, %501 : vector<2x32xf32>
    %503 = math.tanh %502 : vector<2x32xf32>
    %504 = arith.mulf %499, %503 : vector<2x32xf32>
    %505 = arith.truncf %504 : vector<2x32xf32> to vector<2x32xbf16>
    %cst_109 = arith.constant dense<0.000000e+00> : vector<2x128xf32>
    %506 = tpu.matmul %505, %7, %cst_109 {dimension_numbers = #tpu.dot_dimension_numbers<[1], [0], [0], [1], [0, 0, 1, 1], [], []>} : vector<2x32xbf16>, vector<32x128xbf16>, vector<2x128xf32> -> vector<2x128xf32>
    %507 = vector.broadcast %11 : vector<1x128xf32> to vector<2x128xf32>
    %508 = arith.addf %506, %507 : vector<2x128xf32>
    %509 = arith.truncf %407 : vector<2x32xf32> to vector<2x32xbf16>
    %cst_110 = arith.constant dense<0.000000e+00> : vector<2x128xf32>
    %510 = tpu.matmul %509, %9, %cst_110 {dimension_numbers = #tpu.dot_dimension_numbers<[1], [0], [0], [1], [0, 0, 1, 1], [], []>} : vector<2x32xbf16>, vector<32x128xbf16>, vector<2x128xf32> -> vector<2x128xf32>
    %511 = arith.addf %508, %510 : vector<2x128xf32>
    %512 = vector.extract_strided_slice %511 {offsets = [0, 0], sizes = [2, 32], strides = [1, 1]} : vector<2x128xf32> to vector<2x32xf32>
    %513 = arith.negf %512 : vector<2x32xf32>
    %514 = math.exp %513 : vector<2x32xf32>
    %cst_111 = arith.constant 1.000000e+00 : f32
    %515 = vector.broadcast %cst_111 : f32 to vector<2x32xf32>
    %516 = arith.addf %515, %514 : vector<2x32xf32>
    %517 = arith.divf %515, %516 : vector<2x32xf32>
    %518 = vector.extract_strided_slice %511 {offsets = [0, 32], sizes = [2, 32], strides = [1, 1]} : vector<2x128xf32> to vector<2x32xf32>
    %519 = arith.negf %518 : vector<2x32xf32>
    %520 = math.exp %519 : vector<2x32xf32>
    %cst_112 = arith.constant 1.000000e+00 : f32
    %521 = vector.broadcast %cst_112 : f32 to vector<2x32xf32>
    %522 = arith.addf %521, %520 : vector<2x32xf32>
    %523 = arith.divf %521, %522 : vector<2x32xf32>
    %524 = vector.extract_strided_slice %511 {offsets = [0, 64], sizes = [2, 32], strides = [1, 1]} : vector<2x128xf32> to vector<2x32xf32>
    %525 = math.tanh %524 : vector<2x32xf32>
    %526 = vector.extract_strided_slice %511 {offsets = [0, 96], sizes = [2, 32], strides = [1, 1]} : vector<2x128xf32> to vector<2x32xf32>
    %527 = arith.negf %526 : vector<2x32xf32>
    %528 = math.exp %527 : vector<2x32xf32>
    %cst_113 = arith.constant 1.000000e+00 : f32
    %529 = vector.broadcast %cst_113 : f32 to vector<2x32xf32>
    %530 = arith.addf %529, %528 : vector<2x32xf32>
    %531 = arith.divf %529, %530 : vector<2x32xf32>
    %532 = arith.mulf %523, %405 : vector<2x32xf32>
    %533 = arith.mulf %517, %525 : vector<2x32xf32>
    %534 = arith.addf %532, %533 : vector<2x32xf32>
    %535 = math.tanh %534 : vector<2x32xf32>
    %536 = arith.mulf %531, %535 : vector<2x32xf32>
    %537 = vector.extract_strided_slice %19 {offsets = [8, 0], sizes = [2, 128], strides = [1, 1]} : vector<16x128xf32> to vector<2x128xf32>
    %538 = arith.truncf %436 : vector<2x32xf32> to vector<2x32xbf16>
    %cst_114 = arith.constant dense<0.000000e+00> : vector<2x128xf32>
    %539 = tpu.matmul %538, %2, %cst_114 {dimension_numbers = #tpu.dot_dimension_numbers<[1], [0], [0], [1], [0, 0, 1, 1], [], []>} : vector<2x32xbf16>, vector<32x128xbf16>, vector<2x128xf32> -> vector<2x128xf32>
    %540 = arith.addf %537, %539 : vector<2x128xf32>
    %541 = vector.extract_strided_slice %540 {offsets = [0, 0], sizes = [2, 32], strides = [1, 1]} : vector<2x128xf32> to vector<2x32xf32>
    %542 = arith.negf %541 : vector<2x32xf32>
    %543 = math.exp %542 : vector<2x32xf32>
    %cst_115 = arith.constant 1.000000e+00 : f32
    %544 = vector.broadcast %cst_115 : f32 to vector<2x32xf32>
    %545 = arith.addf %544, %543 : vector<2x32xf32>
    %546 = arith.divf %544, %545 : vector<2x32xf32>
    %547 = vector.extract_strided_slice %540 {offsets = [0, 32], sizes = [2, 32], strides = [1, 1]} : vector<2x128xf32> to vector<2x32xf32>
    %548 = arith.negf %547 : vector<2x32xf32>
    %549 = math.exp %548 : vector<2x32xf32>
    %cst_116 = arith.constant 1.000000e+00 : f32
    %550 = vector.broadcast %cst_116 : f32 to vector<2x32xf32>
    %551 = arith.addf %550, %549 : vector<2x32xf32>
    %552 = arith.divf %550, %551 : vector<2x32xf32>
    %553 = vector.extract_strided_slice %540 {offsets = [0, 64], sizes = [2, 32], strides = [1, 1]} : vector<2x128xf32> to vector<2x32xf32>
    %554 = math.tanh %553 : vector<2x32xf32>
    %555 = vector.extract_strided_slice %540 {offsets = [0, 96], sizes = [2, 32], strides = [1, 1]} : vector<2x128xf32> to vector<2x32xf32>
    %556 = arith.negf %555 : vector<2x32xf32>
    %557 = math.exp %556 : vector<2x32xf32>
    %cst_117 = arith.constant 1.000000e+00 : f32
    %558 = vector.broadcast %cst_117 : f32 to vector<2x32xf32>
    %559 = arith.addf %558, %557 : vector<2x32xf32>
    %560 = arith.divf %558, %559 : vector<2x32xf32>
    %561 = arith.mulf %552, %434 : vector<2x32xf32>
    %562 = arith.mulf %546, %554 : vector<2x32xf32>
    %563 = arith.addf %561, %562 : vector<2x32xf32>
    %564 = math.tanh %563 : vector<2x32xf32>
    %565 = arith.mulf %560, %564 : vector<2x32xf32>
    %566 = arith.truncf %565 : vector<2x32xf32> to vector<2x32xbf16>
    %cst_118 = arith.constant dense<0.000000e+00> : vector<2x128xf32>
    %567 = tpu.matmul %566, %1, %cst_118 {dimension_numbers = #tpu.dot_dimension_numbers<[1], [0], [0], [1], [0, 0, 1, 1], [], []>} : vector<2x32xbf16>, vector<32x128xbf16>, vector<2x128xf32> -> vector<2x128xf32>
    %568 = vector.broadcast %5 : vector<1x128xf32> to vector<2x128xf32>
    %569 = arith.addf %567, %568 : vector<2x128xf32>
    %570 = arith.truncf %468 : vector<2x32xf32> to vector<2x32xbf16>
    %cst_119 = arith.constant dense<0.000000e+00> : vector<2x128xf32>
    %571 = tpu.matmul %570, %3, %cst_119 {dimension_numbers = #tpu.dot_dimension_numbers<[1], [0], [0], [1], [0, 0, 1, 1], [], []>} : vector<2x32xbf16>, vector<32x128xbf16>, vector<2x128xf32> -> vector<2x128xf32>
    %572 = arith.addf %569, %571 : vector<2x128xf32>
    %573 = vector.extract_strided_slice %572 {offsets = [0, 0], sizes = [2, 32], strides = [1, 1]} : vector<2x128xf32> to vector<2x32xf32>
    %574 = arith.negf %573 : vector<2x32xf32>
    %575 = math.exp %574 : vector<2x32xf32>
    %cst_120 = arith.constant 1.000000e+00 : f32
    %576 = vector.broadcast %cst_120 : f32 to vector<2x32xf32>
    %577 = arith.addf %576, %575 : vector<2x32xf32>
    %578 = arith.divf %576, %577 : vector<2x32xf32>
    %579 = vector.extract_strided_slice %572 {offsets = [0, 32], sizes = [2, 32], strides = [1, 1]} : vector<2x128xf32> to vector<2x32xf32>
    %580 = arith.negf %579 : vector<2x32xf32>
    %581 = math.exp %580 : vector<2x32xf32>
    %cst_121 = arith.constant 1.000000e+00 : f32
    %582 = vector.broadcast %cst_121 : f32 to vector<2x32xf32>
    %583 = arith.addf %582, %581 : vector<2x32xf32>
    %584 = arith.divf %582, %583 : vector<2x32xf32>
    %585 = vector.extract_strided_slice %572 {offsets = [0, 64], sizes = [2, 32], strides = [1, 1]} : vector<2x128xf32> to vector<2x32xf32>
    %586 = math.tanh %585 : vector<2x32xf32>
    %587 = vector.extract_strided_slice %572 {offsets = [0, 96], sizes = [2, 32], strides = [1, 1]} : vector<2x128xf32> to vector<2x32xf32>
    %588 = arith.negf %587 : vector<2x32xf32>
    %589 = math.exp %588 : vector<2x32xf32>
    %cst_122 = arith.constant 1.000000e+00 : f32
    %590 = vector.broadcast %cst_122 : f32 to vector<2x32xf32>
    %591 = arith.addf %590, %589 : vector<2x32xf32>
    %592 = arith.divf %590, %591 : vector<2x32xf32>
    %593 = arith.mulf %584, %466 : vector<2x32xf32>
    %594 = arith.mulf %578, %586 : vector<2x32xf32>
    %595 = arith.addf %593, %594 : vector<2x32xf32>
    %596 = math.tanh %595 : vector<2x32xf32>
    %597 = arith.mulf %592, %596 : vector<2x32xf32>
    %598 = arith.truncf %597 : vector<2x32xf32> to vector<2x32xbf16>
    %cst_123 = arith.constant dense<0.000000e+00> : vector<2x16xf32>
    %599 = tpu.matmul %598, %12, %cst_123 {dimension_numbers = #tpu.dot_dimension_numbers<[1], [0], [0], [1], [0, 0, 1, 1], [], []>} : vector<2x32xbf16>, vector<32x16xbf16>, vector<2x16xf32> -> vector<2x16xf32>
    %600 = vector.broadcast %13 : vector<1x16xf32> to vector<2x16xf32>
    %601 = arith.addf %599, %600 : vector<2x16xf32>
    %602 = arith.truncf %601 : vector<2x16xf32> to vector<2x16xbf16>
    %cst_124 = arith.constant dense<0.000000e+00> : vector<2x128xf32>
    %603 = tpu.matmul %602, %6, %cst_124 {dimension_numbers = #tpu.dot_dimension_numbers<[1], [0], [0], [1], [0, 0, 1, 1], [], []>} : vector<2x16xbf16>, vector<16x128xbf16>, vector<2x128xf32> -> vector<2x128xf32>
    %604 = vector.broadcast %10 : vector<1x128xf32> to vector<2x128xf32>
    %605 = arith.addf %603, %604 : vector<2x128xf32>
    %606 = arith.truncf %504 : vector<2x32xf32> to vector<2x32xbf16>
    %cst_125 = arith.constant dense<0.000000e+00> : vector<2x128xf32>
    %607 = tpu.matmul %606, %8, %cst_125 {dimension_numbers = #tpu.dot_dimension_numbers<[1], [0], [0], [1], [0, 0, 1, 1], [], []>} : vector<2x32xbf16>, vector<32x128xbf16>, vector<2x128xf32> -> vector<2x128xf32>
    %608 = arith.addf %605, %607 : vector<2x128xf32>
    %609 = vector.extract_strided_slice %608 {offsets = [0, 0], sizes = [2, 32], strides = [1, 1]} : vector<2x128xf32> to vector<2x32xf32>
    %610 = arith.negf %609 : vector<2x32xf32>
    %611 = math.exp %610 : vector<2x32xf32>
    %cst_126 = arith.constant 1.000000e+00 : f32
    %612 = vector.broadcast %cst_126 : f32 to vector<2x32xf32>
    %613 = arith.addf %612, %611 : vector<2x32xf32>
    %614 = arith.divf %612, %613 : vector<2x32xf32>
    %615 = vector.extract_strided_slice %608 {offsets = [0, 32], sizes = [2, 32], strides = [1, 1]} : vector<2x128xf32> to vector<2x32xf32>
    %616 = arith.negf %615 : vector<2x32xf32>
    %617 = math.exp %616 : vector<2x32xf32>
    %cst_127 = arith.constant 1.000000e+00 : f32
    %618 = vector.broadcast %cst_127 : f32 to vector<2x32xf32>
    %619 = arith.addf %618, %617 : vector<2x32xf32>
    %620 = arith.divf %618, %619 : vector<2x32xf32>
    %621 = vector.extract_strided_slice %608 {offsets = [0, 64], sizes = [2, 32], strides = [1, 1]} : vector<2x128xf32> to vector<2x32xf32>
    %622 = math.tanh %621 : vector<2x32xf32>
    %623 = vector.extract_strided_slice %608 {offsets = [0, 96], sizes = [2, 32], strides = [1, 1]} : vector<2x128xf32> to vector<2x32xf32>
    %624 = arith.negf %623 : vector<2x32xf32>
    %625 = math.exp %624 : vector<2x32xf32>
    %cst_128 = arith.constant 1.000000e+00 : f32
    %626 = vector.broadcast %cst_128 : f32 to vector<2x32xf32>
    %627 = arith.addf %626, %625 : vector<2x32xf32>
    %628 = arith.divf %626, %627 : vector<2x32xf32>
    %629 = arith.mulf %620, %502 : vector<2x32xf32>
    %630 = arith.mulf %614, %622 : vector<2x32xf32>
    %631 = arith.addf %629, %630 : vector<2x32xf32>
    %632 = math.tanh %631 : vector<2x32xf32>
    %633 = arith.mulf %628, %632 : vector<2x32xf32>
    %634 = arith.truncf %633 : vector<2x32xf32> to vector<2x32xbf16>
    %cst_129 = arith.constant dense<0.000000e+00> : vector<2x128xf32>
    %635 = tpu.matmul %634, %7, %cst_129 {dimension_numbers = #tpu.dot_dimension_numbers<[1], [0], [0], [1], [0, 0, 1, 1], [], []>} : vector<2x32xbf16>, vector<32x128xbf16>, vector<2x128xf32> -> vector<2x128xf32>
    %636 = vector.broadcast %11 : vector<1x128xf32> to vector<2x128xf32>
    %637 = arith.addf %635, %636 : vector<2x128xf32>
    %638 = arith.truncf %536 : vector<2x32xf32> to vector<2x32xbf16>
    %cst_130 = arith.constant dense<0.000000e+00> : vector<2x128xf32>
    %639 = tpu.matmul %638, %9, %cst_130 {dimension_numbers = #tpu.dot_dimension_numbers<[1], [0], [0], [1], [0, 0, 1, 1], [], []>} : vector<2x32xbf16>, vector<32x128xbf16>, vector<2x128xf32> -> vector<2x128xf32>
    %640 = arith.addf %637, %639 : vector<2x128xf32>
    %641 = vector.extract_strided_slice %640 {offsets = [0, 0], sizes = [2, 32], strides = [1, 1]} : vector<2x128xf32> to vector<2x32xf32>
    %642 = arith.negf %641 : vector<2x32xf32>
    %643 = math.exp %642 : vector<2x32xf32>
    %cst_131 = arith.constant 1.000000e+00 : f32
    %644 = vector.broadcast %cst_131 : f32 to vector<2x32xf32>
    %645 = arith.addf %644, %643 : vector<2x32xf32>
    %646 = arith.divf %644, %645 : vector<2x32xf32>
    %647 = vector.extract_strided_slice %640 {offsets = [0, 32], sizes = [2, 32], strides = [1, 1]} : vector<2x128xf32> to vector<2x32xf32>
    %648 = arith.negf %647 : vector<2x32xf32>
    %649 = math.exp %648 : vector<2x32xf32>
    %cst_132 = arith.constant 1.000000e+00 : f32
    %650 = vector.broadcast %cst_132 : f32 to vector<2x32xf32>
    %651 = arith.addf %650, %649 : vector<2x32xf32>
    %652 = arith.divf %650, %651 : vector<2x32xf32>
    %653 = vector.extract_strided_slice %640 {offsets = [0, 64], sizes = [2, 32], strides = [1, 1]} : vector<2x128xf32> to vector<2x32xf32>
    %654 = math.tanh %653 : vector<2x32xf32>
    %655 = vector.extract_strided_slice %640 {offsets = [0, 96], sizes = [2, 32], strides = [1, 1]} : vector<2x128xf32> to vector<2x32xf32>
    %656 = arith.negf %655 : vector<2x32xf32>
    %657 = math.exp %656 : vector<2x32xf32>
    %cst_133 = arith.constant 1.000000e+00 : f32
    %658 = vector.broadcast %cst_133 : f32 to vector<2x32xf32>
    %659 = arith.addf %658, %657 : vector<2x32xf32>
    %660 = arith.divf %658, %659 : vector<2x32xf32>
    %661 = arith.mulf %652, %534 : vector<2x32xf32>
    %662 = arith.mulf %646, %654 : vector<2x32xf32>
    %663 = arith.addf %661, %662 : vector<2x32xf32>
    %664 = math.tanh %663 : vector<2x32xf32>
    %665 = arith.mulf %660, %664 : vector<2x32xf32>
    %666 = vector.extract_strided_slice %19 {offsets = [10, 0], sizes = [2, 128], strides = [1, 1]} : vector<16x128xf32> to vector<2x128xf32>
    %667 = arith.truncf %565 : vector<2x32xf32> to vector<2x32xbf16>
    %cst_134 = arith.constant dense<0.000000e+00> : vector<2x128xf32>
    %668 = tpu.matmul %667, %2, %cst_134 {dimension_numbers = #tpu.dot_dimension_numbers<[1], [0], [0], [1], [0, 0, 1, 1], [], []>} : vector<2x32xbf16>, vector<32x128xbf16>, vector<2x128xf32> -> vector<2x128xf32>
    %669 = arith.addf %666, %668 : vector<2x128xf32>
    %670 = vector.extract_strided_slice %669 {offsets = [0, 0], sizes = [2, 32], strides = [1, 1]} : vector<2x128xf32> to vector<2x32xf32>
    %671 = arith.negf %670 : vector<2x32xf32>
    %672 = math.exp %671 : vector<2x32xf32>
    %cst_135 = arith.constant 1.000000e+00 : f32
    %673 = vector.broadcast %cst_135 : f32 to vector<2x32xf32>
    %674 = arith.addf %673, %672 : vector<2x32xf32>
    %675 = arith.divf %673, %674 : vector<2x32xf32>
    %676 = vector.extract_strided_slice %669 {offsets = [0, 32], sizes = [2, 32], strides = [1, 1]} : vector<2x128xf32> to vector<2x32xf32>
    %677 = arith.negf %676 : vector<2x32xf32>
    %678 = math.exp %677 : vector<2x32xf32>
    %cst_136 = arith.constant 1.000000e+00 : f32
    %679 = vector.broadcast %cst_136 : f32 to vector<2x32xf32>
    %680 = arith.addf %679, %678 : vector<2x32xf32>
    %681 = arith.divf %679, %680 : vector<2x32xf32>
    %682 = vector.extract_strided_slice %669 {offsets = [0, 64], sizes = [2, 32], strides = [1, 1]} : vector<2x128xf32> to vector<2x32xf32>
    %683 = math.tanh %682 : vector<2x32xf32>
    %684 = vector.extract_strided_slice %669 {offsets = [0, 96], sizes = [2, 32], strides = [1, 1]} : vector<2x128xf32> to vector<2x32xf32>
    %685 = arith.negf %684 : vector<2x32xf32>
    %686 = math.exp %685 : vector<2x32xf32>
    %cst_137 = arith.constant 1.000000e+00 : f32
    %687 = vector.broadcast %cst_137 : f32 to vector<2x32xf32>
    %688 = arith.addf %687, %686 : vector<2x32xf32>
    %689 = arith.divf %687, %688 : vector<2x32xf32>
    %690 = arith.mulf %681, %563 : vector<2x32xf32>
    %691 = arith.mulf %675, %683 : vector<2x32xf32>
    %692 = arith.addf %690, %691 : vector<2x32xf32>
    %693 = math.tanh %692 : vector<2x32xf32>
    %694 = arith.mulf %689, %693 : vector<2x32xf32>
    %695 = arith.truncf %694 : vector<2x32xf32> to vector<2x32xbf16>
    %cst_138 = arith.constant dense<0.000000e+00> : vector<2x128xf32>
    %696 = tpu.matmul %695, %1, %cst_138 {dimension_numbers = #tpu.dot_dimension_numbers<[1], [0], [0], [1], [0, 0, 1, 1], [], []>} : vector<2x32xbf16>, vector<32x128xbf16>, vector<2x128xf32> -> vector<2x128xf32>
    %697 = vector.broadcast %5 : vector<1x128xf32> to vector<2x128xf32>
    %698 = arith.addf %696, %697 : vector<2x128xf32>
    %699 = arith.truncf %597 : vector<2x32xf32> to vector<2x32xbf16>
    %cst_139 = arith.constant dense<0.000000e+00> : vector<2x128xf32>
    %700 = tpu.matmul %699, %3, %cst_139 {dimension_numbers = #tpu.dot_dimension_numbers<[1], [0], [0], [1], [0, 0, 1, 1], [], []>} : vector<2x32xbf16>, vector<32x128xbf16>, vector<2x128xf32> -> vector<2x128xf32>
    %701 = arith.addf %698, %700 : vector<2x128xf32>
    %702 = vector.extract_strided_slice %701 {offsets = [0, 0], sizes = [2, 32], strides = [1, 1]} : vector<2x128xf32> to vector<2x32xf32>
    %703 = arith.negf %702 : vector<2x32xf32>
    %704 = math.exp %703 : vector<2x32xf32>
    %cst_140 = arith.constant 1.000000e+00 : f32
    %705 = vector.broadcast %cst_140 : f32 to vector<2x32xf32>
    %706 = arith.addf %705, %704 : vector<2x32xf32>
    %707 = arith.divf %705, %706 : vector<2x32xf32>
    %708 = vector.extract_strided_slice %701 {offsets = [0, 32], sizes = [2, 32], strides = [1, 1]} : vector<2x128xf32> to vector<2x32xf32>
    %709 = arith.negf %708 : vector<2x32xf32>
    %710 = math.exp %709 : vector<2x32xf32>
    %cst_141 = arith.constant 1.000000e+00 : f32
    %711 = vector.broadcast %cst_141 : f32 to vector<2x32xf32>
    %712 = arith.addf %711, %710 : vector<2x32xf32>
    %713 = arith.divf %711, %712 : vector<2x32xf32>
    %714 = vector.extract_strided_slice %701 {offsets = [0, 64], sizes = [2, 32], strides = [1, 1]} : vector<2x128xf32> to vector<2x32xf32>
    %715 = math.tanh %714 : vector<2x32xf32>
    %716 = vector.extract_strided_slice %701 {offsets = [0, 96], sizes = [2, 32], strides = [1, 1]} : vector<2x128xf32> to vector<2x32xf32>
    %717 = arith.negf %716 : vector<2x32xf32>
    %718 = math.exp %717 : vector<2x32xf32>
    %cst_142 = arith.constant 1.000000e+00 : f32
    %719 = vector.broadcast %cst_142 : f32 to vector<2x32xf32>
    %720 = arith.addf %719, %718 : vector<2x32xf32>
    %721 = arith.divf %719, %720 : vector<2x32xf32>
    %722 = arith.mulf %713, %595 : vector<2x32xf32>
    %723 = arith.mulf %707, %715 : vector<2x32xf32>
    %724 = arith.addf %722, %723 : vector<2x32xf32>
    %725 = math.tanh %724 : vector<2x32xf32>
    %726 = arith.mulf %721, %725 : vector<2x32xf32>
    %727 = arith.truncf %726 : vector<2x32xf32> to vector<2x32xbf16>
    %cst_143 = arith.constant dense<0.000000e+00> : vector<2x16xf32>
    %728 = tpu.matmul %727, %12, %cst_143 {dimension_numbers = #tpu.dot_dimension_numbers<[1], [0], [0], [1], [0, 0, 1, 1], [], []>} : vector<2x32xbf16>, vector<32x16xbf16>, vector<2x16xf32> -> vector<2x16xf32>
    %729 = vector.broadcast %13 : vector<1x16xf32> to vector<2x16xf32>
    %730 = arith.addf %728, %729 : vector<2x16xf32>
    %731 = arith.truncf %730 : vector<2x16xf32> to vector<2x16xbf16>
    %cst_144 = arith.constant dense<0.000000e+00> : vector<2x128xf32>
    %732 = tpu.matmul %731, %6, %cst_144 {dimension_numbers = #tpu.dot_dimension_numbers<[1], [0], [0], [1], [0, 0, 1, 1], [], []>} : vector<2x16xbf16>, vector<16x128xbf16>, vector<2x128xf32> -> vector<2x128xf32>
    %733 = vector.broadcast %10 : vector<1x128xf32> to vector<2x128xf32>
    %734 = arith.addf %732, %733 : vector<2x128xf32>
    %735 = arith.truncf %633 : vector<2x32xf32> to vector<2x32xbf16>
    %cst_145 = arith.constant dense<0.000000e+00> : vector<2x128xf32>
    %736 = tpu.matmul %735, %8, %cst_145 {dimension_numbers = #tpu.dot_dimension_numbers<[1], [0], [0], [1], [0, 0, 1, 1], [], []>} : vector<2x32xbf16>, vector<32x128xbf16>, vector<2x128xf32> -> vector<2x128xf32>
    %737 = arith.addf %734, %736 : vector<2x128xf32>
    %738 = vector.extract_strided_slice %737 {offsets = [0, 0], sizes = [2, 32], strides = [1, 1]} : vector<2x128xf32> to vector<2x32xf32>
    %739 = arith.negf %738 : vector<2x32xf32>
    %740 = math.exp %739 : vector<2x32xf32>
    %cst_146 = arith.constant 1.000000e+00 : f32
    %741 = vector.broadcast %cst_146 : f32 to vector<2x32xf32>
    %742 = arith.addf %741, %740 : vector<2x32xf32>
    %743 = arith.divf %741, %742 : vector<2x32xf32>
    %744 = vector.extract_strided_slice %737 {offsets = [0, 32], sizes = [2, 32], strides = [1, 1]} : vector<2x128xf32> to vector<2x32xf32>
    %745 = arith.negf %744 : vector<2x32xf32>
    %746 = math.exp %745 : vector<2x32xf32>
    %cst_147 = arith.constant 1.000000e+00 : f32
    %747 = vector.broadcast %cst_147 : f32 to vector<2x32xf32>
    %748 = arith.addf %747, %746 : vector<2x32xf32>
    %749 = arith.divf %747, %748 : vector<2x32xf32>
    %750 = vector.extract_strided_slice %737 {offsets = [0, 64], sizes = [2, 32], strides = [1, 1]} : vector<2x128xf32> to vector<2x32xf32>
    %751 = math.tanh %750 : vector<2x32xf32>
    %752 = vector.extract_strided_slice %737 {offsets = [0, 96], sizes = [2, 32], strides = [1, 1]} : vector<2x128xf32> to vector<2x32xf32>
    %753 = arith.negf %752 : vector<2x32xf32>
    %754 = math.exp %753 : vector<2x32xf32>
    %cst_148 = arith.constant 1.000000e+00 : f32
    %755 = vector.broadcast %cst_148 : f32 to vector<2x32xf32>
    %756 = arith.addf %755, %754 : vector<2x32xf32>
    %757 = arith.divf %755, %756 : vector<2x32xf32>
    %758 = arith.mulf %749, %631 : vector<2x32xf32>
    %759 = arith.mulf %743, %751 : vector<2x32xf32>
    %760 = arith.addf %758, %759 : vector<2x32xf32>
    %761 = math.tanh %760 : vector<2x32xf32>
    %762 = arith.mulf %757, %761 : vector<2x32xf32>
    %763 = arith.truncf %762 : vector<2x32xf32> to vector<2x32xbf16>
    %cst_149 = arith.constant dense<0.000000e+00> : vector<2x128xf32>
    %764 = tpu.matmul %763, %7, %cst_149 {dimension_numbers = #tpu.dot_dimension_numbers<[1], [0], [0], [1], [0, 0, 1, 1], [], []>} : vector<2x32xbf16>, vector<32x128xbf16>, vector<2x128xf32> -> vector<2x128xf32>
    %765 = vector.broadcast %11 : vector<1x128xf32> to vector<2x128xf32>
    %766 = arith.addf %764, %765 : vector<2x128xf32>
    %767 = arith.truncf %665 : vector<2x32xf32> to vector<2x32xbf16>
    %cst_150 = arith.constant dense<0.000000e+00> : vector<2x128xf32>
    %768 = tpu.matmul %767, %9, %cst_150 {dimension_numbers = #tpu.dot_dimension_numbers<[1], [0], [0], [1], [0, 0, 1, 1], [], []>} : vector<2x32xbf16>, vector<32x128xbf16>, vector<2x128xf32> -> vector<2x128xf32>
    %769 = arith.addf %766, %768 : vector<2x128xf32>
    %770 = vector.extract_strided_slice %769 {offsets = [0, 0], sizes = [2, 32], strides = [1, 1]} : vector<2x128xf32> to vector<2x32xf32>
    %771 = arith.negf %770 : vector<2x32xf32>
    %772 = math.exp %771 : vector<2x32xf32>
    %cst_151 = arith.constant 1.000000e+00 : f32
    %773 = vector.broadcast %cst_151 : f32 to vector<2x32xf32>
    %774 = arith.addf %773, %772 : vector<2x32xf32>
    %775 = arith.divf %773, %774 : vector<2x32xf32>
    %776 = vector.extract_strided_slice %769 {offsets = [0, 32], sizes = [2, 32], strides = [1, 1]} : vector<2x128xf32> to vector<2x32xf32>
    %777 = arith.negf %776 : vector<2x32xf32>
    %778 = math.exp %777 : vector<2x32xf32>
    %cst_152 = arith.constant 1.000000e+00 : f32
    %779 = vector.broadcast %cst_152 : f32 to vector<2x32xf32>
    %780 = arith.addf %779, %778 : vector<2x32xf32>
    %781 = arith.divf %779, %780 : vector<2x32xf32>
    %782 = vector.extract_strided_slice %769 {offsets = [0, 64], sizes = [2, 32], strides = [1, 1]} : vector<2x128xf32> to vector<2x32xf32>
    %783 = math.tanh %782 : vector<2x32xf32>
    %784 = vector.extract_strided_slice %769 {offsets = [0, 96], sizes = [2, 32], strides = [1, 1]} : vector<2x128xf32> to vector<2x32xf32>
    %785 = arith.negf %784 : vector<2x32xf32>
    %786 = math.exp %785 : vector<2x32xf32>
    %cst_153 = arith.constant 1.000000e+00 : f32
    %787 = vector.broadcast %cst_153 : f32 to vector<2x32xf32>
    %788 = arith.addf %787, %786 : vector<2x32xf32>
    %789 = arith.divf %787, %788 : vector<2x32xf32>
    %790 = arith.mulf %781, %663 : vector<2x32xf32>
    %791 = arith.mulf %775, %783 : vector<2x32xf32>
    %792 = arith.addf %790, %791 : vector<2x32xf32>
    %793 = math.tanh %792 : vector<2x32xf32>
    %794 = arith.mulf %789, %793 : vector<2x32xf32>
    %795 = vector.extract_strided_slice %19 {offsets = [12, 0], sizes = [2, 128], strides = [1, 1]} : vector<16x128xf32> to vector<2x128xf32>
    %796 = arith.truncf %694 : vector<2x32xf32> to vector<2x32xbf16>
    %cst_154 = arith.constant dense<0.000000e+00> : vector<2x128xf32>
    %797 = tpu.matmul %796, %2, %cst_154 {dimension_numbers = #tpu.dot_dimension_numbers<[1], [0], [0], [1], [0, 0, 1, 1], [], []>} : vector<2x32xbf16>, vector<32x128xbf16>, vector<2x128xf32> -> vector<2x128xf32>
    %798 = arith.addf %795, %797 : vector<2x128xf32>
    %799 = vector.extract_strided_slice %798 {offsets = [0, 0], sizes = [2, 32], strides = [1, 1]} : vector<2x128xf32> to vector<2x32xf32>
    %800 = arith.negf %799 : vector<2x32xf32>
    %801 = math.exp %800 : vector<2x32xf32>
    %cst_155 = arith.constant 1.000000e+00 : f32
    %802 = vector.broadcast %cst_155 : f32 to vector<2x32xf32>
    %803 = arith.addf %802, %801 : vector<2x32xf32>
    %804 = arith.divf %802, %803 : vector<2x32xf32>
    %805 = vector.extract_strided_slice %798 {offsets = [0, 32], sizes = [2, 32], strides = [1, 1]} : vector<2x128xf32> to vector<2x32xf32>
    %806 = arith.negf %805 : vector<2x32xf32>
    %807 = math.exp %806 : vector<2x32xf32>
    %cst_156 = arith.constant 1.000000e+00 : f32
    %808 = vector.broadcast %cst_156 : f32 to vector<2x32xf32>
    %809 = arith.addf %808, %807 : vector<2x32xf32>
    %810 = arith.divf %808, %809 : vector<2x32xf32>
    %811 = vector.extract_strided_slice %798 {offsets = [0, 64], sizes = [2, 32], strides = [1, 1]} : vector<2x128xf32> to vector<2x32xf32>
    %812 = math.tanh %811 : vector<2x32xf32>
    %813 = vector.extract_strided_slice %798 {offsets = [0, 96], sizes = [2, 32], strides = [1, 1]} : vector<2x128xf32> to vector<2x32xf32>
    %814 = arith.negf %813 : vector<2x32xf32>
    %815 = math.exp %814 : vector<2x32xf32>
    %cst_157 = arith.constant 1.000000e+00 : f32
    %816 = vector.broadcast %cst_157 : f32 to vector<2x32xf32>
    %817 = arith.addf %816, %815 : vector<2x32xf32>
    %818 = arith.divf %816, %817 : vector<2x32xf32>
    %819 = arith.mulf %810, %692 : vector<2x32xf32>
    %820 = arith.mulf %804, %812 : vector<2x32xf32>
    %821 = arith.addf %819, %820 : vector<2x32xf32>
    %822 = math.tanh %821 : vector<2x32xf32>
    %823 = arith.mulf %818, %822 : vector<2x32xf32>
    %824 = arith.truncf %823 : vector<2x32xf32> to vector<2x32xbf16>
    %cst_158 = arith.constant dense<0.000000e+00> : vector<2x128xf32>
    %825 = tpu.matmul %824, %1, %cst_158 {dimension_numbers = #tpu.dot_dimension_numbers<[1], [0], [0], [1], [0, 0, 1, 1], [], []>} : vector<2x32xbf16>, vector<32x128xbf16>, vector<2x128xf32> -> vector<2x128xf32>
    %826 = vector.broadcast %5 : vector<1x128xf32> to vector<2x128xf32>
    %827 = arith.addf %825, %826 : vector<2x128xf32>
    %828 = arith.truncf %726 : vector<2x32xf32> to vector<2x32xbf16>
    %cst_159 = arith.constant dense<0.000000e+00> : vector<2x128xf32>
    %829 = tpu.matmul %828, %3, %cst_159 {dimension_numbers = #tpu.dot_dimension_numbers<[1], [0], [0], [1], [0, 0, 1, 1], [], []>} : vector<2x32xbf16>, vector<32x128xbf16>, vector<2x128xf32> -> vector<2x128xf32>
    %830 = arith.addf %827, %829 : vector<2x128xf32>
    %831 = vector.extract_strided_slice %830 {offsets = [0, 0], sizes = [2, 32], strides = [1, 1]} : vector<2x128xf32> to vector<2x32xf32>
    %832 = arith.negf %831 : vector<2x32xf32>
    %833 = math.exp %832 : vector<2x32xf32>
    %cst_160 = arith.constant 1.000000e+00 : f32
    %834 = vector.broadcast %cst_160 : f32 to vector<2x32xf32>
    %835 = arith.addf %834, %833 : vector<2x32xf32>
    %836 = arith.divf %834, %835 : vector<2x32xf32>
    %837 = vector.extract_strided_slice %830 {offsets = [0, 32], sizes = [2, 32], strides = [1, 1]} : vector<2x128xf32> to vector<2x32xf32>
    %838 = arith.negf %837 : vector<2x32xf32>
    %839 = math.exp %838 : vector<2x32xf32>
    %cst_161 = arith.constant 1.000000e+00 : f32
    %840 = vector.broadcast %cst_161 : f32 to vector<2x32xf32>
    %841 = arith.addf %840, %839 : vector<2x32xf32>
    %842 = arith.divf %840, %841 : vector<2x32xf32>
    %843 = vector.extract_strided_slice %830 {offsets = [0, 64], sizes = [2, 32], strides = [1, 1]} : vector<2x128xf32> to vector<2x32xf32>
    %844 = math.tanh %843 : vector<2x32xf32>
    %845 = vector.extract_strided_slice %830 {offsets = [0, 96], sizes = [2, 32], strides = [1, 1]} : vector<2x128xf32> to vector<2x32xf32>
    %846 = arith.negf %845 : vector<2x32xf32>
    %847 = math.exp %846 : vector<2x32xf32>
    %cst_162 = arith.constant 1.000000e+00 : f32
    %848 = vector.broadcast %cst_162 : f32 to vector<2x32xf32>
    %849 = arith.addf %848, %847 : vector<2x32xf32>
    %850 = arith.divf %848, %849 : vector<2x32xf32>
    %851 = arith.mulf %842, %724 : vector<2x32xf32>
    %852 = arith.mulf %836, %844 : vector<2x32xf32>
    %853 = arith.addf %851, %852 : vector<2x32xf32>
    %854 = math.tanh %853 : vector<2x32xf32>
    %855 = arith.mulf %850, %854 : vector<2x32xf32>
    %856 = arith.truncf %855 : vector<2x32xf32> to vector<2x32xbf16>
    %cst_163 = arith.constant dense<0.000000e+00> : vector<2x16xf32>
    %857 = tpu.matmul %856, %12, %cst_163 {dimension_numbers = #tpu.dot_dimension_numbers<[1], [0], [0], [1], [0, 0, 1, 1], [], []>} : vector<2x32xbf16>, vector<32x16xbf16>, vector<2x16xf32> -> vector<2x16xf32>
    %858 = vector.broadcast %13 : vector<1x16xf32> to vector<2x16xf32>
    %859 = arith.addf %857, %858 : vector<2x16xf32>
    %860 = arith.truncf %859 : vector<2x16xf32> to vector<2x16xbf16>
    %cst_164 = arith.constant dense<0.000000e+00> : vector<2x128xf32>
    %861 = tpu.matmul %860, %6, %cst_164 {dimension_numbers = #tpu.dot_dimension_numbers<[1], [0], [0], [1], [0, 0, 1, 1], [], []>} : vector<2x16xbf16>, vector<16x128xbf16>, vector<2x128xf32> -> vector<2x128xf32>
    %862 = vector.broadcast %10 : vector<1x128xf32> to vector<2x128xf32>
    %863 = arith.addf %861, %862 : vector<2x128xf32>
    %864 = arith.truncf %762 : vector<2x32xf32> to vector<2x32xbf16>
    %cst_165 = arith.constant dense<0.000000e+00> : vector<2x128xf32>
    %865 = tpu.matmul %864, %8, %cst_165 {dimension_numbers = #tpu.dot_dimension_numbers<[1], [0], [0], [1], [0, 0, 1, 1], [], []>} : vector<2x32xbf16>, vector<32x128xbf16>, vector<2x128xf32> -> vector<2x128xf32>
    %866 = arith.addf %863, %865 : vector<2x128xf32>
    %867 = vector.extract_strided_slice %866 {offsets = [0, 0], sizes = [2, 32], strides = [1, 1]} : vector<2x128xf32> to vector<2x32xf32>
    %868 = arith.negf %867 : vector<2x32xf32>
    %869 = math.exp %868 : vector<2x32xf32>
    %cst_166 = arith.constant 1.000000e+00 : f32
    %870 = vector.broadcast %cst_166 : f32 to vector<2x32xf32>
    %871 = arith.addf %870, %869 : vector<2x32xf32>
    %872 = arith.divf %870, %871 : vector<2x32xf32>
    %873 = vector.extract_strided_slice %866 {offsets = [0, 32], sizes = [2, 32], strides = [1, 1]} : vector<2x128xf32> to vector<2x32xf32>
    %874 = arith.negf %873 : vector<2x32xf32>
    %875 = math.exp %874 : vector<2x32xf32>
    %cst_167 = arith.constant 1.000000e+00 : f32
    %876 = vector.broadcast %cst_167 : f32 to vector<2x32xf32>
    %877 = arith.addf %876, %875 : vector<2x32xf32>
    %878 = arith.divf %876, %877 : vector<2x32xf32>
    %879 = vector.extract_strided_slice %866 {offsets = [0, 64], sizes = [2, 32], strides = [1, 1]} : vector<2x128xf32> to vector<2x32xf32>
    %880 = math.tanh %879 : vector<2x32xf32>
    %881 = vector.extract_strided_slice %866 {offsets = [0, 96], sizes = [2, 32], strides = [1, 1]} : vector<2x128xf32> to vector<2x32xf32>
    %882 = arith.negf %881 : vector<2x32xf32>
    %883 = math.exp %882 : vector<2x32xf32>
    %cst_168 = arith.constant 1.000000e+00 : f32
    %884 = vector.broadcast %cst_168 : f32 to vector<2x32xf32>
    %885 = arith.addf %884, %883 : vector<2x32xf32>
    %886 = arith.divf %884, %885 : vector<2x32xf32>
    %887 = arith.mulf %878, %760 : vector<2x32xf32>
    %888 = arith.mulf %872, %880 : vector<2x32xf32>
    %889 = arith.addf %887, %888 : vector<2x32xf32>
    %890 = math.tanh %889 : vector<2x32xf32>
    %891 = arith.mulf %886, %890 : vector<2x32xf32>
    %892 = arith.truncf %891 : vector<2x32xf32> to vector<2x32xbf16>
    %cst_169 = arith.constant dense<0.000000e+00> : vector<2x128xf32>
    %893 = tpu.matmul %892, %7, %cst_169 {dimension_numbers = #tpu.dot_dimension_numbers<[1], [0], [0], [1], [0, 0, 1, 1], [], []>} : vector<2x32xbf16>, vector<32x128xbf16>, vector<2x128xf32> -> vector<2x128xf32>
    %894 = vector.broadcast %11 : vector<1x128xf32> to vector<2x128xf32>
    %895 = arith.addf %893, %894 : vector<2x128xf32>
    %896 = arith.truncf %794 : vector<2x32xf32> to vector<2x32xbf16>
    %cst_170 = arith.constant dense<0.000000e+00> : vector<2x128xf32>
    %897 = tpu.matmul %896, %9, %cst_170 {dimension_numbers = #tpu.dot_dimension_numbers<[1], [0], [0], [1], [0, 0, 1, 1], [], []>} : vector<2x32xbf16>, vector<32x128xbf16>, vector<2x128xf32> -> vector<2x128xf32>
    %898 = arith.addf %895, %897 : vector<2x128xf32>
    %899 = vector.extract_strided_slice %898 {offsets = [0, 0], sizes = [2, 32], strides = [1, 1]} : vector<2x128xf32> to vector<2x32xf32>
    %900 = arith.negf %899 : vector<2x32xf32>
    %901 = math.exp %900 : vector<2x32xf32>
    %cst_171 = arith.constant 1.000000e+00 : f32
    %902 = vector.broadcast %cst_171 : f32 to vector<2x32xf32>
    %903 = arith.addf %902, %901 : vector<2x32xf32>
    %904 = arith.divf %902, %903 : vector<2x32xf32>
    %905 = vector.extract_strided_slice %898 {offsets = [0, 32], sizes = [2, 32], strides = [1, 1]} : vector<2x128xf32> to vector<2x32xf32>
    %906 = arith.negf %905 : vector<2x32xf32>
    %907 = math.exp %906 : vector<2x32xf32>
    %cst_172 = arith.constant 1.000000e+00 : f32
    %908 = vector.broadcast %cst_172 : f32 to vector<2x32xf32>
    %909 = arith.addf %908, %907 : vector<2x32xf32>
    %910 = arith.divf %908, %909 : vector<2x32xf32>
    %911 = vector.extract_strided_slice %898 {offsets = [0, 64], sizes = [2, 32], strides = [1, 1]} : vector<2x128xf32> to vector<2x32xf32>
    %912 = math.tanh %911 : vector<2x32xf32>
    %913 = vector.extract_strided_slice %898 {offsets = [0, 96], sizes = [2, 32], strides = [1, 1]} : vector<2x128xf32> to vector<2x32xf32>
    %914 = arith.negf %913 : vector<2x32xf32>
    %915 = math.exp %914 : vector<2x32xf32>
    %cst_173 = arith.constant 1.000000e+00 : f32
    %916 = vector.broadcast %cst_173 : f32 to vector<2x32xf32>
    %917 = arith.addf %916, %915 : vector<2x32xf32>
    %918 = arith.divf %916, %917 : vector<2x32xf32>
    %919 = arith.mulf %910, %792 : vector<2x32xf32>
    %920 = arith.mulf %904, %912 : vector<2x32xf32>
    %921 = arith.addf %919, %920 : vector<2x32xf32>
    %922 = math.tanh %921 : vector<2x32xf32>
    %923 = arith.mulf %918, %922 : vector<2x32xf32>
    %924 = vector.extract_strided_slice %19 {offsets = [14, 0], sizes = [2, 128], strides = [1, 1]} : vector<16x128xf32> to vector<2x128xf32>
    %925 = arith.truncf %823 : vector<2x32xf32> to vector<2x32xbf16>
    %cst_174 = arith.constant dense<0.000000e+00> : vector<2x128xf32>
    %926 = tpu.matmul %925, %2, %cst_174 {dimension_numbers = #tpu.dot_dimension_numbers<[1], [0], [0], [1], [0, 0, 1, 1], [], []>} : vector<2x32xbf16>, vector<32x128xbf16>, vector<2x128xf32> -> vector<2x128xf32>
    %927 = arith.addf %924, %926 : vector<2x128xf32>
    %928 = vector.extract_strided_slice %927 {offsets = [0, 0], sizes = [2, 32], strides = [1, 1]} : vector<2x128xf32> to vector<2x32xf32>
    %929 = arith.negf %928 : vector<2x32xf32>
    %930 = math.exp %929 : vector<2x32xf32>
    %cst_175 = arith.constant 1.000000e+00 : f32
    %931 = vector.broadcast %cst_175 : f32 to vector<2x32xf32>
    %932 = arith.addf %931, %930 : vector<2x32xf32>
    %933 = arith.divf %931, %932 : vector<2x32xf32>
    %934 = vector.extract_strided_slice %927 {offsets = [0, 32], sizes = [2, 32], strides = [1, 1]} : vector<2x128xf32> to vector<2x32xf32>
    %935 = arith.negf %934 : vector<2x32xf32>
    %936 = math.exp %935 : vector<2x32xf32>
    %cst_176 = arith.constant 1.000000e+00 : f32
    %937 = vector.broadcast %cst_176 : f32 to vector<2x32xf32>
    %938 = arith.addf %937, %936 : vector<2x32xf32>
    %939 = arith.divf %937, %938 : vector<2x32xf32>
    %940 = vector.extract_strided_slice %927 {offsets = [0, 64], sizes = [2, 32], strides = [1, 1]} : vector<2x128xf32> to vector<2x32xf32>
    %941 = math.tanh %940 : vector<2x32xf32>
    %942 = vector.extract_strided_slice %927 {offsets = [0, 96], sizes = [2, 32], strides = [1, 1]} : vector<2x128xf32> to vector<2x32xf32>
    %943 = arith.negf %942 : vector<2x32xf32>
    %944 = math.exp %943 : vector<2x32xf32>
    %cst_177 = arith.constant 1.000000e+00 : f32
    %945 = vector.broadcast %cst_177 : f32 to vector<2x32xf32>
    %946 = arith.addf %945, %944 : vector<2x32xf32>
    %947 = arith.divf %945, %946 : vector<2x32xf32>
    %948 = arith.mulf %939, %821 : vector<2x32xf32>
    %949 = arith.mulf %933, %941 : vector<2x32xf32>
    %950 = arith.addf %948, %949 : vector<2x32xf32>
    %951 = math.tanh %950 : vector<2x32xf32>
    %952 = arith.mulf %947, %951 : vector<2x32xf32>
    %953 = arith.truncf %952 : vector<2x32xf32> to vector<2x32xbf16>
    %cst_178 = arith.constant dense<0.000000e+00> : vector<2x128xf32>
    %954 = tpu.matmul %953, %1, %cst_178 {dimension_numbers = #tpu.dot_dimension_numbers<[1], [0], [0], [1], [0, 0, 1, 1], [], []>} : vector<2x32xbf16>, vector<32x128xbf16>, vector<2x128xf32> -> vector<2x128xf32>
    %955 = vector.broadcast %5 : vector<1x128xf32> to vector<2x128xf32>
    %956 = arith.addf %954, %955 : vector<2x128xf32>
    %957 = arith.truncf %855 : vector<2x32xf32> to vector<2x32xbf16>
    %cst_179 = arith.constant dense<0.000000e+00> : vector<2x128xf32>
    %958 = tpu.matmul %957, %3, %cst_179 {dimension_numbers = #tpu.dot_dimension_numbers<[1], [0], [0], [1], [0, 0, 1, 1], [], []>} : vector<2x32xbf16>, vector<32x128xbf16>, vector<2x128xf32> -> vector<2x128xf32>
    %959 = arith.addf %956, %958 : vector<2x128xf32>
    %960 = vector.extract_strided_slice %959 {offsets = [0, 0], sizes = [2, 32], strides = [1, 1]} : vector<2x128xf32> to vector<2x32xf32>
    %961 = arith.negf %960 : vector<2x32xf32>
    %962 = math.exp %961 : vector<2x32xf32>
    %cst_180 = arith.constant 1.000000e+00 : f32
    %963 = vector.broadcast %cst_180 : f32 to vector<2x32xf32>
    %964 = arith.addf %963, %962 : vector<2x32xf32>
    %965 = arith.divf %963, %964 : vector<2x32xf32>
    %966 = vector.extract_strided_slice %959 {offsets = [0, 32], sizes = [2, 32], strides = [1, 1]} : vector<2x128xf32> to vector<2x32xf32>
    %967 = arith.negf %966 : vector<2x32xf32>
    %968 = math.exp %967 : vector<2x32xf32>
    %cst_181 = arith.constant 1.000000e+00 : f32
    %969 = vector.broadcast %cst_181 : f32 to vector<2x32xf32>
    %970 = arith.addf %969, %968 : vector<2x32xf32>
    %971 = arith.divf %969, %970 : vector<2x32xf32>
    %972 = vector.extract_strided_slice %959 {offsets = [0, 64], sizes = [2, 32], strides = [1, 1]} : vector<2x128xf32> to vector<2x32xf32>
    %973 = math.tanh %972 : vector<2x32xf32>
    %974 = vector.extract_strided_slice %959 {offsets = [0, 96], sizes = [2, 32], strides = [1, 1]} : vector<2x128xf32> to vector<2x32xf32>
    %975 = arith.negf %974 : vector<2x32xf32>
    %976 = math.exp %975 : vector<2x32xf32>
    %cst_182 = arith.constant 1.000000e+00 : f32
    %977 = vector.broadcast %cst_182 : f32 to vector<2x32xf32>
    %978 = arith.addf %977, %976 : vector<2x32xf32>
    %979 = arith.divf %977, %978 : vector<2x32xf32>
    %980 = arith.mulf %971, %853 : vector<2x32xf32>
    %981 = arith.mulf %965, %973 : vector<2x32xf32>
    %982 = arith.addf %980, %981 : vector<2x32xf32>
    %983 = math.tanh %982 : vector<2x32xf32>
    %984 = arith.mulf %979, %983 : vector<2x32xf32>
    %985 = arith.truncf %984 : vector<2x32xf32> to vector<2x32xbf16>
    %cst_183 = arith.constant dense<0.000000e+00> : vector<2x16xf32>
    %986 = tpu.matmul %985, %12, %cst_183 {dimension_numbers = #tpu.dot_dimension_numbers<[1], [0], [0], [1], [0, 0, 1, 1], [], []>} : vector<2x32xbf16>, vector<32x16xbf16>, vector<2x16xf32> -> vector<2x16xf32>
    %987 = vector.broadcast %13 : vector<1x16xf32> to vector<2x16xf32>
    %988 = arith.addf %986, %987 : vector<2x16xf32>
    %989 = arith.truncf %988 : vector<2x16xf32> to vector<2x16xbf16>
    %cst_184 = arith.constant dense<0.000000e+00> : vector<2x128xf32>
    %990 = tpu.matmul %989, %6, %cst_184 {dimension_numbers = #tpu.dot_dimension_numbers<[1], [0], [0], [1], [0, 0, 1, 1], [], []>} : vector<2x16xbf16>, vector<16x128xbf16>, vector<2x128xf32> -> vector<2x128xf32>
    %991 = vector.broadcast %10 : vector<1x128xf32> to vector<2x128xf32>
    %992 = arith.addf %990, %991 : vector<2x128xf32>
    %993 = arith.truncf %891 : vector<2x32xf32> to vector<2x32xbf16>
    %cst_185 = arith.constant dense<0.000000e+00> : vector<2x128xf32>
    %994 = tpu.matmul %993, %8, %cst_185 {dimension_numbers = #tpu.dot_dimension_numbers<[1], [0], [0], [1], [0, 0, 1, 1], [], []>} : vector<2x32xbf16>, vector<32x128xbf16>, vector<2x128xf32> -> vector<2x128xf32>
    %995 = arith.addf %992, %994 : vector<2x128xf32>
    %996 = vector.extract_strided_slice %995 {offsets = [0, 0], sizes = [2, 32], strides = [1, 1]} : vector<2x128xf32> to vector<2x32xf32>
    %997 = arith.negf %996 : vector<2x32xf32>
    %998 = math.exp %997 : vector<2x32xf32>
    %cst_186 = arith.constant 1.000000e+00 : f32
    %999 = vector.broadcast %cst_186 : f32 to vector<2x32xf32>
    %1000 = arith.addf %999, %998 : vector<2x32xf32>
    %1001 = arith.divf %999, %1000 : vector<2x32xf32>
    %1002 = vector.extract_strided_slice %995 {offsets = [0, 32], sizes = [2, 32], strides = [1, 1]} : vector<2x128xf32> to vector<2x32xf32>
    %1003 = arith.negf %1002 : vector<2x32xf32>
    %1004 = math.exp %1003 : vector<2x32xf32>
    %cst_187 = arith.constant 1.000000e+00 : f32
    %1005 = vector.broadcast %cst_187 : f32 to vector<2x32xf32>
    %1006 = arith.addf %1005, %1004 : vector<2x32xf32>
    %1007 = arith.divf %1005, %1006 : vector<2x32xf32>
    %1008 = vector.extract_strided_slice %995 {offsets = [0, 64], sizes = [2, 32], strides = [1, 1]} : vector<2x128xf32> to vector<2x32xf32>
    %1009 = math.tanh %1008 : vector<2x32xf32>
    %1010 = vector.extract_strided_slice %995 {offsets = [0, 96], sizes = [2, 32], strides = [1, 1]} : vector<2x128xf32> to vector<2x32xf32>
    %1011 = arith.negf %1010 : vector<2x32xf32>
    %1012 = math.exp %1011 : vector<2x32xf32>
    %cst_188 = arith.constant 1.000000e+00 : f32
    %1013 = vector.broadcast %cst_188 : f32 to vector<2x32xf32>
    %1014 = arith.addf %1013, %1012 : vector<2x32xf32>
    %1015 = arith.divf %1013, %1014 : vector<2x32xf32>
    %1016 = arith.mulf %1007, %889 : vector<2x32xf32>
    %1017 = arith.mulf %1001, %1009 : vector<2x32xf32>
    %1018 = arith.addf %1016, %1017 : vector<2x32xf32>
    %1019 = math.tanh %1018 : vector<2x32xf32>
    %1020 = arith.mulf %1015, %1019 : vector<2x32xf32>
    %1021 = arith.truncf %1020 : vector<2x32xf32> to vector<2x32xbf16>
    %cst_189 = arith.constant dense<0.000000e+00> : vector<2x128xf32>
    %1022 = tpu.matmul %1021, %7, %cst_189 {dimension_numbers = #tpu.dot_dimension_numbers<[1], [0], [0], [1], [0, 0, 1, 1], [], []>} : vector<2x32xbf16>, vector<32x128xbf16>, vector<2x128xf32> -> vector<2x128xf32>
    %1023 = vector.broadcast %11 : vector<1x128xf32> to vector<2x128xf32>
    %1024 = arith.addf %1022, %1023 : vector<2x128xf32>
    %1025 = arith.truncf %923 : vector<2x32xf32> to vector<2x32xbf16>
    %cst_190 = arith.constant dense<0.000000e+00> : vector<2x128xf32>
    %1026 = tpu.matmul %1025, %9, %cst_190 {dimension_numbers = #tpu.dot_dimension_numbers<[1], [0], [0], [1], [0, 0, 1, 1], [], []>} : vector<2x32xbf16>, vector<32x128xbf16>, vector<2x128xf32> -> vector<2x128xf32>
    %1027 = arith.addf %1024, %1026 : vector<2x128xf32>
    %1028 = vector.extract_strided_slice %1027 {offsets = [0, 0], sizes = [2, 32], strides = [1, 1]} : vector<2x128xf32> to vector<2x32xf32>
    %1029 = arith.negf %1028 : vector<2x32xf32>
    %1030 = math.exp %1029 : vector<2x32xf32>
    %cst_191 = arith.constant 1.000000e+00 : f32
    %1031 = vector.broadcast %cst_191 : f32 to vector<2x32xf32>
    %1032 = arith.addf %1031, %1030 : vector<2x32xf32>
    %1033 = arith.divf %1031, %1032 : vector<2x32xf32>
    %1034 = vector.extract_strided_slice %1027 {offsets = [0, 32], sizes = [2, 32], strides = [1, 1]} : vector<2x128xf32> to vector<2x32xf32>
    %1035 = arith.negf %1034 : vector<2x32xf32>
    %1036 = math.exp %1035 : vector<2x32xf32>
    %cst_192 = arith.constant 1.000000e+00 : f32
    %1037 = vector.broadcast %cst_192 : f32 to vector<2x32xf32>
    %1038 = arith.addf %1037, %1036 : vector<2x32xf32>
    %1039 = arith.divf %1037, %1038 : vector<2x32xf32>
    %1040 = vector.extract_strided_slice %1027 {offsets = [0, 64], sizes = [2, 32], strides = [1, 1]} : vector<2x128xf32> to vector<2x32xf32>
    %1041 = math.tanh %1040 : vector<2x32xf32>
    %1042 = vector.extract_strided_slice %1027 {offsets = [0, 96], sizes = [2, 32], strides = [1, 1]} : vector<2x128xf32> to vector<2x32xf32>
    %1043 = arith.negf %1042 : vector<2x32xf32>
    %1044 = math.exp %1043 : vector<2x32xf32>
    %cst_193 = arith.constant 1.000000e+00 : f32
    %1045 = vector.broadcast %cst_193 : f32 to vector<2x32xf32>
    %1046 = arith.addf %1045, %1044 : vector<2x32xf32>
    %1047 = arith.divf %1045, %1046 : vector<2x32xf32>
    %1048 = arith.mulf %1039, %921 : vector<2x32xf32>
    %1049 = arith.mulf %1033, %1041 : vector<2x32xf32>
    %1050 = arith.addf %1048, %1049 : vector<2x32xf32>
    %1051 = math.tanh %1050 : vector<2x32xf32>
    %1052 = arith.mulf %1047, %1051 : vector<2x32xf32>
    %1053 = arith.truncf %1052 : vector<2x32xf32> to vector<2x32xbf16>
    %cst_194 = arith.constant dense<0.000000e+00> : vector<2x16xf32>
    %1054 = tpu.matmul %1053, %14, %cst_194 {dimension_numbers = #tpu.dot_dimension_numbers<[1], [0], [0], [1], [0, 0, 1, 1], [], []>} : vector<2x32xbf16>, vector<32x16xbf16>, vector<2x16xf32> -> vector<2x16xf32>
    %1055 = vector.broadcast %15 : vector<1x16xf32> to vector<2x16xf32>
    %1056 = arith.addf %1054, %1055 : vector<2x16xf32>
    %c0_195 = arith.constant 0 : index
    %c0_196 = arith.constant 0 : index
    %1057 = vector.load %arg17[%c0_195, %c0_196] : memref<2x16xf32, #tpu.memory_space<vmem>>, vector<2x16xf32>
    tpu.vector_store %arg17[%c0_195, %c0_196], %1056 {strides = array<i32>} : memref<2x16xf32, #tpu.memory_space<vmem>>, vector<2x16xf32>,
    return
  }
}

</mosaic_0001>

<llo_original>
// kernel: lstm_encoder_decoder.1
$region0: #{lstm_encoder_decoder.1}
  #allocation0 [shape = 'u32[]', space=smem, size = 0x4, offset = 0x4, fixed_abs, tag = 'smem constant byte address 0x4 - core index']
  #allocation1 [shape = 'u32[144,128]{1,0:T(1,128)}', space=vmem, size = 0x12000, scoped, tag = 'internal scratch']
  %s0 = inlined_call_operand.vmem [shape: bf16[16,16], index: 0, kind: input, shape index: {}]
  %s1 = inlined_call_operand.hbm [shape: bf16[16,128], index: 1, kind: input, shape index: {}]
  %s2 = inlined_call_operand.vmem [shape: bf16[32,128], index: 2, kind: input, shape index: {}]
  %s3 = inlined_call_operand.vmem [shape: f32[1,128], index: 3, kind: input, shape index: {}]
  %s4 = inlined_call_operand.vmem [shape: bf16[32,128], index: 4, kind: input, shape index: {}]
  %s5 = inlined_call_operand.vmem [shape: bf16[32,128], index: 5, kind: input, shape index: {}]
  %s6 = inlined_call_operand.vmem [shape: f32[1,128], index: 6, kind: input, shape index: {}]
  %s7 = inlined_call_operand.vmem [shape: bf16[32,16], index: 7, kind: input, shape index: {}]
  %s8 = inlined_call_operand.hbm [shape: f32[1,16], index: 8, kind: input, shape index: {}]
  %s9 = inlined_call_operand.vmem [shape: bf16[16,128], index: 9, kind: input, shape index: {}]
  %s10 = inlined_call_operand.vmem [shape: bf16[32,128], index: 10, kind: input, shape index: {}]
  %s11 = inlined_call_operand.vmem [shape: f32[1,128], index: 11, kind: input, shape index: {}]
  %s12 = inlined_call_operand.vmem [shape: bf16[32,128], index: 12, kind: input, shape index: {}]
  %s13 = inlined_call_operand.vmem [shape: bf16[32,128], index: 13, kind: input, shape index: {}]
  %s14 = inlined_call_operand.vmem [shape: f32[1,128], index: 14, kind: input, shape index: {}]
  %s15 = inlined_call_operand.vmem [shape: bf16[32,16], index: 15, kind: input, shape index: {}]
  %s16 = inlined_call_operand.vmem [shape: f32[1,16], index: 16, kind: input, shape index: {}]
  %s17 = inlined_call_operand.hbm [shape: f32[2,16], index: 17, kind: output, shape index: {}]
  %s18 = sld [smem:[#allocation0]]
  $region86: #{lstm_encoder_decoder.1} parent=0
    _
  %s20 = ssub.s32 1, %s18
  %s21 = scalar_select 0, %s20, %s18
  $region1: #{lstm_encoder_decoder.1} parent=0
    #allocation2 [shape = 'u8[4096]{0}', space=vmem, size = 0x1000, scoped, tag = 'input window, operand 1, single buffered']
    #allocation3 [shape = 's32[1]{0}', space=sflag, size = 0x4, scoped, tag = 'scoped memory for lstm_encoder_decoder.1']
    #allocation4 [shape = 's32[1]{0}', space=sflag, size = 0x4, scoped, tag = 'scoped memory for lstm_encoder_decoder.1']
    #allocation5 [shape = 'u8[512]{0}', space=vmem, size = 0x400, scoped, tag = 'input window, operand 8, single buffered']
    #allocation6 [shape = 's32[1]{0}', space=sflag, size = 0x4, scoped, tag = 'scoped memory for lstm_encoder_decoder.1']
    #allocation7 [shape = 'u8[1024]{0}', space=vmem, size = 0x400, scoped, tag = 'output window, operand 0, single buffered']
    %22 = vsyncpa [#allocation3], 0
    %23 = vsyncpa [#allocation6], 0
    %24 = vsyncpa [#allocation4], 0
    // Predicated region
    $region2: #{lstm_encoder_decoder.1} parent=1 // pred_check
      _
    $region3: #{lstm_encoder_decoder.1} parent=1 // pred_check_branch
      %26 = sbr.rel (0) target = $region5
    $region4: #{lstm_encoder_decoder.1} parent=1 // pred_region
      _
    $region5: #{lstm_encoder_decoder.1} parent=1 // pred_fallthru
      _
    // Predicated region
    $region6: #{lstm_encoder_decoder.1} parent=1 // pred_check
      _
    $region7: #{lstm_encoder_decoder.1} parent=1 // pred_check_branch
      %28 = sbr.rel (0) target = $region9
    $region8: #{lstm_encoder_decoder.1} parent=1 // pred_region
      %s30 = ssub.s32 128, 128
      %31 = vsyncadd [#allocation3], %s30
      %s32 = sshll.u32 [#allocation2], 4
      %s33 = int_to_ptr.vmem [resolvable:$true] %s32
      %38 = dma.hbm_to_vmem [thread:$0]  %s1, 128, %s33, [#allocation3], 64, 64, 4
    $region9: #{lstm_encoder_decoder.1} parent=1 // pred_fallthru
      _
    // Predicated region
    $region10: #{lstm_encoder_decoder.1} parent=1 // pred_check
      _
    $region11: #{lstm_encoder_decoder.1} parent=1 // pred_check_branch
      %40 = sbr.rel (0) target = $region13
    $region12: #{lstm_encoder_decoder.1} parent=1 // pred_region
      _
    $region13: #{lstm_encoder_decoder.1} parent=1 // pred_fallthru
      _
    // Predicated region
    $region14: #{lstm_encoder_decoder.1} parent=1 // pred_check
      _
    $region15: #{lstm_encoder_decoder.1} parent=1 // pred_check_branch
      %42 = sbr.rel (0) target = $region17
    $region16: #{lstm_encoder_decoder.1} parent=1 // pred_region
      _
    $region17: #{lstm_encoder_decoder.1} parent=1 // pred_fallthru
      _
    // Predicated region
    $region18: #{lstm_encoder_decoder.1} parent=1 // pred_check
      _
    $region19: #{lstm_encoder_decoder.1} parent=1 // pred_check_branch
      %44 = sbr.rel (0) target = $region21
    $region20: #{lstm_encoder_decoder.1} parent=1 // pred_region
      _
    $region21: #{lstm_encoder_decoder.1} parent=1 // pred_fallthru
      _
    // Predicated region
    $region22: #{lstm_encoder_decoder.1} parent=1 // pred_check
      _
    $region23: #{lstm_encoder_decoder.1} parent=1 // pred_check_branch
      %46 = sbr.rel (0) target = $region25
    $region24: #{lstm_encoder_decoder.1} parent=1 // pred_region
      _
    $region25: #{lstm_encoder_decoder.1} parent=1 // pred_fallthru
      _
    // Predicated region
    $region26: #{lstm_encoder_decoder.1} parent=1 // pred_check
      _
    $region27: #{lstm_encoder_decoder.1} parent=1 // pred_check_branch
      %48 = sbr.rel (0) target = $region29
    $region28: #{lstm_encoder_decoder.1} parent=1 // pred_region
      _
    $region29: #{lstm_encoder_decoder.1} parent=1 // pred_fallthru
      _
    // Predicated region
    $region30: #{lstm_encoder_decoder.1} parent=1 // pred_check
      _
    $region31: #{lstm_encoder_decoder.1} parent=1 // pred_check_branch
      %50 = sbr.rel (0) target = $region33
    $region32: #{lstm_encoder_decoder.1} parent=1 // pred_region
      _
    $region33: #{lstm_encoder_decoder.1} parent=1 // pred_fallthru
      _
    // Predicated region
    $region34: #{lstm_encoder_decoder.1} parent=1 // pred_check
      _
    $region35: #{lstm_encoder_decoder.1} parent=1 // pred_check_branch
      %52 = sbr.rel (0) target = $region37
    $region36: #{lstm_encoder_decoder.1} parent=1 // pred_region
      %s54 = ssub.s32 16, 16
      %55 = vsyncadd [#allocation6], %s54
      %s57 = sshll.u32 [#allocation5], 4
      %s58 = int_to_ptr.vmem [resolvable:$true] %s57
      %60 = dma.hbm_to_vmem [thread:$0]  %s8, 16, %s58, [#allocation6]
    $region37: #{lstm_encoder_decoder.1} parent=1 // pred_fallthru
      _
    // Predicated region
    $region38: #{lstm_encoder_decoder.1} parent=1 // pred_check
      _
    $region39: #{lstm_encoder_decoder.1} parent=1 // pred_check_branch
      %62 = sbr.rel (0) target = $region41
    $region40: #{lstm_encoder_decoder.1} parent=1 // pred_region
      _
    $region41: #{lstm_encoder_decoder.1} parent=1 // pred_fallthru
      _
    // Predicated region
    $region42: #{lstm_encoder_decoder.1} parent=1 // pred_check
      _
    $region43: #{lstm_encoder_decoder.1} parent=1 // pred_check_branch
      %64 = sbr.rel (0) target = $region45
    $region44: #{lstm_encoder_decoder.1} parent=1 // pred_region
      _
    $region45: #{lstm_encoder_decoder.1} parent=1 // pred_fallthru
      _
    // Predicated region
    $region46: #{lstm_encoder_decoder.1} parent=1 // pred_check
      _
    $region47: #{lstm_encoder_decoder.1} parent=1 // pred_check_branch
      %66 = sbr.rel (0) target = $region49
    $region48: #{lstm_encoder_decoder.1} parent=1 // pred_region
      _
    $region49: #{lstm_encoder_decoder.1} parent=1 // pred_fallthru
      _
    // Predicated region
    $region50: #{lstm_encoder_decoder.1} parent=1 // pred_check
      _
    $region51: #{lstm_encoder_decoder.1} parent=1 // pred_check_branch
      %68 = sbr.rel (0) target = $region53
    $region52: #{lstm_encoder_decoder.1} parent=1 // pred_region
      _
    $region53: #{lstm_encoder_decoder.1} parent=1 // pred_fallthru
      _
    // Predicated region
    $region54: #{lstm_encoder_decoder.1} parent=1 // pred_check
      _
    $region55: #{lstm_encoder_decoder.1} parent=1 // pred_check_branch
      %70 = sbr.rel (0) target = $region57
    $region56: #{lstm_encoder_decoder.1} parent=1 // pred_region
      _
    $region57: #{lstm_encoder_decoder.1} parent=1 // pred_fallthru
      _
    // Predicated region
    $region58: #{lstm_encoder_decoder.1} parent=1 // pred_check
      _
    $region59: #{lstm_encoder_decoder.1} parent=1 // pred_check_branch
      %72 = sbr.rel (0) target = $region61
    $region60: #{lstm_encoder_decoder.1} parent=1 // pred_region
      _
    $region61: #{lstm_encoder_decoder.1} parent=1 // pred_fallthru
      _
    // Predicated region
    $region62: #{lstm_encoder_decoder.1} parent=1 // pred_check
      _
    $region63: #{lstm_encoder_decoder.1} parent=1 // pred_check_branch
      %74 = sbr.rel (0) target = $region65
    $region64: #{lstm_encoder_decoder.1} parent=1 // pred_region
      _
    $region65: #{lstm_encoder_decoder.1} parent=1 // pred_fallthru
      _
    // Predicated region
    $region66: #{lstm_encoder_decoder.1} parent=1 // pred_check
      _
    $region67: #{lstm_encoder_decoder.1} parent=1 // pred_check_branch
      %76 = sbr.rel (0) target = $region69
    $region68: #{lstm_encoder_decoder.1} parent=1 // pred_region
      _
    $region69: #{lstm_encoder_decoder.1} parent=1 // pred_fallthru
      _
    // Predicated region
    $region70: #{lstm_encoder_decoder.1} parent=1 // pred_check
      _
    $region71: #{lstm_encoder_decoder.1} parent=1 // pred_check_branch
      %78 = sbr.rel (0) target = $region73
    $region72: #{lstm_encoder_decoder.1} parent=1 // pred_region
      %79 = dma.done [#allocation3], 128
    $region73: #{lstm_encoder_decoder.1} parent=1 // pred_fallthru
      _
    // Predicated region
    $region74: #{lstm_encoder_decoder.1} parent=1 // pred_check
      _
    $region75: #{lstm_encoder_decoder.1} parent=1 // pred_check_branch
      %81 = sbr.rel (0) target = $region77
    $region76: #{lstm_encoder_decoder.1} parent=1 // pred_region
      %82 = dma.done [#allocation6], 16
    $region77: #{lstm_encoder_decoder.1} parent=1 // pred_fallthru
      _
    %v84 = vld [vmem:[#allocation2] sm:$0xf]
    %v85 = vld [vmem:[#allocation2 + $0x4] sm:$0xf]
    %v86 = vld [vmem:[%s4] sm:$0xf]
    %v87 = vld [vmem:[%s4 + $0x4] sm:$0xf]
    %v88 = vld [vmem:[%s4 + $0x8] sm:$0xf]
    %v89 = vld [vmem:[%s4 + $0xc] sm:$0xf]
    %v90 = vld [vmem:[%s2] sm:$0xf]
    %v91 = vld [vmem:[%s2 + $0x4] sm:$0xf]
    %v92 = vld [vmem:[%s2 + $0x8] sm:$0xf]
    %v93 = vld [vmem:[%s2 + $0xc] sm:$0xf]
    %v94 = vld [vmem:[%s5] sm:$0xf]
    %v95 = vld [vmem:[%s5 + $0x4] sm:$0xf]
    %v96 = vld [vmem:[%s5 + $0x8] sm:$0xf]
    %v97 = vld [vmem:[%s5 + $0xc] sm:$0xf]
    %v98 = vld [vmem:[%s3] sm:$0x1]
    %v99 = vld [vmem:[%s6] sm:$0x1]
    %v100 = vld [vmem:[%s9] sm:$0xf]
    %v101 = vld [vmem:[%s9 + $0x4] sm:$0xf]
    %v102 = vld [vmem:[%s12] sm:$0xf]
    %v103 = vld [vmem:[%s12 + $0x4] sm:$0xf]
    %v104 = vld [vmem:[%s12 + $0x8] sm:$0xf]
    %v105 = vld [vmem:[%s12 + $0xc] sm:$0xf]
    %v106 = vld [vmem:[%s10] sm:$0xf]
    %v107 = vld [vmem:[%s10 + $0x4] sm:$0xf]
    %v108 = vld [vmem:[%s10 + $0x8] sm:$0xf]
    %v109 = vld [vmem:[%s10 + $0xc] sm:$0xf]
    %v110 = vld [vmem:[%s13] sm:$0xf]
    %v111 = vld [vmem:[%s13 + $0x4] sm:$0xf]
    %v112 = vld [vmem:[%s13 + $0x8] sm:$0xf]
    %v113 = vld [vmem:[%s13 + $0xc] sm:$0xf]
    %v114 = vld [vmem:[%s11] sm:$0x1]
    %v115 = vld [vmem:[%s14] sm:$0x1]
    %v116 = vld [vmem:[%s7] sm:$0xf]
    %v117 = vld [vmem:[%s7 + $0x4] sm:$0xf]
    %v118 = vld [vmem:[%s7 + $0x8] sm:$0xf]
    %v119 = vld [vmem:[%s7 + $0xc] sm:$0xf]
    %v120 = vld [vmem:[#allocation5] sm:$0x1]
    %v121 = vld [vmem:[%s15] sm:$0xf]
    %v122 = vld [vmem:[%s15 + $0x4] sm:$0xf]
    %v123 = vld [vmem:[%s15 + $0x8] sm:$0xf]
    %v124 = vld [vmem:[%s15 + $0xc] sm:$0xf]
    %v125 = vld [vmem:[%s16] sm:$0x1]
    %v126 = vld [vmem:[%s0] sm:$0xf]
    %v127 = vld [vmem:[%s0 + $0x4] sm:$0xf]
    %v129 = vlaneseq
    %v130 = vshrl.u32 %v129, 7
    %v131 = vsub.s32 0, %v130
    %v132 = vrot.slane %v98, %v131
    %v136 = vunpack.c.l.b16 %v126
    %v137 = vunpack.c.l.b16 %v127
    %v138 = vpack.c.b16 %v137, %v136
    %v141 = vunpack.c.l.b16 %v84
    %v142 = vunpack.c.l.b16 %v85
    %v143 = vpack.c.b16 %v142, %v141
    %vm145 = vcmask 130048
    %v147 = vsel %vm145, %v138, 0
    %149 = vmatprep.subr.bf16.mxu0 0
    %150 = vmatpush1.bf16.msra.mxu0 %v143
    %151 = vmatprep.subr.bf16.mxu0 0
    %152 = vmatpush1.bf16.msra.mxu0 0
    %153 = vmatprep.subr.bf16.mxu0 0
    %154 = vmatpush1.bf16.msra.mxu0 0
    %155 = vmatprep.subr.bf16.mxu0 0
    %156 = vmatpush1.bf16.msra.mxu0 0
    %157 = vmatprep.subr.bf16.mxu0 0
    %158 = vmatpush1.bf16.msra.mxu0 0
    %159 = vmatprep.subr.bf16.mxu0 0
    %160 = vmatpush1.bf16.msra.mxu0 0
    %161 = vmatprep.subr.bf16.mxu0 0
    %162 = vmatpush1.bf16.msra.mxu0 0
    %163 = vmatprep.subr.bf16.mxu0 0
    %164 = vmatpush1.bf16.msra.mxu0 0
    %165 = vmatprep.subr.bf16.mxu0 0
    %166 = vmatpush1.bf16.msra.mxu0 0
    %167 = vmatprep.subr.bf16.mxu0 0
    %168 = vmatpush1.bf16.msra.mxu0 0
    %169 = vmatprep.subr.bf16.mxu0 0
    %170 = vmatpush1.bf16.msra.mxu0 0
    %171 = vmatprep.subr.bf16.mxu0 0
    %172 = vmatpush1.bf16.msra.mxu0 0
    %173 = vmatprep.subr.bf16.mxu0 0
    %174 = vmatpush1.bf16.msra.mxu0 0
    %175 = vmatprep.subr.bf16.mxu0 0
    %176 = vmatpush1.bf16.msra.mxu0 0
    %177 = vmatprep.subr.bf16.mxu0 0
    %178 = vmatpush1.bf16.msra.mxu0 0
    %179 = vmatprep.subr.bf16.mxu0 0
    %180 = vmatpush1.bf16.msra.mxu0 0
    %181 = vmatprep.mubr.bf16.mxu0 0
    %182 = vmatmul.mubr.bf16.gmra.mrb[0].mxu0 %v147
    %v183 = vpop.f32.mrb[0].mxu0
    %v184 = vadd.f32 %v132, %v183
    %v185 = vpop.f32.mrb[0].mxu0
    %v186 = vpop.f32.mrb[0].mxu0
    %v187 = vadd.f32 %v132, %v186
    %v188 = vpop.f32.mrb[0].mxu0
    %189 = vdwg.mxu0
    %v194 = vunpack.c.l.b16 %v90
    %v195 = vunpack.c.l.b16 %v91
    %v196 = vunpack.c.l.b16 %v92
    %v197 = vunpack.c.l.b16 %v93
    %v198 = vpack.c.b16 %v195, %v194
    %v199 = vpack.c.b16 %v197, %v196
    %vm202 = vcmask 261120
    %v204 = vsel %vm202, 0, 0
    %206 = vmatprep.subr.bf16.mxu0 0
    %207 = vmatpush1.bf16.msra.mxu0 %v198
    %208 = vmatprep.subr.bf16.mxu0 0
    %209 = vmatpush1.bf16.msra.mxu0 %v199
    %210 = vmatprep.subr.bf16.mxu0 0
    %211 = vmatpush1.bf16.msra.mxu0 0
    %212 = vmatprep.subr.bf16.mxu0 0
    %213 = vmatpush1.bf16.msra.mxu0 0
    %214 = vmatprep.subr.bf16.mxu0 0
    %215 = vmatpush1.bf16.msra.mxu0 0
    %216 = vmatprep.subr.bf16.mxu0 0
    %217 = vmatpush1.bf16.msra.mxu0 0
    %218 = vmatprep.subr.bf16.mxu0 0
    %219 = vmatpush1.bf16.msra.mxu0 0
    %220 = vmatprep.subr.bf16.mxu0 0
    %221 = vmatpush1.bf16.msra.mxu0 0
    %222 = vmatprep.subr.bf16.mxu0 0
    %223 = vmatpush1.bf16.msra.mxu0 0
    %224 = vmatprep.subr.bf16.mxu0 0
    %225 = vmatpush1.bf16.msra.mxu0 0
    %226 = vmatprep.subr.bf16.mxu0 0
    %227 = vmatpush1.bf16.msra.mxu0 0
    %228 = vmatprep.subr.bf16.mxu0 0
    %229 = vmatpush1.bf16.msra.mxu0 0
    %230 = vmatprep.subr.bf16.mxu0 0
    %231 = vmatpush1.bf16.msra.mxu0 0
    %232 = vmatprep.subr.bf16.mxu0 0
    %233 = vmatpush1.bf16.msra.mxu0 0
    %234 = vmatprep.subr.bf16.mxu0 0
    %235 = vmatpush1.bf16.msra.mxu0 0
    %236 = vmatprep.subr.bf16.mxu0 0
    %237 = vmatpush1.bf16.msra.mxu0 0
    %238 = vmatprep.mubr.bf16.mxu0 0
    %239 = vmatmul.mubr.bf16.gmra.mrb[0].mxu0 %v204
    %v240 = vpop.f32.mrb[0].mxu0
    %v241 = vadd.f32 0.0, %v240
    %v242 = vpop.f32.mrb[0].mxu0
    %v243 = vpop.f32.mrb[0].mxu0
    %v244 = vpop.f32.mrb[0].mxu0
    %245 = vdwg.mxu0
    %v246 = vadd.f32 %v184, %v241
    %v247 = vxor.u32 %v246, 2147483648
    %v248 = vmul.f32 %v247, 1.442695
    %v249 = vpow.pop %v248
    %v250 = vadd.f32 %v249, 1.0
    %v251 = vrcp.pop %v250
    %v252 = vmul.f32 1.0, %v251
    %v253 = vtanh.pop %v246
    %v254 = vmul.f32 %v252, 0.0
    %256 = vrot.lane.b32.xlu0 %v253, 64
    %v257 = vpop.permute.xlu0 %256
    %v259 = vmul.f32 %v252, %v257
    %261 = vrot.lane.b32.xlu0 %v259, 32
    %v262 = vpop.permute.xlu0 %261
    %v264 = vadd.f32 %v254, %v262
    %v265 = vtanh.pop %v264
    %267 = vrot.lane.b32.xlu0 %v265, 64
    %v268 = vpop.permute.xlu0 %267
    %v270 = vmul.f32 %v252, %v268
    %v271 = vpack.c.bf16 %v270, %v270
    %v273 = vlaneseq
    %v274 = vshrl.u32 %v273, 7
    %v275 = vsub.s32 0, %v274
    %v276 = vrot.slane %v99, %v275
    %279 = vrot.lane.b32.xlu0 %v271, 32
    %v280 = vpop.permute.xlu0 %279
    %v285 = vunpack.c.l.b16 %v86
    %v286 = vunpack.c.l.b16 %v87
    %v287 = vunpack.c.l.b16 %v88
    %v288 = vunpack.c.l.b16 %v89
    %v289 = vpack.c.b16 %v286, %v285
    %v290 = vpack.c.b16 %v288, %v287
    %v294 = vsel %vm202, %v280, 0
    %296 = vmatprep.subr.bf16.mxu0 0
    %297 = vmatpush1.bf16.msra.mxu0 %v289
    %298 = vmatprep.subr.bf16.mxu0 0
    %299 = vmatpush1.bf16.msra.mxu0 %v290
    %300 = vmatprep.subr.bf16.mxu0 0
    %301 = vmatpush1.bf16.msra.mxu0 0
    %302 = vmatprep.subr.bf16.mxu0 0
    %303 = vmatpush1.bf16.msra.mxu0 0
    %304 = vmatprep.subr.bf16.mxu0 0
    %305 = vmatpush1.bf16.msra.mxu0 0
    %306 = vmatprep.subr.bf16.mxu0 0
    %307 = vmatpush1.bf16.msra.mxu0 0
    %308 = vmatprep.subr.bf16.mxu0 0
    %309 = vmatpush1.bf16.msra.mxu0 0
    %310 = vmatprep.subr.bf16.mxu0 0
    %311 = vmatpush1.bf16.msra.mxu0 0
    %312 = vmatprep.subr.bf16.mxu0 0
    %313 = vmatpush1.bf16.msra.mxu0 0
    %314 = vmatprep.subr.bf16.mxu0 0
    %315 = vmatpush1.bf16.msra.mxu0 0
    %316 = vmatprep.subr.bf16.mxu0 0
    %317 = vmatpush1.bf16.msra.mxu0 0
    %318 = vmatprep.subr.bf16.mxu0 0
    %319 = vmatpush1.bf16.msra.mxu0 0
    %320 = vmatprep.subr.bf16.mxu0 0
    %321 = vmatpush1.bf16.msra.mxu0 0
    %322 = vmatprep.subr.bf16.mxu0 0
    %323 = vmatpush1.bf16.msra.mxu0 0
    %324 = vmatprep.subr.bf16.mxu0 0
    %325 = vmatpush1.bf16.msra.mxu0 0
    %326 = vmatprep.subr.bf16.mxu0 0
    %327 = vmatpush1.bf16.msra.mxu0 0
    %328 = vmatprep.mubr.bf16.mxu0 0
    %329 = vmatmul.mubr.bf16.gmra.mrb[0].mxu0 %v294
    %v330 = vpop.f32.mrb[0].mxu0
    %v331 = vadd.f32 %v276, %v330
    %v332 = vpop.f32.mrb[0].mxu0
    %v333 = vpop.f32.mrb[0].mxu0
    %v334 = vpop.f32.mrb[0].mxu0
    %335 = vdwg.mxu0
    %v340 = vunpack.c.l.b16 %v94
    %v341 = vunpack.c.l.b16 %v95
    %v342 = vunpack.c.l.b16 %v96
    %v343 = vunpack.c.l.b16 %v97
    %v344 = vpack.c.b16 %v341, %v340
    %v345 = vpack.c.b16 %v343, %v342
    %348 = vmatprep.subr.bf16.mxu0 0
    %349 = vmatpush1.bf16.msra.mxu0 %v344
    %350 = vmatprep.subr.bf16.mxu0 0
    %351 = vmatpush1.bf16.msra.mxu0 %v345
    %352 = vmatprep.subr.bf16.mxu0 0
    %353 = vmatpush1.bf16.msra.mxu0 0
    %354 = vmatprep.subr.bf16.mxu0 0
    %355 = vmatpush1.bf16.msra.mxu0 0
    %356 = vmatprep.subr.bf16.mxu0 0
    %357 = vmatpush1.bf16.msra.mxu0 0
    %358 = vmatprep.subr.bf16.mxu0 0
    %359 = vmatpush1.bf16.msra.mxu0 0
    %360 = vmatprep.subr.bf16.mxu0 0
    %361 = vmatpush1.bf16.msra.mxu0 0
    %362 = vmatprep.subr.bf16.mxu0 0
    %363 = vmatpush1.bf16.msra.mxu0 0
    %364 = vmatprep.subr.bf16.mxu0 0
    %365 = vmatpush1.bf16.msra.mxu0 0
    %366 = vmatprep.subr.bf16.mxu0 0
    %367 = vmatpush1.bf16.msra.mxu0 0
    %368 = vmatprep.subr.bf16.mxu0 0
    %369 = vmatpush1.bf16.msra.mxu0 0
    %370 = vmatprep.subr.bf16.mxu0 0
    %371 = vmatpush1.bf16.msra.mxu0 0
    %372 = vmatprep.subr.bf16.mxu0 0
    %373 = vmatpush1.bf16.msra.mxu0 0
    %374 = vmatprep.subr.bf16.mxu0 0
    %375 = vmatpush1.bf16.msra.mxu0 0
    %376 = vmatprep.subr.bf16.mxu0 0
    %377 = vmatpush1.bf16.msra.mxu0 0
    %378 = vmatprep.subr.bf16.mxu0 0
    %379 = vmatpush1.bf16.msra.mxu0 0
    %380 = vmatprep.mubr.bf16.mxu0 0
    %381 = vmatmul.mubr.bf16.gmra.mrb[0].mxu0 %v204
    %v382 = vpop.f32.mrb[0].mxu0
    %v383 = vadd.f32 0.0, %v382
    %v384 = vpop.f32.mrb[0].mxu0
    %v385 = vpop.f32.mrb[0].mxu0
    %v386 = vpop.f32.mrb[0].mxu0
    %387 = vdwg.mxu0
    %v388 = vadd.f32 %v331, %v383
    %v389 = vxor.u32 %v388, 2147483648
    %v390 = vmul.f32 %v389, 1.442695
    %v391 = vpow.pop %v390
    %v392 = vadd.f32 %v391, 1.0
    %v393 = vrcp.pop %v392
    %v394 = vmul.f32 1.0, %v393
    %v395 = vtanh.pop %v388
    %v396 = vmul.f32 %v394, 0.0
    %398 = vrot.lane.b32.xlu0 %v395, 64
    %v399 = vpop.permute.xlu0 %398
    %v401 = vmul.f32 %v394, %v399
    %403 = vrot.lane.b32.xlu0 %v401, 32
    %v404 = vpop.permute.xlu0 %403
    %v406 = vadd.f32 %v396, %v404
    %v407 = vtanh.pop %v406
    %409 = vrot.lane.b32.xlu0 %v407, 64
    %v410 = vpop.permute.xlu0 %409
    %v412 = vmul.f32 %v394, %v410
    %v413 = vpack.c.bf16 %v412, %v412
    %v415 = vlaneseq
    %v416 = vshrl.u32 %v415, 7
    %v417 = vsub.s32 0, %v416
    %v418 = vrot.slane %v120, %v417
    %421 = vrot.lane.b32.xlu0 %v413, 32
    %v422 = vpop.permute.xlu0 %421
    %v427 = vunpack.c.l.b16 %v116
    %v428 = vunpack.c.l.b16 %v117
    %v429 = vunpack.c.l.b16 %v118
    %v430 = vunpack.c.l.b16 %v119
    %v431 = vpack.c.b16 %v428, %v427
    %v432 = vpack.c.b16 %v430, %v429
    %v436 = vsel %vm202, %v422, 0
    %438 = vmatprep.subr.bf16.mxu0 0
    %439 = vmatpush1.bf16.msra.mxu0 %v431
    %440 = vmatprep.subr.bf16.mxu0 0
    %441 = vmatpush1.bf16.msra.mxu0 %v432
    %442 = vmatprep.subr.bf16.mxu0 0
    %443 = vmatpush1.bf16.msra.mxu0 0
    %444 = vmatprep.subr.bf16.mxu0 0
    %445 = vmatpush1.bf16.msra.mxu0 0
    %446 = vmatprep.subr.bf16.mxu0 0
    %447 = vmatpush1.bf16.msra.mxu0 0
    %448 = vmatprep.subr.bf16.mxu0 0
    %449 = vmatpush1.bf16.msra.mxu0 0
    %450 = vmatprep.subr.bf16.mxu0 0
    %451 = vmatpush1.bf16.msra.mxu0 0
    %452 = vmatprep.subr.bf16.mxu0 0
    %453 = vmatpush1.bf16.msra.mxu0 0
    %454 = vmatprep.subr.bf16.mxu0 0
    %455 = vmatpush1.bf16.msra.mxu0 0
    %456 = vmatprep.subr.bf16.mxu0 0
    %457 = vmatpush1.bf16.msra.mxu0 0
    %458 = vmatprep.subr.bf16.mxu0 0
    %459 = vmatpush1.bf16.msra.mxu0 0
    %460 = vmatprep.subr.bf16.mxu0 0
    %461 = vmatpush1.bf16.msra.mxu0 0
    %462 = vmatprep.subr.bf16.mxu0 0
    %463 = vmatpush1.bf16.msra.mxu0 0
    %464 = vmatprep.subr.bf16.mxu0 0
    %465 = vmatpush1.bf16.msra.mxu0 0
    %466 = vmatprep.subr.bf16.mxu0 0
    %467 = vmatpush1.bf16.msra.mxu0 0
    %468 = vmatprep.subr.bf16.mxu0 0
    %469 = vmatpush1.bf16.msra.mxu0 0
    %470 = vmatprep.mubr.bf16.mxu0 0
    %471 = vmatmul.mubr.bf16.gmra.mrb[0].mxu0 %v436
    %v472 = vpop.f32.mrb[0].mxu0
    %v473 = vadd.f32 %v418, %v472
    %v474 = vpop.f32.mrb[0].mxu0
    %v475 = vpop.f32.mrb[0].mxu0
    %v476 = vpop.f32.mrb[0].mxu0
    %477 = vdwg.mxu0
    %v478 = vpack.c.bf16 %v473, %v473
    %v480 = vlaneseq
    %v481 = vshrl.u32 %v480, 7
    %v482 = vsub.s32 0, %v481
    %v483 = vrot.slane %v114, %v482
    %v487 = vunpack.c.l.b16 %v100
    %v488 = vunpack.c.l.b16 %v101
    %v489 = vpack.c.b16 %v488, %v487
    %v492 = vsel %vm145, %v478, 0
    %494 = vmatprep.subr.bf16.mxu0 0
    %495 = vmatpush1.bf16.msra.mxu0 %v489
    %496 = vmatprep.subr.bf16.mxu0 0
    %497 = vmatpush1.bf16.msra.mxu0 0
    %498 = vmatprep.subr.bf16.mxu0 0
    %499 = vmatpush1.bf16.msra.mxu0 0
    %500 = vmatprep.subr.bf16.mxu0 0
    %501 = vmatpush1.bf16.msra.mxu0 0
    %502 = vmatprep.subr.bf16.mxu0 0
    %503 = vmatpush1.bf16.msra.mxu0 0
    %504 = vmatprep.subr.bf16.mxu0 0
    %505 = vmatpush1.bf16.msra.mxu0 0
    %506 = vmatprep.subr.bf16.mxu0 0
    %507 = vmatpush1.bf16.msra.mxu0 0
    %508 = vmatprep.subr.bf16.mxu0 0
    %509 = vmatpush1.bf16.msra.mxu0 0
    %510 = vmatprep.subr.bf16.mxu0 0
    %511 = vmatpush1.bf16.msra.mxu0 0
    %512 = vmatprep.subr.bf16.mxu0 0
    %513 = vmatpush1.bf16.msra.mxu0 0
    %514 = vmatprep.subr.bf16.mxu0 0
    %515 = vmatpush1.bf16.msra.mxu0 0
    %516 = vmatprep.subr.bf16.mxu0 0
    %517 = vmatpush1.bf16.msra.mxu0 0
    %518 = vmatprep.subr.bf16.mxu0 0
    %519 = vmatpush1.bf16.msra.mxu0 0
    %520 = vmatprep.subr.bf16.mxu0 0
    %521 = vmatpush1.bf16.msra.mxu0 0
    %522 = vmatprep.subr.bf16.mxu0 0
    %523 = vmatpush1.bf16.msra.mxu0 0
    %524 = vmatprep.subr.bf16.mxu0 0
    %525 = vmatpush1.bf16.msra.mxu0 0
    %526 = vmatprep.mubr.bf16.mxu0 0
    %527 = vmatmul.mubr.bf16.gmra.mrb[0].mxu0 %v492
    %v528 = vpop.f32.mrb[0].mxu0
    %v529 = vadd.f32 %v483, %v528
    %v530 = vpop.f32.mrb[0].mxu0
    %v531 = vpop.f32.mrb[0].mxu0
    %v532 = vpop.f32.mrb[0].mxu0
    %533 = vdwg.mxu0
    %v538 = vunpack.c.l.b16 %v106
    %v539 = vunpack.c.l.b16 %v107
    %v540 = vunpack.c.l.b16 %v108
    %v541 = vunpack.c.l.b16 %v109
    %v542 = vpack.c.b16 %v539, %v538
    %v543 = vpack.c.b16 %v541, %v540
    %546 = vmatprep.subr.bf16.mxu0 0
    %547 = vmatpush1.bf16.msra.mxu0 %v542
    %548 = vmatprep.subr.bf16.mxu0 0
    %549 = vmatpush1.bf16.msra.mxu0 %v543
    %550 = vmatprep.subr.bf16.mxu0 0
    %551 = vmatpush1.bf16.msra.mxu0 0
    %552 = vmatprep.subr.bf16.mxu0 0
    %553 = vmatpush1.bf16.msra.mxu0 0
    %554 = vmatprep.subr.bf16.mxu0 0
    %555 = vmatpush1.bf16.msra.mxu0 0
    %556 = vmatprep.subr.bf16.mxu0 0
    %557 = vmatpush1.bf16.msra.mxu0 0
    %558 = vmatprep.subr.bf16.mxu0 0
    %559 = vmatpush1.bf16.msra.mxu0 0
    %560 = vmatprep.subr.bf16.mxu0 0
    %561 = vmatpush1.bf16.msra.mxu0 0
    %562 = vmatprep.subr.bf16.mxu0 0
    %563 = vmatpush1.bf16.msra.mxu0 0
    %564 = vmatprep.subr.bf16.mxu0 0
    %565 = vmatpush1.bf16.msra.mxu0 0
    %566 = vmatprep.subr.bf16.mxu0 0
    %567 = vmatpush1.bf16.msra.mxu0 0
    %568 = vmatprep.subr.bf16.mxu0 0
    %569 = vmatpush1.bf16.msra.mxu0 0
    %570 = vmatprep.subr.bf16.mxu0 0
    %571 = vmatpush1.bf16.msra.mxu0 0
    %572 = vmatprep.subr.bf16.mxu0 0
    %573 = vmatpush1.bf16.msra.mxu0 0
    %574 = vmatprep.subr.bf16.mxu0 0
    %575 = vmatpush1.bf16.msra.mxu0 0
    %576 = vmatprep.subr.bf16.mxu0 0
    %577 = vmatpush1.bf16.msra.mxu0 0
    %578 = vmatprep.mubr.bf16.mxu0 0
    %579 = vmatmul.mubr.bf16.gmra.mrb[0].mxu0 %v204
    %v580 = vpop.f32.mrb[0].mxu0
    %v581 = vadd.f32 0.0, %v580
    %v582 = vpop.f32.mrb[0].mxu0
    %v583 = vpop.f32.mrb[0].mxu0
    %v584 = vpop.f32.mrb[0].mxu0
    %585 = vdwg.mxu0
    %v586 = vadd.f32 %v529, %v581
    %v587 = vxor.u32 %v586, 2147483648
    %v588 = vmul.f32 %v587, 1.442695
    %v589 = vpow.pop %v588
    %v590 = vadd.f32 %v589, 1.0
    %v591 = vrcp.pop %v590
    %v592 = vmul.f32 1.0, %v591
    %v593 = vtanh.pop %v586
    %v594 = vmul.f32 %v592, 0.0
    %596 = vrot.lane.b32.xlu0 %v593, 64
    %v597 = vpop.permute.xlu0 %596
    %v599 = vmul.f32 %v592, %v597
    %601 = vrot.lane.b32.xlu0 %v599, 32
    %v602 = vpop.permute.xlu0 %601
    %v604 = vadd.f32 %v594, %v602
    %v605 = vtanh.pop %v604
    %607 = vrot.lane.b32.xlu0 %v605, 64
    %v608 = vpop.permute.xlu0 %607
    %v610 = vmul.f32 %v592, %v608
    %v611 = vpack.c.bf16 %v610, %v610
    %v613 = vlaneseq
    %v614 = vshrl.u32 %v613, 7
    %v615 = vsub.s32 0, %v614
    %v616 = vrot.slane %v115, %v615
    %619 = vrot.lane.b32.xlu0 %v611, 32
    %v620 = vpop.permute.xlu0 %619
    %v625 = vunpack.c.l.b16 %v102
    %v626 = vunpack.c.l.b16 %v103
    %v627 = vunpack.c.l.b16 %v104
    %v628 = vunpack.c.l.b16 %v105
    %v629 = vpack.c.b16 %v626, %v625
    %v630 = vpack.c.b16 %v628, %v627
    %v634 = vsel %vm202, %v620, 0
    %636 = vmatprep.subr.bf16.mxu0 0
    %637 = vmatpush1.bf16.msra.mxu0 %v629
    %638 = vmatprep.subr.bf16.mxu0 0
    %639 = vmatpush1.bf16.msra.mxu0 %v630
    %640 = vmatprep.subr.bf16.mxu0 0
    %641 = vmatpush1.bf16.msra.mxu0 0
    %642 = vmatprep.subr.bf16.mxu0 0
    %643 = vmatpush1.bf16.msra.mxu0 0
    %644 = vmatprep.subr.bf16.mxu0 0
    %645 = vmatpush1.bf16.msra.mxu0 0
    %646 = vmatprep.subr.bf16.mxu0 0
    %647 = vmatpush1.bf16.msra.mxu0 0
    %648 = vmatprep.subr.bf16.mxu0 0
    %649 = vmatpush1.bf16.msra.mxu0 0
    %650 = vmatprep.subr.bf16.mxu0 0
    %651 = vmatpush1.bf16.msra.mxu0 0
    %652 = vmatprep.subr.bf16.mxu0 0
    %653 = vmatpush1.bf16.msra.mxu0 0
    %654 = vmatprep.subr.bf16.mxu0 0
    %655 = vmatpush1.bf16.msra.mxu0 0
    %656 = vmatprep.subr.bf16.mxu0 0
    %657 = vmatpush1.bf16.msra.mxu0 0
    %658 = vmatprep.subr.bf16.mxu0 0
    %659 = vmatpush1.bf16.msra.mxu0 0
    %660 = vmatprep.subr.bf16.mxu0 0
    %661 = vmatpush1.bf16.msra.mxu0 0
    %662 = vmatprep.subr.bf16.mxu0 0
    %663 = vmatpush1.bf16.msra.mxu0 0
    %664 = vmatprep.subr.bf16.mxu0 0
    %665 = vmatpush1.bf16.msra.mxu0 0
    %666 = vmatprep.subr.bf16.mxu0 0
    %667 = vmatpush1.bf16.msra.mxu0 0
    %668 = vmatprep.mubr.bf16.mxu0 0
    %669 = vmatmul.mubr.bf16.gmra.mrb[0].mxu0 %v634
    %v670 = vpop.f32.mrb[0].mxu0
    %v671 = vadd.f32 %v616, %v670
    %v672 = vpop.f32.mrb[0].mxu0
    %v673 = vpop.f32.mrb[0].mxu0
    %v674 = vpop.f32.mrb[0].mxu0
    %675 = vdwg.mxu0
    %v680 = vunpack.c.l.b16 %v110
    %v681 = vunpack.c.l.b16 %v111
    %v682 = vunpack.c.l.b16 %v112
    %v683 = vunpack.c.l.b16 %v113
    %v684 = vpack.c.b16 %v681, %v680
    %v685 = vpack.c.b16 %v683, %v682
    %688 = vmatprep.subr.bf16.mxu0 0
    %689 = vmatpush1.bf16.msra.mxu0 %v684
    %690 = vmatprep.subr.bf16.mxu0 0
    %691 = vmatpush1.bf16.msra.mxu0 %v685
    %692 = vmatprep.subr.bf16.mxu0 0
    %693 = vmatpush1.bf16.msra.mxu0 0
    %694 = vmatprep.subr.bf16.mxu0 0
    %695 = vmatpush1.bf16.msra.mxu0 0
    %696 = vmatprep.subr.bf16.mxu0 0
    %697 = vmatpush1.bf16.msra.mxu0 0
    %698 = vmatprep.subr.bf16.mxu0 0
    %699 = vmatpush1.bf16.msra.mxu0 0
    %700 = vmatprep.subr.bf16.mxu0 0
    %701 = vmatpush1.bf16.msra.mxu0 0
    %702 = vmatprep.subr.bf16.mxu0 0
    %703 = vmatpush1.bf16.msra.mxu0 0
    %704 = vmatprep.subr.bf16.mxu0 0
    %705 = vmatpush1.bf16.msra.mxu0 0
    %706 = vmatprep.subr.bf16.mxu0 0
    %707 = vmatpush1.bf16.msra.mxu0 0
    %708 = vmatprep.subr.bf16.mxu0 0
    %709 = vmatpush1.bf16.msra.mxu0 0
    %710 = vmatprep.subr.bf16.mxu0 0
    %711 = vmatpush1.bf16.msra.mxu0 0
    %712 = vmatprep.subr.bf16.mxu0 0
    %713 = vmatpush1.bf16.msra.mxu0 0
    %714 = vmatprep.subr.bf16.mxu0 0
    %715 = vmatpush1.bf16.msra.mxu0 0
    %716 = vmatprep.subr.bf16.mxu0 0
    %717 = vmatpush1.bf16.msra.mxu0 0
    %718 = vmatprep.subr.bf16.mxu0 0
    %719 = vmatpush1.bf16.msra.mxu0 0
    %720 = vmatprep.mubr.bf16.mxu0 0
    %721 = vmatmul.mubr.bf16.gmra.mrb[0].mxu0 %v204
    %v722 = vpop.f32.mrb[0].mxu0
    %v723 = vadd.f32 0.0, %v722
    %v724 = vpop.f32.mrb[0].mxu0
    %v725 = vpop.f32.mrb[0].mxu0
    %v726 = vpop.f32.mrb[0].mxu0
    %727 = vdwg.mxu0
    %v728 = vadd.f32 %v671, %v723
    %v729 = vxor.u32 %v728, 2147483648
    %v730 = vmul.f32 %v729, 1.442695
    %v731 = vpow.pop %v730
    %v732 = vadd.f32 %v731, 1.0
    %v733 = vrcp.pop %v732
    %v734 = vmul.f32 1.0, %v733
    %v735 = vtanh.pop %v728
    %v736 = vmul.f32 %v734, 0.0
    %738 = vrot.lane.b32.xlu0 %v735, 64
    %v739 = vpop.permute.xlu0 %738
    %v741 = vmul.f32 %v734, %v739
    %743 = vrot.lane.b32.xlu0 %v741, 32
    %v744 = vpop.permute.xlu0 %743
    %v746 = vadd.f32 %v736, %v744
    %v747 = vtanh.pop %v746
    %749 = vrot.lane.b32.xlu0 %v747, 64
    %v750 = vpop.permute.xlu0 %749
    %v752 = vmul.f32 %v734, %v750
    %753 = vmatprep.subr.bf16.mxu0 0
    %754 = vmatpush1.bf16.msra.mxu0 %v198
    %755 = vmatprep.subr.bf16.mxu0 0
    %756 = vmatpush1.bf16.msra.mxu0 %v199
    %757 = vmatprep.subr.bf16.mxu0 0
    %758 = vmatpush1.bf16.msra.mxu0 0
    %759 = vmatprep.subr.bf16.mxu0 0
    %760 = vmatpush1.bf16.msra.mxu0 0
    %761 = vmatprep.subr.bf16.mxu0 0
    %762 = vmatpush1.bf16.msra.mxu0 0
    %763 = vmatprep.subr.bf16.mxu0 0
    %764 = vmatpush1.bf16.msra.mxu0 0
    %765 = vmatprep.subr.bf16.mxu0 0
    %766 = vmatpush1.bf16.msra.mxu0 0
    %767 = vmatprep.subr.bf16.mxu0 0
    %768 = vmatpush1.bf16.msra.mxu0 0
    %769 = vmatprep.subr.bf16.mxu0 0
    %770 = vmatpush1.bf16.msra.mxu0 0
    %771 = vmatprep.subr.bf16.mxu0 0
    %772 = vmatpush1.bf16.msra.mxu0 0
    %773 = vmatprep.subr.bf16.mxu0 0
    %774 = vmatpush1.bf16.msra.mxu0 0
    %775 = vmatprep.subr.bf16.mxu0 0
    %776 = vmatpush1.bf16.msra.mxu0 0
    %777 = vmatprep.subr.bf16.mxu0 0
    %778 = vmatpush1.bf16.msra.mxu0 0
    %779 = vmatprep.subr.bf16.mxu0 0
    %780 = vmatpush1.bf16.msra.mxu0 0
    %781 = vmatprep.subr.bf16.mxu0 0
    %782 = vmatpush1.bf16.msra.mxu0 0
    %783 = vmatprep.subr.bf16.mxu0 0
    %784 = vmatpush1.bf16.msra.mxu0 0
    %785 = vmatprep.mubr.bf16.mxu0 0
    %786 = vmatmul.mubr.bf16.gmra.mrb[0].mxu0 %v294
    %v787 = vpop.f32.mrb[0].mxu0
    %v788 = vadd.f32 0.0, %v787
    %v789 = vpop.f32.mrb[0].mxu0
    %v790 = vpop.f32.mrb[0].mxu0
    %v791 = vpop.f32.mrb[0].mxu0
    %792 = vdwg.mxu0
    %v794 = vrot.slane %v788, 6
    %v796 = vadd.f32 %v184, %v794
    %v797 = vxor.u32 %v796, 2147483648
    %v798 = vmul.f32 %v797, 1.442695
    %v799 = vpow.pop %v798
    %v800 = vadd.f32 %v799, 1.0
    %v801 = vrcp.pop %v800
    %v802 = vmul.f32 1.0, %v801
    %v803 = vtanh.pop %v796
    %v805 = vrot.slane %v264, 6
    %v807 = vmul.f32 %v802, %v805
    %809 = vrot.lane.b32.xlu0 %v803, 64
    %v810 = vpop.permute.xlu0 %809
    %v812 = vmul.f32 %v802, %v810
    %814 = vrot.lane.b32.xlu0 %v812, 32
    %v815 = vpop.permute.xlu0 %814
    %v817 = vadd.f32 %v807, %v815
    %v818 = vtanh.pop %v817
    %820 = vrot.lane.b32.xlu0 %v818, 64
    %v821 = vpop.permute.xlu0 %820
    %v823 = vmul.f32 %v802, %v821
    %v824 = vpack.c.bf16 %v823, %v823
    %v826 = vrot.slane %v824, 1
    %827 = vrot.lane.b32.xlu0 %v826, 32
    %v828 = vpop.permute.xlu0 %827
    %v830 = vsel %vm202, %v828, 0
    %832 = vmatprep.subr.bf16.mxu0 0
    %833 = vmatpush1.bf16.msra.mxu0 %v289
    %834 = vmatprep.subr.bf16.mxu0 0
    %835 = vmatpush1.bf16.msra.mxu0 %v290
    %836 = vmatprep.subr.bf16.mxu0 0
    %837 = vmatpush1.bf16.msra.mxu0 0
    %838 = vmatprep.subr.bf16.mxu0 0
    %839 = vmatpush1.bf16.msra.mxu0 0
    %840 = vmatprep.subr.bf16.mxu0 0
    %841 = vmatpush1.bf16.msra.mxu0 0
    %842 = vmatprep.subr.bf16.mxu0 0
    %843 = vmatpush1.bf16.msra.mxu0 0
    %844 = vmatprep.subr.bf16.mxu0 0
    %845 = vmatpush1.bf16.msra.mxu0 0
    %846 = vmatprep.subr.bf16.mxu0 0
    %847 = vmatpush1.bf16.msra.mxu0 0
    %848 = vmatprep.subr.bf16.mxu0 0
    %849 = vmatpush1.bf16.msra.mxu0 0
    %850 = vmatprep.subr.bf16.mxu0 0
    %851 = vmatpush1.bf16.msra.mxu0 0
    %852 = vmatprep.subr.bf16.mxu0 0
    %853 = vmatpush1.bf16.msra.mxu0 0
    %854 = vmatprep.subr.bf16.mxu0 0
    %855 = vmatpush1.bf16.msra.mxu0 0
    %856 = vmatprep.subr.bf16.mxu0 0
    %857 = vmatpush1.bf16.msra.mxu0 0
    %858 = vmatprep.subr.bf16.mxu0 0
    %859 = vmatpush1.bf16.msra.mxu0 0
    %860 = vmatprep.subr.bf16.mxu0 0
    %861 = vmatpush1.bf16.msra.mxu0 0
    %862 = vmatprep.subr.bf16.mxu0 0
    %863 = vmatpush1.bf16.msra.mxu0 0
    %864 = vmatprep.mubr.bf16.mxu0 0
    %865 = vmatmul.mubr.bf16.gmra.mrb[0].mxu0 %v830
    %v866 = vpop.f32.mrb[0].mxu0
    %v867 = vadd.f32 %v276, %v866
    %v868 = vpop.f32.mrb[0].mxu0
    %v869 = vpop.f32.mrb[0].mxu0
    %v870 = vpop.f32.mrb[0].mxu0
    %871 = vdwg.mxu0
    %872 = vmatprep.subr.bf16.mxu0 0
    %873 = vmatpush1.bf16.msra.mxu0 %v344
    %874 = vmatprep.subr.bf16.mxu0 0
    %875 = vmatpush1.bf16.msra.mxu0 %v345
    %876 = vmatprep.subr.bf16.mxu0 0
    %877 = vmatpush1.bf16.msra.mxu0 0
    %878 = vmatprep.subr.bf16.mxu0 0
    %879 = vmatpush1.bf16.msra.mxu0 0
    %880 = vmatprep.subr.bf16.mxu0 0
    %881 = vmatpush1.bf16.msra.mxu0 0
    %882 = vmatprep.subr.bf16.mxu0 0
    %883 = vmatpush1.bf16.msra.mxu0 0
    %884 = vmatprep.subr.bf16.mxu0 0
    %885 = vmatpush1.bf16.msra.mxu0 0
    %886 = vmatprep.subr.bf16.mxu0 0
    %887 = vmatpush1.bf16.msra.mxu0 0
    %888 = vmatprep.subr.bf16.mxu0 0
    %889 = vmatpush1.bf16.msra.mxu0 0
    %890 = vmatprep.subr.bf16.mxu0 0
    %891 = vmatpush1.bf16.msra.mxu0 0
    %892 = vmatprep.subr.bf16.mxu0 0
    %893 = vmatpush1.bf16.msra.mxu0 0
    %894 = vmatprep.subr.bf16.mxu0 0
    %895 = vmatpush1.bf16.msra.mxu0 0
    %896 = vmatprep.subr.bf16.mxu0 0
    %897 = vmatpush1.bf16.msra.mxu0 0
    %898 = vmatprep.subr.bf16.mxu0 0
    %899 = vmatpush1.bf16.msra.mxu0 0
    %900 = vmatprep.subr.bf16.mxu0 0
    %901 = vmatpush1.bf16.msra.mxu0 0
    %902 = vmatprep.subr.bf16.mxu0 0
    %903 = vmatpush1.bf16.msra.mxu0 0
    %904 = vmatprep.mubr.bf16.mxu0 0
    %905 = vmatmul.mubr.bf16.gmra.mrb[0].mxu0 %v436
    %v906 = vpop.f32.mrb[0].mxu0
    %v907 = vadd.f32 0.0, %v906
    %v908 = vpop.f32.mrb[0].mxu0
    %v909 = vpop.f32.mrb[0].mxu0
    %v910 = vpop.f32.mrb[0].mxu0
    %911 = vdwg.mxu0
    %v912 = vadd.f32 %v867, %v907
    %v913 = vxor.u32 %v912, 2147483648
    %v914 = vmul.f32 %v913, 1.442695
    %v915 = vpow.pop %v914
    %v916 = vadd.f32 %v915, 1.0
    %v917 = vrcp.pop %v916
    %v918 = vmul.f32 1.0, %v917
    %v919 = vtanh.pop %v912
    %v920 = vmul.f32 %v918, %v406
    %922 = vrot.lane.b32.xlu0 %v919, 64
    %v923 = vpop.permute.xlu0 %922
    %v925 = vmul.f32 %v918, %v923
    %927 = vrot.lane.b32.xlu0 %v925, 32
    %v928 = vpop.permute.xlu0 %927
    %v930 = vadd.f32 %v920, %v928
    %v931 = vtanh.pop %v930
    %933 = vrot.lane.b32.xlu0 %v931, 64
    %v934 = vpop.permute.xlu0 %933
    %v936 = vmul.f32 %v918, %v934
    %v937 = vpack.c.bf16 %v936, %v936
    %939 = vrot.lane.b32.xlu0 %v937, 32
    %v940 = vpop.permute.xlu0 %939
    %v942 = vsel %vm202, %v940, 0
    %944 = vmatprep.subr.bf16.mxu0 0
    %945 = vmatpush1.bf16.msra.mxu0 %v431
    %946 = vmatprep.subr.bf16.mxu0 0
    %947 = vmatpush1.bf16.msra.mxu0 %v432
    %948 = vmatprep.subr.bf16.mxu0 0
    %949 = vmatpush1.bf16.msra.mxu0 0
    %950 = vmatprep.subr.bf16.mxu0 0
    %951 = vmatpush1.bf16.msra.mxu0 0
    %952 = vmatprep.subr.bf16.mxu0 0
    %953 = vmatpush1.bf16.msra.mxu0 0
    %954 = vmatprep.subr.bf16.mxu0 0
    %955 = vmatpush1.bf16.msra.mxu0 0
    %956 = vmatprep.subr.bf16.mxu0 0
    %957 = vmatpush1.bf16.msra.mxu0 0
    %958 = vmatprep.subr.bf16.mxu0 0
    %959 = vmatpush1.bf16.msra.mxu0 0
    %960 = vmatprep.subr.bf16.mxu0 0
    %961 = vmatpush1.bf16.msra.mxu0 0
    %962 = vmatprep.subr.bf16.mxu0 0
    %963 = vmatpush1.bf16.msra.mxu0 0
    %964 = vmatprep.subr.bf16.mxu0 0
    %965 = vmatpush1.bf16.msra.mxu0 0
    %966 = vmatprep.subr.bf16.mxu0 0
    %967 = vmatpush1.bf16.msra.mxu0 0
    %968 = vmatprep.subr.bf16.mxu0 0
    %969 = vmatpush1.bf16.msra.mxu0 0
    %970 = vmatprep.subr.bf16.mxu0 0
    %971 = vmatpush1.bf16.msra.mxu0 0
    %972 = vmatprep.subr.bf16.mxu0 0
    %973 = vmatpush1.bf16.msra.mxu0 0
    %974 = vmatprep.subr.bf16.mxu0 0
    %975 = vmatpush1.bf16.msra.mxu0 0
    %976 = vmatprep.mubr.bf16.mxu0 0
    %977 = vmatmul.mubr.bf16.gmra.mrb[0].mxu0 %v942
    %v978 = vpop.f32.mrb[0].mxu0
    %v979 = vadd.f32 %v418, %v978
    %v980 = vpop.f32.mrb[0].mxu0
    %v981 = vpop.f32.mrb[0].mxu0
    %v982 = vpop.f32.mrb[0].mxu0
    %983 = vdwg.mxu0
    %v984 = vpack.c.bf16 %v979, %v979
    %v986 = vsel %vm145, %v984, 0
    %988 = vmatprep.subr.bf16.mxu0 0
    %989 = vmatpush1.bf16.msra.mxu0 %v489
    %990 = vmatprep.subr.bf16.mxu0 0
    %991 = vmatpush1.bf16.msra.mxu0 0
    %992 = vmatprep.subr.bf16.mxu0 0
    %993 = vmatpush1.bf16.msra.mxu0 0
    %994 = vmatprep.subr.bf16.mxu0 0
    %995 = vmatpush1.bf16.msra.mxu0 0
    %996 = vmatprep.subr.bf16.mxu0 0
    %997 = vmatpush1.bf16.msra.mxu0 0
    %998 = vmatprep.subr.bf16.mxu0 0
    %999 = vmatpush1.bf16.msra.mxu0 0
    %1000 = vmatprep.subr.bf16.mxu0 0
    %1001 = vmatpush1.bf16.msra.mxu0 0
    %1002 = vmatprep.subr.bf16.mxu0 0
    %1003 = vmatpush1.bf16.msra.mxu0 0
    %1004 = vmatprep.subr.bf16.mxu0 0
    %1005 = vmatpush1.bf16.msra.mxu0 0
    %1006 = vmatprep.subr.bf16.mxu0 0
    %1007 = vmatpush1.bf16.msra.mxu0 0
    %1008 = vmatprep.subr.bf16.mxu0 0
    %1009 = vmatpush1.bf16.msra.mxu0 0
    %1010 = vmatprep.subr.bf16.mxu0 0
    %1011 = vmatpush1.bf16.msra.mxu0 0
    %1012 = vmatprep.subr.bf16.mxu0 0
    %1013 = vmatpush1.bf16.msra.mxu0 0
    %1014 = vmatprep.subr.bf16.mxu0 0
    %1015 = vmatpush1.bf16.msra.mxu0 0
    %1016 = vmatprep.subr.bf16.mxu0 0
    %1017 = vmatpush1.bf16.msra.mxu0 0
    %1018 = vmatprep.subr.bf16.mxu0 0
    %1019 = vmatpush1.bf16.msra.mxu0 0
    %1020 = vmatprep.mubr.bf16.mxu0 0
    %1021 = vmatmul.mubr.bf16.gmra.mrb[0].mxu0 %v986
    %v1022 = vpop.f32.mrb[0].mxu0
    %v1023 = vadd.f32 %v483, %v1022
    %v1024 = vpop.f32.mrb[0].mxu0
    %v1025 = vpop.f32.mrb[0].mxu0
    %v1026 = vpop.f32.mrb[0].mxu0
    %1027 = vdwg.mxu0
    %1028 = vmatprep.subr.bf16.mxu0 0
    %1029 = vmatpush1.bf16.msra.mxu0 %v542
    %1030 = vmatprep.subr.bf16.mxu0 0
    %1031 = vmatpush1.bf16.msra.mxu0 %v543
    %1032 = vmatprep.subr.bf16.mxu0 0
    %1033 = vmatpush1.bf16.msra.mxu0 0
    %1034 = vmatprep.subr.bf16.mxu0 0
    %1035 = vmatpush1.bf16.msra.mxu0 0
    %1036 = vmatprep.subr.bf16.mxu0 0
    %1037 = vmatpush1.bf16.msra.mxu0 0
    %1038 = vmatprep.subr.bf16.mxu0 0
    %1039 = vmatpush1.bf16.msra.mxu0 0
    %1040 = vmatprep.subr.bf16.mxu0 0
    %1041 = vmatpush1.bf16.msra.mxu0 0
    %1042 = vmatprep.subr.bf16.mxu0 0
    %1043 = vmatpush1.bf16.msra.mxu0 0
    %1044 = vmatprep.subr.bf16.mxu0 0
    %1045 = vmatpush1.bf16.msra.mxu0 0
    %1046 = vmatprep.subr.bf16.mxu0 0
    %1047 = vmatpush1.bf16.msra.mxu0 0
    %1048 = vmatprep.subr.bf16.mxu0 0
    %1049 = vmatpush1.bf16.msra.mxu0 0
    %1050 = vmatprep.subr.bf16.mxu0 0
    %1051 = vmatpush1.bf16.msra.mxu0 0
    %1052 = vmatprep.subr.bf16.mxu0 0
    %1053 = vmatpush1.bf16.msra.mxu0 0
    %1054 = vmatprep.subr.bf16.mxu0 0
    %1055 = vmatpush1.bf16.msra.mxu0 0
    %1056 = vmatprep.subr.bf16.mxu0 0
    %1057 = vmatpush1.bf16.msra.mxu0 0
    %1058 = vmatprep.subr.bf16.mxu0 0
    %1059 = vmatpush1.bf16.msra.mxu0 0
    %1060 = vmatprep.mubr.bf16.mxu0 0
    %1061 = vmatmul.mubr.bf16.gmra.mrb[0].mxu0 %v634
    %v1062 = vpop.f32.mrb[0].mxu0
    %v1063 = vadd.f32 0.0, %v1062
    %v1064 = vpop.f32.mrb[0].mxu0
    %v1065 = vpop.f32.mrb[0].mxu0
    %v1066 = vpop.f32.mrb[0].mxu0
    %1067 = vdwg.mxu0
    %v1068 = vadd.f32 %v1023, %v1063
    %v1069 = vxor.u32 %v1068, 2147483648
    %v1070 = vmul.f32 %v1069, 1.442695
    %v1071 = vpow.pop %v1070
    %v1072 = vadd.f32 %v1071, 1.0
    %v1073 = vrcp.pop %v1072
    %v1074 = vmul.f32 1.0, %v1073
    %v1075 = vtanh.pop %v1068
    %v1076 = vmul.f32 %v1074, %v604
    %1078 = vrot.lane.b32.xlu0 %v1075, 64
    %v1079 = vpop.permute.xlu0 %1078
    %v1081 = vmul.f32 %v1074, %v1079
    %1083 = vrot.lane.b32.xlu0 %v1081, 32
    %v1084 = vpop.permute.xlu0 %1083
    %v1086 = vadd.f32 %v1076, %v1084
    %v1087 = vtanh.pop %v1086
    %1089 = vrot.lane.b32.xlu0 %v1087, 64
    %v1090 = vpop.permute.xlu0 %1089
    %v1092 = vmul.f32 %v1074, %v1090
    %v1093 = vpack.c.bf16 %v1092, %v1092
    %1095 = vrot.lane.b32.xlu0 %v1093, 32
    %v1096 = vpop.permute.xlu0 %1095
    %v1098 = vsel %vm202, %v1096, 0
    %1100 = vmatprep.subr.bf16.mxu0 0
    %1101 = vmatpush1.bf16.msra.mxu0 %v629
    %1102 = vmatprep.subr.bf16.mxu0 0
    %1103 = vmatpush1.bf16.msra.mxu0 %v630
    %1104 = vmatprep.subr.bf16.mxu0 0
    %1105 = vmatpush1.bf16.msra.mxu0 0
    %1106 = vmatprep.subr.bf16.mxu0 0
    %1107 = vmatpush1.bf16.msra.mxu0 0
    %1108 = vmatprep.subr.bf16.mxu0 0
    %1109 = vmatpush1.bf16.msra.mxu0 0
    %1110 = vmatprep.subr.bf16.mxu0 0
    %1111 = vmatpush1.bf16.msra.mxu0 0
    %1112 = vmatprep.subr.bf16.mxu0 0
    %1113 = vmatpush1.bf16.msra.mxu0 0
    %1114 = vmatprep.subr.bf16.mxu0 0
    %1115 = vmatpush1.bf16.msra.mxu0 0
    %1116 = vmatprep.subr.bf16.mxu0 0
    %1117 = vmatpush1.bf16.msra.mxu0 0
    %1118 = vmatprep.subr.bf16.mxu0 0
    %1119 = vmatpush1.bf16.msra.mxu0 0
    %1120 = vmatprep.subr.bf16.mxu0 0
    %1121 = vmatpush1.bf16.msra.mxu0 0
    %1122 = vmatprep.subr.bf16.mxu0 0
    %1123 = vmatpush1.bf16.msra.mxu0 0
    %1124 = vmatprep.subr.bf16.mxu0 0
    %1125 = vmatpush1.bf16.msra.mxu0 0
    %1126 = vmatprep.subr.bf16.mxu0 0
    %1127 = vmatpush1.bf16.msra.mxu0 0
    %1128 = vmatprep.subr.bf16.mxu0 0
    %1129 = vmatpush1.bf16.msra.mxu0 0
    %1130 = vmatprep.subr.bf16.mxu0 0
    %1131 = vmatpush1.bf16.msra.mxu0 0
    %1132 = vmatprep.mubr.bf16.mxu0 0
    %1133 = vmatmul.mubr.bf16.gmra.mrb[0].mxu0 %v1098
    %v1134 = vpop.f32.mrb[0].mxu0
    %v1135 = vadd.f32 %v616, %v1134
    %v1136 = vpop.f32.mrb[0].mxu0
    %v1137 = vpop.f32.mrb[0].mxu0
    %v1138 = vpop.f32.mrb[0].mxu0
    %1139 = vdwg.mxu0
    %v1140 = vpack.c.bf16 %v752, %v752
    %1142 = vrot.lane.b32.xlu0 %v1140, 32
    %v1143 = vpop.permute.xlu0 %1142
    %v1145 = vsel %vm202, %v1143, 0
    %1147 = vmatprep.subr.bf16.mxu0 0
    %1148 = vmatpush1.bf16.msra.mxu0 %v684
    %1149 = vmatprep.subr.bf16.mxu0 0
    %1150 = vmatpush1.bf16.msra.mxu0 %v685
    %1151 = vmatprep.subr.bf16.mxu0 0
    %1152 = vmatpush1.bf16.msra.mxu0 0
    %1153 = vmatprep.subr.bf16.mxu0 0
    %1154 = vmatpush1.bf16.msra.mxu0 0
    %1155 = vmatprep.subr.bf16.mxu0 0
    %1156 = vmatpush1.bf16.msra.mxu0 0
    %1157 = vmatprep.subr.bf16.mxu0 0
    %1158 = vmatpush1.bf16.msra.mxu0 0
    %1159 = vmatprep.subr.bf16.mxu0 0
    %1160 = vmatpush1.bf16.msra.mxu0 0
    %1161 = vmatprep.subr.bf16.mxu0 0
    %1162 = vmatpush1.bf16.msra.mxu0 0
    %1163 = vmatprep.subr.bf16.mxu0 0
    %1164 = vmatpush1.bf16.msra.mxu0 0
    %1165 = vmatprep.subr.bf16.mxu0 0
    %1166 = vmatpush1.bf16.msra.mxu0 0
    %1167 = vmatprep.subr.bf16.mxu0 0
    %1168 = vmatpush1.bf16.msra.mxu0 0
    %1169 = vmatprep.subr.bf16.mxu0 0
    %1170 = vmatpush1.bf16.msra.mxu0 0
    %1171 = vmatprep.subr.bf16.mxu0 0
    %1172 = vmatpush1.bf16.msra.mxu0 0
    %1173 = vmatprep.subr.bf16.mxu0 0
    %1174 = vmatpush1.bf16.msra.mxu0 0
    %1175 = vmatprep.subr.bf16.mxu0 0
    %1176 = vmatpush1.bf16.msra.mxu0 0
    %1177 = vmatprep.subr.bf16.mxu0 0
    %1178 = vmatpush1.bf16.msra.mxu0 0
    %1179 = vmatprep.mubr.bf16.mxu0 0
    %1180 = vmatmul.mubr.bf16.gmra.mrb[0].mxu0 %v1145
    %v1181 = vpop.f32.mrb[0].mxu0
    %v1182 = vadd.f32 0.0, %v1181
    %v1183 = vpop.f32.mrb[0].mxu0
    %v1184 = vpop.f32.mrb[0].mxu0
    %v1185 = vpop.f32.mrb[0].mxu0
    %1186 = vdwg.mxu0
    %v1187 = vadd.f32 %v1135, %v1182
    %v1188 = vxor.u32 %v1187, 2147483648
    %v1189 = vmul.f32 %v1188, 1.442695
    %v1190 = vpow.pop %v1189
    %v1191 = vadd.f32 %v1190, 1.0
    %v1192 = vrcp.pop %v1191
    %v1193 = vmul.f32 1.0, %v1192
    %v1194 = vtanh.pop %v1187
    %v1195 = vmul.f32 %v1193, %v746
    %1197 = vrot.lane.b32.xlu0 %v1194, 64
    %v1198 = vpop.permute.xlu0 %1197
    %v1200 = vmul.f32 %v1193, %v1198
    %1202 = vrot.lane.b32.xlu0 %v1200, 32
    %v1203 = vpop.permute.xlu0 %1202
    %v1205 = vadd.f32 %v1195, %v1203
    %v1206 = vtanh.pop %v1205
    %1208 = vrot.lane.b32.xlu0 %v1206, 64
    %v1209 = vpop.permute.xlu0 %1208
    %v1211 = vmul.f32 %v1193, %v1209
    %1212 = vmatprep.subr.bf16.mxu0 0
    %1213 = vmatpush1.bf16.msra.mxu0 %v198
    %1214 = vmatprep.subr.bf16.mxu0 0
    %1215 = vmatpush1.bf16.msra.mxu0 %v199
    %1216 = vmatprep.subr.bf16.mxu0 0
    %1217 = vmatpush1.bf16.msra.mxu0 0
    %1218 = vmatprep.subr.bf16.mxu0 0
    %1219 = vmatpush1.bf16.msra.mxu0 0
    %1220 = vmatprep.subr.bf16.mxu0 0
    %1221 = vmatpush1.bf16.msra.mxu0 0
    %1222 = vmatprep.subr.bf16.mxu0 0
    %1223 = vmatpush1.bf16.msra.mxu0 0
    %1224 = vmatprep.subr.bf16.mxu0 0
    %1225 = vmatpush1.bf16.msra.mxu0 0
    %1226 = vmatprep.subr.bf16.mxu0 0
    %1227 = vmatpush1.bf16.msra.mxu0 0
    %1228 = vmatprep.subr.bf16.mxu0 0
    %1229 = vmatpush1.bf16.msra.mxu0 0
    %1230 = vmatprep.subr.bf16.mxu0 0
    %1231 = vmatpush1.bf16.msra.mxu0 0
    %1232 = vmatprep.subr.bf16.mxu0 0
    %1233 = vmatpush1.bf16.msra.mxu0 0
    %1234 = vmatprep.subr.bf16.mxu0 0
    %1235 = vmatpush1.bf16.msra.mxu0 0
    %1236 = vmatprep.subr.bf16.mxu0 0
    %1237 = vmatpush1.bf16.msra.mxu0 0
    %1238 = vmatprep.subr.bf16.mxu0 0
    %1239 = vmatpush1.bf16.msra.mxu0 0
    %1240 = vmatprep.subr.bf16.mxu0 0
    %1241 = vmatpush1.bf16.msra.mxu0 0
    %1242 = vmatprep.subr.bf16.mxu0 0
    %1243 = vmatpush1.bf16.msra.mxu0 0
    %1244 = vmatprep.mubr.bf16.mxu0 0
    %1245 = vmatmul.mubr.bf16.gmra.mrb[0].mxu0 %v830
    %v1246 = vpop.f32.mrb[0].mxu0
    %v1247 = vadd.f32 0.0, %v1246
    %v1248 = vpop.f32.mrb[0].mxu0
    %v1249 = vpop.f32.mrb[0].mxu0
    %v1250 = vpop.f32.mrb[0].mxu0
    %1251 = vdwg.mxu0
    %v1253 = vrot.slane %v1247, 4
    %v1255 = vadd.f32 %v184, %v1253
    %v1256 = vxor.u32 %v1255, 2147483648
    %v1257 = vmul.f32 %v1256, 1.442695
    %v1258 = vpow.pop %v1257
    %v1259 = vadd.f32 %v1258, 1.0
    %v1260 = vrcp.pop %v1259
    %v1261 = vmul.f32 1.0, %v1260
    %v1262 = vtanh.pop %v1255
    %v1264 = vrot.slane %v817, 6
    %v1266 = vmul.f32 %v1261, %v1264
    %1268 = vrot.lane.b32.xlu0 %v1262, 64
    %v1269 = vpop.permute.xlu0 %1268
    %v1271 = vmul.f32 %v1261, %v1269
    %1273 = vrot.lane.b32.xlu0 %v1271, 32
    %v1274 = vpop.permute.xlu0 %1273
    %v1276 = vadd.f32 %v1266, %v1274
    %v1277 = vtanh.pop %v1276
    %1279 = vrot.lane.b32.xlu0 %v1277, 64
    %v1280 = vpop.permute.xlu0 %1279
    %v1282 = vmul.f32 %v1261, %v1280
    %v1283 = vpack.c.bf16 %v1282, %v1282
    %v1285 = vrot.slane %v1283, 2
    %1286 = vrot.lane.b32.xlu0 %v1285, 32
    %v1287 = vpop.permute.xlu0 %1286
    %v1289 = vsel %vm202, %v1287, 0
    %1291 = vmatprep.subr.bf16.mxu0 0
    %1292 = vmatpush1.bf16.msra.mxu0 %v289
    %1293 = vmatprep.subr.bf16.mxu0 0
    %1294 = vmatpush1.bf16.msra.mxu0 %v290
    %1295 = vmatprep.subr.bf16.mxu0 0
    %1296 = vmatpush1.bf16.msra.mxu0 0
    %1297 = vmatprep.subr.bf16.mxu0 0
    %1298 = vmatpush1.bf16.msra.mxu0 0
    %1299 = vmatprep.subr.bf16.mxu0 0
    %1300 = vmatpush1.bf16.msra.mxu0 0
    %1301 = vmatprep.subr.bf16.mxu0 0
    %1302 = vmatpush1.bf16.msra.mxu0 0
    %1303 = vmatprep.subr.bf16.mxu0 0
    %1304 = vmatpush1.bf16.msra.mxu0 0
    %1305 = vmatprep.subr.bf16.mxu0 0
    %1306 = vmatpush1.bf16.msra.mxu0 0
    %1307 = vmatprep.subr.bf16.mxu0 0
    %1308 = vmatpush1.bf16.msra.mxu0 0
    %1309 = vmatprep.subr.bf16.mxu0 0
    %1310 = vmatpush1.bf16.msra.mxu0 0
    %1311 = vmatprep.subr.bf16.mxu0 0
    %1312 = vmatpush1.bf16.msra.mxu0 0
    %1313 = vmatprep.subr.bf16.mxu0 0
    %1314 = vmatpush1.bf16.msra.mxu0 0
    %1315 = vmatprep.subr.bf16.mxu0 0
    %1316 = vmatpush1.bf16.msra.mxu0 0
    %1317 = vmatprep.subr.bf16.mxu0 0
    %1318 = vmatpush1.bf16.msra.mxu0 0
    %1319 = vmatprep.subr.bf16.mxu0 0
    %1320 = vmatpush1.bf16.msra.mxu0 0
    %1321 = vmatprep.subr.bf16.mxu0 0
    %1322 = vmatpush1.bf16.msra.mxu0 0
    %1323 = vmatprep.mubr.bf16.mxu0 0
    %1324 = vmatmul.mubr.bf16.gmra.mrb[0].mxu0 %v1289
    %v1325 = vpop.f32.mrb[0].mxu0
    %v1326 = vadd.f32 %v276, %v1325
    %v1327 = vpop.f32.mrb[0].mxu0
    %v1328 = vpop.f32.mrb[0].mxu0
    %v1329 = vpop.f32.mrb[0].mxu0
    %1330 = vdwg.mxu0
    %1331 = vmatprep.subr.bf16.mxu0 0
    %1332 = vmatpush1.bf16.msra.mxu0 %v344
    %1333 = vmatprep.subr.bf16.mxu0 0
    %1334 = vmatpush1.bf16.msra.mxu0 %v345
    %1335 = vmatprep.subr.bf16.mxu0 0
    %1336 = vmatpush1.bf16.msra.mxu0 0
    %1337 = vmatprep.subr.bf16.mxu0 0
    %1338 = vmatpush1.bf16.msra.mxu0 0
    %1339 = vmatprep.subr.bf16.mxu0 0
    %1340 = vmatpush1.bf16.msra.mxu0 0
    %1341 = vmatprep.subr.bf16.mxu0 0
    %1342 = vmatpush1.bf16.msra.mxu0 0
    %1343 = vmatprep.subr.bf16.mxu0 0
    %1344 = vmatpush1.bf16.msra.mxu0 0
    %1345 = vmatprep.subr.bf16.mxu0 0
    %1346 = vmatpush1.bf16.msra.mxu0 0
    %1347 = vmatprep.subr.bf16.mxu0 0
    %1348 = vmatpush1.bf16.msra.mxu0 0
    %1349 = vmatprep.subr.bf16.mxu0 0
    %1350 = vmatpush1.bf16.msra.mxu0 0
    %1351 = vmatprep.subr.bf16.mxu0 0
    %1352 = vmatpush1.bf16.msra.mxu0 0
    %1353 = vmatprep.subr.bf16.mxu0 0
    %1354 = vmatpush1.bf16.msra.mxu0 0
    %1355 = vmatprep.subr.bf16.mxu0 0
    %1356 = vmatpush1.bf16.msra.mxu0 0
    %1357 = vmatprep.subr.bf16.mxu0 0
    %1358 = vmatpush1.bf16.msra.mxu0 0
    %1359 = vmatprep.subr.bf16.mxu0 0
    %1360 = vmatpush1.bf16.msra.mxu0 0
    %1361 = vmatprep.subr.bf16.mxu0 0
    %1362 = vmatpush1.bf16.msra.mxu0 0
    %1363 = vmatprep.mubr.bf16.mxu0 0
    %1364 = vmatmul.mubr.bf16.gmra.mrb[0].mxu0 %v942
    %v1365 = vpop.f32.mrb[0].mxu0
    %v1366 = vadd.f32 0.0, %v1365
    %v1367 = vpop.f32.mrb[0].mxu0
    %v1368 = vpop.f32.mrb[0].mxu0
    %v1369 = vpop.f32.mrb[0].mxu0
    %1370 = vdwg.mxu0
    %v1371 = vadd.f32 %v1326, %v1366
    %v1372 = vxor.u32 %v1371, 2147483648
    %v1373 = vmul.f32 %v1372, 1.442695
    %v1374 = vpow.pop %v1373
    %v1375 = vadd.f32 %v1374, 1.0
    %v1376 = vrcp.pop %v1375
    %v1377 = vmul.f32 1.0, %v1376
    %v1378 = vtanh.pop %v1371
    %v1379 = vmul.f32 %v1377, %v930
    %1381 = vrot.lane.b32.xlu0 %v1378, 64
    %v1382 = vpop.permute.xlu0 %1381
    %v1384 = vmul.f32 %v1377, %v1382
    %1386 = vrot.lane.b32.xlu0 %v1384, 32
    %v1387 = vpop.permute.xlu0 %1386
    %v1389 = vadd.f32 %v1379, %v1387
    %v1390 = vtanh.pop %v1389
    %1392 = vrot.lane.b32.xlu0 %v1390, 64
    %v1393 = vpop.permute.xlu0 %1392
    %v1395 = vmul.f32 %v1377, %v1393
    %v1396 = vpack.c.bf16 %v1395, %v1395
    %1398 = vrot.lane.b32.xlu0 %v1396, 32
    %v1399 = vpop.permute.xlu0 %1398
    %v1401 = vsel %vm202, %v1399, 0
    %1403 = vmatprep.subr.bf16.mxu0 0
    %1404 = vmatpush1.bf16.msra.mxu0 %v431
    %1405 = vmatprep.subr.bf16.mxu0 0
    %1406 = vmatpush1.bf16.msra.mxu0 %v432
    %1407 = vmatprep.subr.bf16.mxu0 0
    %1408 = vmatpush1.bf16.msra.mxu0 0
    %1409 = vmatprep.subr.bf16.mxu0 0
    %1410 = vmatpush1.bf16.msra.mxu0 0
    %1411 = vmatprep.subr.bf16.mxu0 0
    %1412 = vmatpush1.bf16.msra.mxu0 0
    %1413 = vmatprep.subr.bf16.mxu0 0
    %1414 = vmatpush1.bf16.msra.mxu0 0
    %1415 = vmatprep.subr.bf16.mxu0 0
    %1416 = vmatpush1.bf16.msra.mxu0 0
    %1417 = vmatprep.subr.bf16.mxu0 0
    %1418 = vmatpush1.bf16.msra.mxu0 0
    %1419 = vmatprep.subr.bf16.mxu0 0
    %1420 = vmatpush1.bf16.msra.mxu0 0
    %1421 = vmatprep.subr.bf16.mxu0 0
    %1422 = vmatpush1.bf16.msra.mxu0 0
    %1423 = vmatprep.subr.bf16.mxu0 0
    %1424 = vmatpush1.bf16.msra.mxu0 0
    %1425 = vmatprep.subr.bf16.mxu0 0
    %1426 = vmatpush1.bf16.msra.mxu0 0
    %1427 = vmatprep.subr.bf16.mxu0 0
    %1428 = vmatpush1.bf16.msra.mxu0 0
    %1429 = vmatprep.subr.bf16.mxu0 0
    %1430 = vmatpush1.bf16.msra.mxu0 0
    %1431 = vmatprep.subr.bf16.mxu0 0
    %1432 = vmatpush1.bf16.msra.mxu0 0
    %1433 = vmatprep.subr.bf16.mxu0 0
    %1434 = vmatpush1.bf16.msra.mxu0 0
    %1435 = vmatprep.mubr.bf16.mxu0 0
    %1436 = vmatmul.mubr.bf16.gmra.mrb[0].mxu0 %v1401
    %v1437 = vpop.f32.mrb[0].mxu0
    %v1438 = vadd.f32 %v418, %v1437
    %v1439 = vpop.f32.mrb[0].mxu0
    %v1440 = vpop.f32.mrb[0].mxu0
    %v1441 = vpop.f32.mrb[0].mxu0
    %1442 = vdwg.mxu0
    %v1443 = vpack.c.bf16 %v1438, %v1438
    %v1445 = vsel %vm145, %v1443, 0
    %1447 = vmatprep.subr.bf16.mxu0 0
    %1448 = vmatpush1.bf16.msra.mxu0 %v489
    %1449 = vmatprep.subr.bf16.mxu0 0
    %1450 = vmatpush1.bf16.msra.mxu0 0
    %1451 = vmatprep.subr.bf16.mxu0 0
    %1452 = vmatpush1.bf16.msra.mxu0 0
    %1453 = vmatprep.subr.bf16.mxu0 0
    %1454 = vmatpush1.bf16.msra.mxu0 0
    %1455 = vmatprep.subr.bf16.mxu0 0
    %1456 = vmatpush1.bf16.msra.mxu0 0
    %1457 = vmatprep.subr.bf16.mxu0 0
    %1458 = vmatpush1.bf16.msra.mxu0 0
    %1459 = vmatprep.subr.bf16.mxu0 0
    %1460 = vmatpush1.bf16.msra.mxu0 0
    %1461 = vmatprep.subr.bf16.mxu0 0
    %1462 = vmatpush1.bf16.msra.mxu0 0
    %1463 = vmatprep.subr.bf16.mxu0 0
    %1464 = vmatpush1.bf16.msra.mxu0 0
    %1465 = vmatprep.subr.bf16.mxu0 0
    %1466 = vmatpush1.bf16.msra.mxu0 0
    %1467 = vmatprep.subr.bf16.mxu0 0
    %1468 = vmatpush1.bf16.msra.mxu0 0
    %1469 = vmatprep.subr.bf16.mxu0 0
    %1470 = vmatpush1.bf16.msra.mxu0 0
    %1471 = vmatprep.subr.bf16.mxu0 0
    %1472 = vmatpush1.bf16.msra.mxu0 0
    %1473 = vmatprep.subr.bf16.mxu0 0
    %1474 = vmatpush1.bf16.msra.mxu0 0
    %1475 = vmatprep.subr.bf16.mxu0 0
    %1476 = vmatpush1.bf16.msra.mxu0 0
    %1477 = vmatprep.subr.bf16.mxu0 0
    %1478 = vmatpush1.bf16.msra.mxu0 0
    %1479 = vmatprep.mubr.bf16.mxu0 0
    %1480 = vmatmul.mubr.bf16.gmra.mrb[0].mxu0 %v1445
    %v1481 = vpop.f32.mrb[0].mxu0
    %v1482 = vadd.f32 %v483, %v1481
    %v1483 = vpop.f32.mrb[0].mxu0
    %v1484 = vpop.f32.mrb[0].mxu0
    %v1485 = vpop.f32.mrb[0].mxu0
    %1486 = vdwg.mxu0
    %1487 = vmatprep.subr.bf16.mxu0 0
    %1488 = vmatpush1.bf16.msra.mxu0 %v542
    %1489 = vmatprep.subr.bf16.mxu0 0
    %1490 = vmatpush1.bf16.msra.mxu0 %v543
    %1491 = vmatprep.subr.bf16.mxu0 0
    %1492 = vmatpush1.bf16.msra.mxu0 0
    %1493 = vmatprep.subr.bf16.mxu0 0
    %1494 = vmatpush1.bf16.msra.mxu0 0
    %1495 = vmatprep.subr.bf16.mxu0 0
    %1496 = vmatpush1.bf16.msra.mxu0 0
    %1497 = vmatprep.subr.bf16.mxu0 0
    %1498 = vmatpush1.bf16.msra.mxu0 0
    %1499 = vmatprep.subr.bf16.mxu0 0
    %1500 = vmatpush1.bf16.msra.mxu0 0
    %1501 = vmatprep.subr.bf16.mxu0 0
    %1502 = vmatpush1.bf16.msra.mxu0 0
    %1503 = vmatprep.subr.bf16.mxu0 0
    %1504 = vmatpush1.bf16.msra.mxu0 0
    %1505 = vmatprep.subr.bf16.mxu0 0
    %1506 = vmatpush1.bf16.msra.mxu0 0
    %1507 = vmatprep.subr.bf16.mxu0 0
    %1508 = vmatpush1.bf16.msra.mxu0 0
    %1509 = vmatprep.subr.bf16.mxu0 0
    %1510 = vmatpush1.bf16.msra.mxu0 0
    %1511 = vmatprep.subr.bf16.mxu0 0
    %1512 = vmatpush1.bf16.msra.mxu0 0
    %1513 = vmatprep.subr.bf16.mxu0 0
    %1514 = vmatpush1.bf16.msra.mxu0 0
    %1515 = vmatprep.subr.bf16.mxu0 0
    %1516 = vmatpush1.bf16.msra.mxu0 0
    %1517 = vmatprep.subr.bf16.mxu0 0
    %1518 = vmatpush1.bf16.msra.mxu0 0
    %1519 = vmatprep.mubr.bf16.mxu0 0
    %1520 = vmatmul.mubr.bf16.gmra.mrb[0].mxu0 %v1098
    %v1521 = vpop.f32.mrb[0].mxu0
    %v1522 = vadd.f32 0.0, %v1521
    %v1523 = vpop.f32.mrb[0].mxu0
    %v1524 = vpop.f32.mrb[0].mxu0
    %v1525 = vpop.f32.mrb[0].mxu0
    %1526 = vdwg.mxu0
    %v1527 = vadd.f32 %v1482, %v1522
    %v1528 = vxor.u32 %v1527, 2147483648
    %v1529 = vmul.f32 %v1528, 1.442695
    %v1530 = vpow.pop %v1529
    %v1531 = vadd.f32 %v1530, 1.0
    %v1532 = vrcp.pop %v1531
    %v1533 = vmul.f32 1.0, %v1532
    %v1534 = vtanh.pop %v1527
    %v1535 = vmul.f32 %v1533, %v1086
    %1537 = vrot.lane.b32.xlu0 %v1534, 64
    %v1538 = vpop.permute.xlu0 %1537
    %v1540 = vmul.f32 %v1533, %v1538
    %1542 = vrot.lane.b32.xlu0 %v1540, 32
    %v1543 = vpop.permute.xlu0 %1542
    %v1545 = vadd.f32 %v1535, %v1543
    %v1546 = vtanh.pop %v1545
    %1548 = vrot.lane.b32.xlu0 %v1546, 64
    %v1549 = vpop.permute.xlu0 %1548
    %v1551 = vmul.f32 %v1533, %v1549
    %v1552 = vpack.c.bf16 %v1551, %v1551
    %1554 = vrot.lane.b32.xlu0 %v1552, 32
    %v1555 = vpop.permute.xlu0 %1554
    %v1557 = vsel %vm202, %v1555, 0
    %1559 = vmatprep.subr.bf16.mxu0 0
    %1560 = vmatpush1.bf16.msra.mxu0 %v629
    %1561 = vmatprep.subr.bf16.mxu0 0
    %1562 = vmatpush1.bf16.msra.mxu0 %v630
    %1563 = vmatprep.subr.bf16.mxu0 0
    %1564 = vmatpush1.bf16.msra.mxu0 0
    %1565 = vmatprep.subr.bf16.mxu0 0
    %1566 = vmatpush1.bf16.msra.mxu0 0
    %1567 = vmatprep.subr.bf16.mxu0 0
    %1568 = vmatpush1.bf16.msra.mxu0 0
    %1569 = vmatprep.subr.bf16.mxu0 0
    %1570 = vmatpush1.bf16.msra.mxu0 0
    %1571 = vmatprep.subr.bf16.mxu0 0
    %1572 = vmatpush1.bf16.msra.mxu0 0
    %1573 = vmatprep.subr.bf16.mxu0 0
    %1574 = vmatpush1.bf16.msra.mxu0 0
    %1575 = vmatprep.subr.bf16.mxu0 0
    %1576 = vmatpush1.bf16.msra.mxu0 0
    %1577 = vmatprep.subr.bf16.mxu0 0
    %1578 = vmatpush1.bf16.msra.mxu0 0
    %1579 = vmatprep.subr.bf16.mxu0 0
    %1580 = vmatpush1.bf16.msra.mxu0 0
    %1581 = vmatprep.subr.bf16.mxu0 0
    %1582 = vmatpush1.bf16.msra.mxu0 0
    %1583 = vmatprep.subr.bf16.mxu0 0
    %1584 = vmatpush1.bf16.msra.mxu0 0
    %1585 = vmatprep.subr.bf16.mxu0 0
    %1586 = vmatpush1.bf16.msra.mxu0 0
    %1587 = vmatprep.subr.bf16.mxu0 0
    %1588 = vmatpush1.bf16.msra.mxu0 0
    %1589 = vmatprep.subr.bf16.mxu0 0
    %1590 = vmatpush1.bf16.msra.mxu0 0
    %1591 = vmatprep.mubr.bf16.mxu0 0
    %1592 = vmatmul.mubr.bf16.gmra.mrb[0].mxu0 %v1557
    %v1593 = vpop.f32.mrb[0].mxu0
    %v1594 = vadd.f32 %v616, %v1593
    %v1595 = vpop.f32.mrb[0].mxu0
    %v1596 = vpop.f32.mrb[0].mxu0
    %v1597 = vpop.f32.mrb[0].mxu0
    %1598 = vdwg.mxu0
    %v1599 = vpack.c.bf16 %v1211, %v1211
    %1601 = vrot.lane.b32.xlu0 %v1599, 32
    %v1602 = vpop.permute.xlu0 %1601
    %v1604 = vsel %vm202, %v1602, 0
    %1606 = vmatprep.subr.bf16.mxu0 0
    %1607 = vmatpush1.bf16.msra.mxu0 %v684
    %1608 = vmatprep.subr.bf16.mxu0 0
    %1609 = vmatpush1.bf16.msra.mxu0 %v685
    %1610 = vmatprep.subr.bf16.mxu0 0
    %1611 = vmatpush1.bf16.msra.mxu0 0
    %1612 = vmatprep.subr.bf16.mxu0 0
    %1613 = vmatpush1.bf16.msra.mxu0 0
    %1614 = vmatprep.subr.bf16.mxu0 0
    %1615 = vmatpush1.bf16.msra.mxu0 0
    %1616 = vmatprep.subr.bf16.mxu0 0
    %1617 = vmatpush1.bf16.msra.mxu0 0
    %1618 = vmatprep.subr.bf16.mxu0 0
    %1619 = vmatpush1.bf16.msra.mxu0 0
    %1620 = vmatprep.subr.bf16.mxu0 0
    %1621 = vmatpush1.bf16.msra.mxu0 0
    %1622 = vmatprep.subr.bf16.mxu0 0
    %1623 = vmatpush1.bf16.msra.mxu0 0
    %1624 = vmatprep.subr.bf16.mxu0 0
    %1625 = vmatpush1.bf16.msra.mxu0 0
    %1626 = vmatprep.subr.bf16.mxu0 0
    %1627 = vmatpush1.bf16.msra.mxu0 0
    %1628 = vmatprep.subr.bf16.mxu0 0
    %1629 = vmatpush1.bf16.msra.mxu0 0
    %1630 = vmatprep.subr.bf16.mxu0 0
    %1631 = vmatpush1.bf16.msra.mxu0 0
    %1632 = vmatprep.subr.bf16.mxu0 0
    %1633 = vmatpush1.bf16.msra.mxu0 0
    %1634 = vmatprep.subr.bf16.mxu0 0
    %1635 = vmatpush1.bf16.msra.mxu0 0
    %1636 = vmatprep.subr.bf16.mxu0 0
    %1637 = vmatpush1.bf16.msra.mxu0 0
    %1638 = vmatprep.mubr.bf16.mxu0 0
    %1639 = vmatmul.mubr.bf16.gmra.mrb[0].mxu0 %v1604
    %v1640 = vpop.f32.mrb[0].mxu0
    %v1641 = vadd.f32 0.0, %v1640
    %v1642 = vpop.f32.mrb[0].mxu0
    %v1643 = vpop.f32.mrb[0].mxu0
    %v1644 = vpop.f32.mrb[0].mxu0
    %1645 = vdwg.mxu0
    %v1646 = vadd.f32 %v1594, %v1641
    %v1647 = vxor.u32 %v1646, 2147483648
    %v1648 = vmul.f32 %v1647, 1.442695
    %v1649 = vpow.pop %v1648
    %v1650 = vadd.f32 %v1649, 1.0
    %v1651 = vrcp.pop %v1650
    %v1652 = vmul.f32 1.0, %v1651
    %v1653 = vtanh.pop %v1646
    %v1654 = vmul.f32 %v1652, %v1205
    %1656 = vrot.lane.b32.xlu0 %v1653, 64
    %v1657 = vpop.permute.xlu0 %1656
    %v1659 = vmul.f32 %v1652, %v1657
    %1661 = vrot.lane.b32.xlu0 %v1659, 32
    %v1662 = vpop.permute.xlu0 %1661
    %v1664 = vadd.f32 %v1654, %v1662
    %v1665 = vtanh.pop %v1664
    %1667 = vrot.lane.b32.xlu0 %v1665, 64
    %v1668 = vpop.permute.xlu0 %1667
    %v1670 = vmul.f32 %v1652, %v1668
    %1671 = vmatprep.subr.bf16.mxu0 0
    %1672 = vmatpush1.bf16.msra.mxu0 %v198
    %1673 = vmatprep.subr.bf16.mxu0 0
    %1674 = vmatpush1.bf16.msra.mxu0 %v199
    %1675 = vmatprep.subr.bf16.mxu0 0
    %1676 = vmatpush1.bf16.msra.mxu0 0
    %1677 = vmatprep.subr.bf16.mxu0 0
    %1678 = vmatpush1.bf16.msra.mxu0 0
    %1679 = vmatprep.subr.bf16.mxu0 0
    %1680 = vmatpush1.bf16.msra.mxu0 0
    %1681 = vmatprep.subr.bf16.mxu0 0
    %1682 = vmatpush1.bf16.msra.mxu0 0
    %1683 = vmatprep.subr.bf16.mxu0 0
    %1684 = vmatpush1.bf16.msra.mxu0 0
    %1685 = vmatprep.subr.bf16.mxu0 0
    %1686 = vmatpush1.bf16.msra.mxu0 0
    %1687 = vmatprep.subr.bf16.mxu0 0
    %1688 = vmatpush1.bf16.msra.mxu0 0
    %1689 = vmatprep.subr.bf16.mxu0 0
    %1690 = vmatpush1.bf16.msra.mxu0 0
    %1691 = vmatprep.subr.bf16.mxu0 0
    %1692 = vmatpush1.bf16.msra.mxu0 0
    %1693 = vmatprep.subr.bf16.mxu0 0
    %1694 = vmatpush1.bf16.msra.mxu0 0
    %1695 = vmatprep.subr.bf16.mxu0 0
    %1696 = vmatpush1.bf16.msra.mxu0 0
    %1697 = vmatprep.subr.bf16.mxu0 0
    %1698 = vmatpush1.bf16.msra.mxu0 0
    %1699 = vmatprep.subr.bf16.mxu0 0
    %1700 = vmatpush1.bf16.msra.mxu0 0
    %1701 = vmatprep.subr.bf16.mxu0 0
    %1702 = vmatpush1.bf16.msra.mxu0 0
    %1703 = vmatprep.mubr.bf16.mxu0 0
    %1704 = vmatmul.mubr.bf16.gmra.mrb[0].mxu0 %v1289
    %v1705 = vpop.f32.mrb[0].mxu0
    %v1706 = vadd.f32 0.0, %v1705
    %v1707 = vpop.f32.mrb[0].mxu0
    %v1708 = vpop.f32.mrb[0].mxu0
    %v1709 = vpop.f32.mrb[0].mxu0
    %1710 = vdwg.mxu0
    %v1712 = vrot.slane %v1706, 2
    %v1714 = vadd.f32 %v184, %v1712
    %v1715 = vxor.u32 %v1714, 2147483648
    %v1716 = vmul.f32 %v1715, 1.442695
    %v1717 = vpow.pop %v1716
    %v1718 = vadd.f32 %v1717, 1.0
    %v1719 = vrcp.pop %v1718
    %v1720 = vmul.f32 1.0, %v1719
    %v1721 = vtanh.pop %v1714
    %v1723 = vrot.slane %v1276, 6
    %v1725 = vmul.f32 %v1720, %v1723
    %1727 = vrot.lane.b32.xlu0 %v1721, 64
    %v1728 = vpop.permute.xlu0 %1727
    %v1730 = vmul.f32 %v1720, %v1728
    %1732 = vrot.lane.b32.xlu0 %v1730, 32
    %v1733 = vpop.permute.xlu0 %1732
    %v1735 = vadd.f32 %v1725, %v1733
    %v1736 = vtanh.pop %v1735
    %1738 = vrot.lane.b32.xlu0 %v1736, 64
    %v1739 = vpop.permute.xlu0 %1738
    %v1741 = vmul.f32 %v1720, %v1739
    %v1742 = vpack.c.bf16 %v1741, %v1741
    %v1744 = vrot.slane %v1742, 3
    %1745 = vrot.lane.b32.xlu0 %v1744, 32
    %v1746 = vpop.permute.xlu0 %1745
    %v1748 = vsel %vm202, %v1746, 0
    %1750 = vmatprep.subr.bf16.mxu0 0
    %1751 = vmatpush1.bf16.msra.mxu0 %v289
    %1752 = vmatprep.subr.bf16.mxu0 0
    %1753 = vmatpush1.bf16.msra.mxu0 %v290
    %1754 = vmatprep.subr.bf16.mxu0 0
    %1755 = vmatpush1.bf16.msra.mxu0 0
    %1756 = vmatprep.subr.bf16.mxu0 0
    %1757 = vmatpush1.bf16.msra.mxu0 0
    %1758 = vmatprep.subr.bf16.mxu0 0
    %1759 = vmatpush1.bf16.msra.mxu0 0
    %1760 = vmatprep.subr.bf16.mxu0 0
    %1761 = vmatpush1.bf16.msra.mxu0 0
    %1762 = vmatprep.subr.bf16.mxu0 0
    %1763 = vmatpush1.bf16.msra.mxu0 0
    %1764 = vmatprep.subr.bf16.mxu0 0
    %1765 = vmatpush1.bf16.msra.mxu0 0
    %1766 = vmatprep.subr.bf16.mxu0 0
    %1767 = vmatpush1.bf16.msra.mxu0 0
    %1768 = vmatprep.subr.bf16.mxu0 0
    %1769 = vmatpush1.bf16.msra.mxu0 0
    %1770 = vmatprep.subr.bf16.mxu0 0
    %1771 = vmatpush1.bf16.msra.mxu0 0
    %1772 = vmatprep.subr.bf16.mxu0 0
    %1773 = vmatpush1.bf16.msra.mxu0 0
    %1774 = vmatprep.subr.bf16.mxu0 0
    %1775 = vmatpush1.bf16.msra.mxu0 0
    %1776 = vmatprep.subr.bf16.mxu0 0
    %1777 = vmatpush1.bf16.msra.mxu0 0
    %1778 = vmatprep.subr.bf16.mxu0 0
    %1779 = vmatpush1.bf16.msra.mxu0 0
    %1780 = vmatprep.subr.bf16.mxu0 0
    %1781 = vmatpush1.bf16.msra.mxu0 0
    %1782 = vmatprep.mubr.bf16.mxu0 0
    %1783 = vmatmul.mubr.bf16.gmra.mrb[0].mxu0 %v1748
    %v1784 = vpop.f32.mrb[0].mxu0
    %v1785 = vadd.f32 %v276, %v1784
    %v1786 = vpop.f32.mrb[0].mxu0
    %v1787 = vpop.f32.mrb[0].mxu0
    %v1788 = vpop.f32.mrb[0].mxu0
    %1789 = vdwg.mxu0
    %1790 = vmatprep.subr.bf16.mxu0 0
    %1791 = vmatpush1.bf16.msra.mxu0 %v344
    %1792 = vmatprep.subr.bf16.mxu0 0
    %1793 = vmatpush1.bf16.msra.mxu0 %v345
    %1794 = vmatprep.subr.bf16.mxu0 0
    %1795 = vmatpush1.bf16.msra.mxu0 0
    %1796 = vmatprep.subr.bf16.mxu0 0
    %1797 = vmatpush1.bf16.msra.mxu0 0
    %1798 = vmatprep.subr.bf16.mxu0 0
    %1799 = vmatpush1.bf16.msra.mxu0 0
    %1800 = vmatprep.subr.bf16.mxu0 0
    %1801 = vmatpush1.bf16.msra.mxu0 0
    %1802 = vmatprep.subr.bf16.mxu0 0
    %1803 = vmatpush1.bf16.msra.mxu0 0
    %1804 = vmatprep.subr.bf16.mxu0 0
    %1805 = vmatpush1.bf16.msra.mxu0 0
    %1806 = vmatprep.subr.bf16.mxu0 0
    %1807 = vmatpush1.bf16.msra.mxu0 0
    %1808 = vmatprep.subr.bf16.mxu0 0
    %1809 = vmatpush1.bf16.msra.mxu0 0
    %1810 = vmatprep.subr.bf16.mxu0 0
    %1811 = vmatpush1.bf16.msra.mxu0 0
    %1812 = vmatprep.subr.bf16.mxu0 0
    %1813 = vmatpush1.bf16.msra.mxu0 0
    %1814 = vmatprep.subr.bf16.mxu0 0
    %1815 = vmatpush1.bf16.msra.mxu0 0
    %1816 = vmatprep.subr.bf16.mxu0 0
    %1817 = vmatpush1.bf16.msra.mxu0 0
    %1818 = vmatprep.subr.bf16.mxu0 0
    %1819 = vmatpush1.bf16.msra.mxu0 0
    %1820 = vmatprep.subr.bf16.mxu0 0
    %1821 = vmatpush1.bf16.msra.mxu0 0
    %1822 = vmatprep.mubr.bf16.mxu0 0
    %1823 = vmatmul.mubr.bf16.gmra.mrb[0].mxu0 %v1401
    %v1824 = vpop.f32.mrb[0].mxu0
    %v1825 = vadd.f32 0.0, %v1824
    %v1826 = vpop.f32.mrb[0].mxu0
    %v1827 = vpop.f32.mrb[0].mxu0
    %v1828 = vpop.f32.mrb[0].mxu0
    %1829 = vdwg.mxu0
    %v1830 = vadd.f32 %v1785, %v1825
    %v1831 = vxor.u32 %v1830, 2147483648
    %v1832 = vmul.f32 %v1831, 1.442695
    %v1833 = vpow.pop %v1832
    %v1834 = vadd.f32 %v1833, 1.0
    %v1835 = vrcp.pop %v1834
    %v1836 = vmul.f32 1.0, %v1835
    %v1837 = vtanh.pop %v1830
    %v1838 = vmul.f32 %v1836, %v1389
    %1840 = vrot.lane.b32.xlu0 %v1837, 64
    %v1841 = vpop.permute.xlu0 %1840
    %v1843 = vmul.f32 %v1836, %v1841
    %1845 = vrot.lane.b32.xlu0 %v1843, 32
    %v1846 = vpop.permute.xlu0 %1845
    %v1848 = vadd.f32 %v1838, %v1846
    %v1849 = vtanh.pop %v1848
    %1851 = vrot.lane.b32.xlu0 %v1849, 64
    %v1852 = vpop.permute.xlu0 %1851
    %v1854 = vmul.f32 %v1836, %v1852
    %v1855 = vpack.c.bf16 %v1854, %v1854
    %1857 = vrot.lane.b32.xlu0 %v1855, 32
    %v1858 = vpop.permute.xlu0 %1857
    %v1860 = vsel %vm202, %v1858, 0
    %1862 = vmatprep.subr.bf16.mxu0 0
    %1863 = vmatpush1.bf16.msra.mxu0 %v431
    %1864 = vmatprep.subr.bf16.mxu0 0
    %1865 = vmatpush1.bf16.msra.mxu0 %v432
    %1866 = vmatprep.subr.bf16.mxu0 0
    %1867 = vmatpush1.bf16.msra.mxu0 0
    %1868 = vmatprep.subr.bf16.mxu0 0
    %1869 = vmatpush1.bf16.msra.mxu0 0
    %1870 = vmatprep.subr.bf16.mxu0 0
    %1871 = vmatpush1.bf16.msra.mxu0 0
    %1872 = vmatprep.subr.bf16.mxu0 0
    %1873 = vmatpush1.bf16.msra.mxu0 0
    %1874 = vmatprep.subr.bf16.mxu0 0
    %1875 = vmatpush1.bf16.msra.mxu0 0
    %1876 = vmatprep.subr.bf16.mxu0 0
    %1877 = vmatpush1.bf16.msra.mxu0 0
    %1878 = vmatprep.subr.bf16.mxu0 0
    %1879 = vmatpush1.bf16.msra.mxu0 0
    %1880 = vmatprep.subr.bf16.mxu0 0
    %1881 = vmatpush1.bf16.msra.mxu0 0
    %1882 = vmatprep.subr.bf16.mxu0 0
    %1883 = vmatpush1.bf16.msra.mxu0 0
    %1884 = vmatprep.subr.bf16.mxu0 0
    %1885 = vmatpush1.bf16.msra.mxu0 0
    %1886 = vmatprep.subr.bf16.mxu0 0
    %1887 = vmatpush1.bf16.msra.mxu0 0
    %1888 = vmatprep.subr.bf16.mxu0 0
    %1889 = vmatpush1.bf16.msra.mxu0 0
    %1890 = vmatprep.subr.bf16.mxu0 0
    %1891 = vmatpush1.bf16.msra.mxu0 0
    %1892 = vmatprep.subr.bf16.mxu0 0
    %1893 = vmatpush1.bf16.msra.mxu0 0
    %1894 = vmatprep.mubr.bf16.mxu0 0
    %1895 = vmatmul.mubr.bf16.gmra.mrb[0].mxu0 %v1860
    %v1896 = vpop.f32.mrb[0].mxu0
    %v1897 = vadd.f32 %v418, %v1896
    %v1898 = vpop.f32.mrb[0].mxu0
    %v1899 = vpop.f32.mrb[0].mxu0
    %v1900 = vpop.f32.mrb[0].mxu0
    %1901 = vdwg.mxu0
    %v1902 = vpack.c.bf16 %v1897, %v1897
    %v1904 = vsel %vm145, %v1902, 0
    %1906 = vmatprep.subr.bf16.mxu0 0
    %1907 = vmatpush1.bf16.msra.mxu0 %v489
    %1908 = vmatprep.subr.bf16.mxu0 0
    %1909 = vmatpush1.bf16.msra.mxu0 0
    %1910 = vmatprep.subr.bf16.mxu0 0
    %1911 = vmatpush1.bf16.msra.mxu0 0
    %1912 = vmatprep.subr.bf16.mxu0 0
    %1913 = vmatpush1.bf16.msra.mxu0 0
    %1914 = vmatprep.subr.bf16.mxu0 0
    %1915 = vmatpush1.bf16.msra.mxu0 0
    %1916 = vmatprep.subr.bf16.mxu0 0
    %1917 = vmatpush1.bf16.msra.mxu0 0
    %1918 = vmatprep.subr.bf16.mxu0 0
    %1919 = vmatpush1.bf16.msra.mxu0 0
    %1920 = vmatprep.subr.bf16.mxu0 0
    %1921 = vmatpush1.bf16.msra.mxu0 0
    %1922 = vmatprep.subr.bf16.mxu0 0
    %1923 = vmatpush1.bf16.msra.mxu0 0
    %1924 = vmatprep.subr.bf16.mxu0 0
    %1925 = vmatpush1.bf16.msra.mxu0 0
    %1926 = vmatprep.subr.bf16.mxu0 0
    %1927 = vmatpush1.bf16.msra.mxu0 0
    %1928 = vmatprep.subr.bf16.mxu0 0
    %1929 = vmatpush1.bf16.msra.mxu0 0
    %1930 = vmatprep.subr.bf16.mxu0 0
    %1931 = vmatpush1.bf16.msra.mxu0 0
    %1932 = vmatprep.subr.bf16.mxu0 0
    %1933 = vmatpush1.bf16.msra.mxu0 0
    %1934 = vmatprep.subr.bf16.mxu0 0
    %1935 = vmatpush1.bf16.msra.mxu0 0
    %1936 = vmatprep.subr.bf16.mxu0 0
    %1937 = vmatpush1.bf16.msra.mxu0 0
    %1938 = vmatprep.mubr.bf16.mxu0 0
    %1939 = vmatmul.mubr.bf16.gmra.mrb[0].mxu0 %v1904
    %v1940 = vpop.f32.mrb[0].mxu0
    %v1941 = vadd.f32 %v483, %v1940
    %v1942 = vpop.f32.mrb[0].mxu0
    %v1943 = vpop.f32.mrb[0].mxu0
    %v1944 = vpop.f32.mrb[0].mxu0
    %1945 = vdwg.mxu0
    %1946 = vmatprep.subr.bf16.mxu0 0
    %1947 = vmatpush1.bf16.msra.mxu0 %v542
    %1948 = vmatprep.subr.bf16.mxu0 0
    %1949 = vmatpush1.bf16.msra.mxu0 %v543
    %1950 = vmatprep.subr.bf16.mxu0 0
    %1951 = vmatpush1.bf16.msra.mxu0 0
    %1952 = vmatprep.subr.bf16.mxu0 0
    %1953 = vmatpush1.bf16.msra.mxu0 0
    %1954 = vmatprep.subr.bf16.mxu0 0
    %1955 = vmatpush1.bf16.msra.mxu0 0
    %1956 = vmatprep.subr.bf16.mxu0 0
    %1957 = vmatpush1.bf16.msra.mxu0 0
    %1958 = vmatprep.subr.bf16.mxu0 0
    %1959 = vmatpush1.bf16.msra.mxu0 0
    %1960 = vmatprep.subr.bf16.mxu0 0
    %1961 = vmatpush1.bf16.msra.mxu0 0
    %1962 = vmatprep.subr.bf16.mxu0 0
    %1963 = vmatpush1.bf16.msra.mxu0 0
    %1964 = vmatprep.subr.bf16.mxu0 0
    %1965 = vmatpush1.bf16.msra.mxu0 0
    %1966 = vmatprep.subr.bf16.mxu0 0
    %1967 = vmatpush1.bf16.msra.mxu0 0
    %1968 = vmatprep.subr.bf16.mxu0 0
    %1969 = vmatpush1.bf16.msra.mxu0 0
    %1970 = vmatprep.subr.bf16.mxu0 0
    %1971 = vmatpush1.bf16.msra.mxu0 0
    %1972 = vmatprep.subr.bf16.mxu0 0
    %1973 = vmatpush1.bf16.msra.mxu0 0
    %1974 = vmatprep.subr.bf16.mxu0 0
    %1975 = vmatpush1.bf16.msra.mxu0 0
    %1976 = vmatprep.subr.bf16.mxu0 0
    %1977 = vmatpush1.bf16.msra.mxu0 0
    %1978 = vmatprep.mubr.bf16.mxu0 0
    %1979 = vmatmul.mubr.bf16.gmra.mrb[0].mxu0 %v1557
    %v1980 = vpop.f32.mrb[0].mxu0
    %v1981 = vadd.f32 0.0, %v1980
    %v1982 = vpop.f32.mrb[0].mxu0
    %v1983 = vpop.f32.mrb[0].mxu0
    %v1984 = vpop.f32.mrb[0].mxu0
    %1985 = vdwg.mxu0
    %v1986 = vadd.f32 %v1941, %v1981
    %v1987 = vxor.u32 %v1986, 2147483648
    %v1988 = vmul.f32 %v1987, 1.442695
    %v1989 = vpow.pop %v1988
    %v1990 = vadd.f32 %v1989, 1.0
    %v1991 = vrcp.pop %v1990
    %v1992 = vmul.f32 1.0, %v1991
    %v1993 = vtanh.pop %v1986
    %v1994 = vmul.f32 %v1992, %v1545
    %1996 = vrot.lane.b32.xlu0 %v1993, 64
    %v1997 = vpop.permute.xlu0 %1996
    %v1999 = vmul.f32 %v1992, %v1997
    %2001 = vrot.lane.b32.xlu0 %v1999, 32
    %v2002 = vpop.permute.xlu0 %2001
    %v2004 = vadd.f32 %v1994, %v2002
    %v2005 = vtanh.pop %v2004
    %2007 = vrot.lane.b32.xlu0 %v2005, 64
    %v2008 = vpop.permute.xlu0 %2007
    %v2010 = vmul.f32 %v1992, %v2008
    %v2011 = vpack.c.bf16 %v2010, %v2010
    %2013 = vrot.lane.b32.xlu0 %v2011, 32
    %v2014 = vpop.permute.xlu0 %2013
    %v2016 = vsel %vm202, %v2014, 0
    %2018 = vmatprep.subr.bf16.mxu0 0
    %2019 = vmatpush1.bf16.msra.mxu0 %v629
    %2020 = vmatprep.subr.bf16.mxu0 0
    %2021 = vmatpush1.bf16.msra.mxu0 %v630
    %2022 = vmatprep.subr.bf16.mxu0 0
    %2023 = vmatpush1.bf16.msra.mxu0 0
    %2024 = vmatprep.subr.bf16.mxu0 0
    %2025 = vmatpush1.bf16.msra.mxu0 0
    %2026 = vmatprep.subr.bf16.mxu0 0
    %2027 = vmatpush1.bf16.msra.mxu0 0
    %2028 = vmatprep.subr.bf16.mxu0 0
    %2029 = vmatpush1.bf16.msra.mxu0 0
    %2030 = vmatprep.subr.bf16.mxu0 0
    %2031 = vmatpush1.bf16.msra.mxu0 0
    %2032 = vmatprep.subr.bf16.mxu0 0
    %2033 = vmatpush1.bf16.msra.mxu0 0
    %2034 = vmatprep.subr.bf16.mxu0 0
    %2035 = vmatpush1.bf16.msra.mxu0 0
    %2036 = vmatprep.subr.bf16.mxu0 0
    %2037 = vmatpush1.bf16.msra.mxu0 0
    %2038 = vmatprep.subr.bf16.mxu0 0
    %2039 = vmatpush1.bf16.msra.mxu0 0
    %2040 = vmatprep.subr.bf16.mxu0 0
    %2041 = vmatpush1.bf16.msra.mxu0 0
    %2042 = vmatprep.subr.bf16.mxu0 0
    %2043 = vmatpush1.bf16.msra.mxu0 0
    %2044 = vmatprep.subr.bf16.mxu0 0
    %2045 = vmatpush1.bf16.msra.mxu0 0
    %2046 = vmatprep.subr.bf16.mxu0 0
    %2047 = vmatpush1.bf16.msra.mxu0 0
    %2048 = vmatprep.subr.bf16.mxu0 0
    %2049 = vmatpush1.bf16.msra.mxu0 0
    %2050 = vmatprep.mubr.bf16.mxu0 0
    %2051 = vmatmul.mubr.bf16.gmra.mrb[0].mxu0 %v2016
    %v2052 = vpop.f32.mrb[0].mxu0
    %v2053 = vadd.f32 %v616, %v2052
    %v2054 = vpop.f32.mrb[0].mxu0
    %v2055 = vpop.f32.mrb[0].mxu0
    %v2056 = vpop.f32.mrb[0].mxu0
    %2057 = vdwg.mxu0
    %v2058 = vpack.c.bf16 %v1670, %v1670
    %2060 = vrot.lane.b32.xlu0 %v2058, 32
    %v2061 = vpop.permute.xlu0 %2060
    %v2063 = vsel %vm202, %v2061, 0
    %2065 = vmatprep.subr.bf16.mxu0 0
    %2066 = vmatpush1.bf16.msra.mxu0 %v684
    %2067 = vmatprep.subr.bf16.mxu0 0
    %2068 = vmatpush1.bf16.msra.mxu0 %v685
    %2069 = vmatprep.subr.bf16.mxu0 0
    %2070 = vmatpush1.bf16.msra.mxu0 0
    %2071 = vmatprep.subr.bf16.mxu0 0
    %2072 = vmatpush1.bf16.msra.mxu0 0
    %2073 = vmatprep.subr.bf16.mxu0 0
    %2074 = vmatpush1.bf16.msra.mxu0 0
    %2075 = vmatprep.subr.bf16.mxu0 0
    %2076 = vmatpush1.bf16.msra.mxu0 0
    %2077 = vmatprep.subr.bf16.mxu0 0
    %2078 = vmatpush1.bf16.msra.mxu0 0
    %2079 = vmatprep.subr.bf16.mxu0 0
    %2080 = vmatpush1.bf16.msra.mxu0 0
    %2081 = vmatprep.subr.bf16.mxu0 0
    %2082 = vmatpush1.bf16.msra.mxu0 0
    %2083 = vmatprep.subr.bf16.mxu0 0
    %2084 = vmatpush1.bf16.msra.mxu0 0
    %2085 = vmatprep.subr.bf16.mxu0 0
    %2086 = vmatpush1.bf16.msra.mxu0 0
    %2087 = vmatprep.subr.bf16.mxu0 0
    %2088 = vmatpush1.bf16.msra.mxu0 0
    %2089 = vmatprep.subr.bf16.mxu0 0
    %2090 = vmatpush1.bf16.msra.mxu0 0
    %2091 = vmatprep.subr.bf16.mxu0 0
    %2092 = vmatpush1.bf16.msra.mxu0 0
    %2093 = vmatprep.subr.bf16.mxu0 0
    %2094 = vmatpush1.bf16.msra.mxu0 0
    %2095 = vmatprep.subr.bf16.mxu0 0
    %2096 = vmatpush1.bf16.msra.mxu0 0
    %2097 = vmatprep.mubr.bf16.mxu0 0
    %2098 = vmatmul.mubr.bf16.gmra.mrb[0].mxu0 %v2063
    %v2099 = vpop.f32.mrb[0].mxu0
    %v2100 = vadd.f32 0.0, %v2099
    %v2101 = vpop.f32.mrb[0].mxu0
    %v2102 = vpop.f32.mrb[0].mxu0
    %v2103 = vpop.f32.mrb[0].mxu0
    %2104 = vdwg.mxu0
    %v2105 = vadd.f32 %v2053, %v2100
    %v2106 = vxor.u32 %v2105, 2147483648
    %v2107 = vmul.f32 %v2106, 1.442695
    %v2108 = vpow.pop %v2107
    %v2109 = vadd.f32 %v2108, 1.0
    %v2110 = vrcp.pop %v2109
    %v2111 = vmul.f32 1.0, %v2110
    %v2112 = vtanh.pop %v2105
    %v2113 = vmul.f32 %v2111, %v1664
    %2115 = vrot.lane.b32.xlu0 %v2112, 64
    %v2116 = vpop.permute.xlu0 %2115
    %v2118 = vmul.f32 %v2111, %v2116
    %2120 = vrot.lane.b32.xlu0 %v2118, 32
    %v2121 = vpop.permute.xlu0 %2120
    %v2123 = vadd.f32 %v2113, %v2121
    %v2124 = vtanh.pop %v2123
    %2126 = vrot.lane.b32.xlu0 %v2124, 64
    %v2127 = vpop.permute.xlu0 %2126
    %v2129 = vmul.f32 %v2111, %v2127
    %2130 = vmatprep.subr.bf16.mxu0 0
    %2131 = vmatpush1.bf16.msra.mxu0 %v198
    %2132 = vmatprep.subr.bf16.mxu0 0
    %2133 = vmatpush1.bf16.msra.mxu0 %v199
    %2134 = vmatprep.subr.bf16.mxu0 0
    %2135 = vmatpush1.bf16.msra.mxu0 0
    %2136 = vmatprep.subr.bf16.mxu0 0
    %2137 = vmatpush1.bf16.msra.mxu0 0
    %2138 = vmatprep.subr.bf16.mxu0 0
    %2139 = vmatpush1.bf16.msra.mxu0 0
    %2140 = vmatprep.subr.bf16.mxu0 0
    %2141 = vmatpush1.bf16.msra.mxu0 0
    %2142 = vmatprep.subr.bf16.mxu0 0
    %2143 = vmatpush1.bf16.msra.mxu0 0
    %2144 = vmatprep.subr.bf16.mxu0 0
    %2145 = vmatpush1.bf16.msra.mxu0 0
    %2146 = vmatprep.subr.bf16.mxu0 0
    %2147 = vmatpush1.bf16.msra.mxu0 0
    %2148 = vmatprep.subr.bf16.mxu0 0
    %2149 = vmatpush1.bf16.msra.mxu0 0
    %2150 = vmatprep.subr.bf16.mxu0 0
    %2151 = vmatpush1.bf16.msra.mxu0 0
    %2152 = vmatprep.subr.bf16.mxu0 0
    %2153 = vmatpush1.bf16.msra.mxu0 0
    %2154 = vmatprep.subr.bf16.mxu0 0
    %2155 = vmatpush1.bf16.msra.mxu0 0
    %2156 = vmatprep.subr.bf16.mxu0 0
    %2157 = vmatpush1.bf16.msra.mxu0 0
    %2158 = vmatprep.subr.bf16.mxu0 0
    %2159 = vmatpush1.bf16.msra.mxu0 0
    %2160 = vmatprep.subr.bf16.mxu0 0
    %2161 = vmatpush1.bf16.msra.mxu0 0
    %2162 = vmatprep.mubr.bf16.mxu0 0
    %2163 = vmatmul.mubr.bf16.gmra.mrb[0].mxu0 %v1748
    %v2164 = vpop.f32.mrb[0].mxu0
    %v2165 = vadd.f32 0.0, %v2164
    %v2166 = vpop.f32.mrb[0].mxu0
    %v2167 = vpop.f32.mrb[0].mxu0
    %v2168 = vpop.f32.mrb[0].mxu0
    %2169 = vdwg.mxu0
    %v2170 = vadd.f32 %v187, %v2165
    %v2171 = vxor.u32 %v2170, 2147483648
    %v2172 = vmul.f32 %v2171, 1.442695
    %v2173 = vpow.pop %v2172
    %v2174 = vadd.f32 %v2173, 1.0
    %v2175 = vrcp.pop %v2174
    %v2176 = vmul.f32 1.0, %v2175
    %v2177 = vtanh.pop %v2170
    %v2179 = vrot.slane %v1735, 6
    %v2181 = vmul.f32 %v2176, %v2179
    %2183 = vrot.lane.b32.xlu0 %v2177, 64
    %v2184 = vpop.permute.xlu0 %2183
    %v2186 = vmul.f32 %v2176, %v2184
    %2188 = vrot.lane.b32.xlu0 %v2186, 32
    %v2189 = vpop.permute.xlu0 %2188
    %v2191 = vadd.f32 %v2181, %v2189
    %v2192 = vtanh.pop %v2191
    %2194 = vrot.lane.b32.xlu0 %v2192, 64
    %v2195 = vpop.permute.xlu0 %2194
    %v2197 = vmul.f32 %v2176, %v2195
    %v2198 = vpack.c.bf16 %v2197, %v2197
    %2200 = vrot.lane.b32.xlu0 %v2198, 32
    %v2201 = vpop.permute.xlu0 %2200
    %v2203 = vsel %vm202, %v2201, 0
    %2205 = vmatprep.subr.bf16.mxu0 0
    %2206 = vmatpush1.bf16.msra.mxu0 %v289
    %2207 = vmatprep.subr.bf16.mxu0 0
    %2208 = vmatpush1.bf16.msra.mxu0 %v290
    %2209 = vmatprep.subr.bf16.mxu0 0
    %2210 = vmatpush1.bf16.msra.mxu0 0
    %2211 = vmatprep.subr.bf16.mxu0 0
    %2212 = vmatpush1.bf16.msra.mxu0 0
    %2213 = vmatprep.subr.bf16.mxu0 0
    %2214 = vmatpush1.bf16.msra.mxu0 0
    %2215 = vmatprep.subr.bf16.mxu0 0
    %2216 = vmatpush1.bf16.msra.mxu0 0
    %2217 = vmatprep.subr.bf16.mxu0 0
    %2218 = vmatpush1.bf16.msra.mxu0 0
    %2219 = vmatprep.subr.bf16.mxu0 0
    %2220 = vmatpush1.bf16.msra.mxu0 0
    %2221 = vmatprep.subr.bf16.mxu0 0
    %2222 = vmatpush1.bf16.msra.mxu0 0
    %2223 = vmatprep.subr.bf16.mxu0 0
    %2224 = vmatpush1.bf16.msra.mxu0 0
    %2225 = vmatprep.subr.bf16.mxu0 0
    %2226 = vmatpush1.bf16.msra.mxu0 0
    %2227 = vmatprep.subr.bf16.mxu0 0
    %2228 = vmatpush1.bf16.msra.mxu0 0
    %2229 = vmatprep.subr.bf16.mxu0 0
    %2230 = vmatpush1.bf16.msra.mxu0 0
    %2231 = vmatprep.subr.bf16.mxu0 0
    %2232 = vmatpush1.bf16.msra.mxu0 0
    %2233 = vmatprep.subr.bf16.mxu0 0
    %2234 = vmatpush1.bf16.msra.mxu0 0
    %2235 = vmatprep.subr.bf16.mxu0 0
    %2236 = vmatpush1.bf16.msra.mxu0 0
    %2237 = vmatprep.mubr.bf16.mxu0 0
    %2238 = vmatmul.mubr.bf16.gmra.mrb[0].mxu0 %v2203
    %v2239 = vpop.f32.mrb[0].mxu0
    %v2240 = vadd.f32 %v276, %v2239
    %v2241 = vpop.f32.mrb[0].mxu0
    %v2242 = vpop.f32.mrb[0].mxu0
    %v2243 = vpop.f32.mrb[0].mxu0
    %2244 = vdwg.mxu0
    %2245 = vmatprep.subr.bf16.mxu0 0
    %2246 = vmatpush1.bf16.msra.mxu0 %v344
    %2247 = vmatprep.subr.bf16.mxu0 0
    %2248 = vmatpush1.bf16.msra.mxu0 %v345
    %2249 = vmatprep.subr.bf16.mxu0 0
    %2250 = vmatpush1.bf16.msra.mxu0 0
    %2251 = vmatprep.subr.bf16.mxu0 0
    %2252 = vmatpush1.bf16.msra.mxu0 0
    %2253 = vmatprep.subr.bf16.mxu0 0
    %2254 = vmatpush1.bf16.msra.mxu0 0
    %2255 = vmatprep.subr.bf16.mxu0 0
    %2256 = vmatpush1.bf16.msra.mxu0 0
    %2257 = vmatprep.subr.bf16.mxu0 0
    %2258 = vmatpush1.bf16.msra.mxu0 0
    %2259 = vmatprep.subr.bf16.mxu0 0
    %2260 = vmatpush1.bf16.msra.mxu0 0
    %2261 = vmatprep.subr.bf16.mxu0 0
    %2262 = vmatpush1.bf16.msra.mxu0 0
    %2263 = vmatprep.subr.bf16.mxu0 0
    %2264 = vmatpush1.bf16.msra.mxu0 0
    %2265 = vmatprep.subr.bf16.mxu0 0
    %2266 = vmatpush1.bf16.msra.mxu0 0
    %2267 = vmatprep.subr.bf16.mxu0 0
    %2268 = vmatpush1.bf16.msra.mxu0 0
    %2269 = vmatprep.subr.bf16.mxu0 0
    %2270 = vmatpush1.bf16.msra.mxu0 0
    %2271 = vmatprep.subr.bf16.mxu0 0
    %2272 = vmatpush1.bf16.msra.mxu0 0
    %2273 = vmatprep.subr.bf16.mxu0 0
    %2274 = vmatpush1.bf16.msra.mxu0 0
    %2275 = vmatprep.subr.bf16.mxu0 0
    %2276 = vmatpush1.bf16.msra.mxu0 0
    %2277 = vmatprep.mubr.bf16.mxu0 0
    %2278 = vmatmul.mubr.bf16.gmra.mrb[0].mxu0 %v1860
    %v2279 = vpop.f32.mrb[0].mxu0
    %v2280 = vadd.f32 0.0, %v2279
    %v2281 = vpop.f32.mrb[0].mxu0
    %v2282 = vpop.f32.mrb[0].mxu0
    %v2283 = vpop.f32.mrb[0].mxu0
    %2284 = vdwg.mxu0
    %v2285 = vadd.f32 %v2240, %v2280
    %v2286 = vxor.u32 %v2285, 2147483648
    %v2287 = vmul.f32 %v2286, 1.442695
    %v2288 = vpow.pop %v2287
    %v2289 = vadd.f32 %v2288, 1.0
    %v2290 = vrcp.pop %v2289
    %v2291 = vmul.f32 1.0, %v2290
    %v2292 = vtanh.pop %v2285
    %v2293 = vmul.f32 %v2291, %v1848
    %2295 = vrot.lane.b32.xlu0 %v2292, 64
    %v2296 = vpop.permute.xlu0 %2295
    %v2298 = vmul.f32 %v2291, %v2296
    %2300 = vrot.lane.b32.xlu0 %v2298, 32
    %v2301 = vpop.permute.xlu0 %2300
    %v2303 = vadd.f32 %v2293, %v2301
    %v2304 = vtanh.pop %v2303
    %2306 = vrot.lane.b32.xlu0 %v2304, 64
    %v2307 = vpop.permute.xlu0 %2306
    %v2309 = vmul.f32 %v2291, %v2307
    %v2310 = vpack.c.bf16 %v2309, %v2309
    %2312 = vrot.lane.b32.xlu0 %v2310, 32
    %v2313 = vpop.permute.xlu0 %2312
    %v2315 = vsel %vm202, %v2313, 0
    %2317 = vmatprep.subr.bf16.mxu0 0
    %2318 = vmatpush1.bf16.msra.mxu0 %v431
    %2319 = vmatprep.subr.bf16.mxu0 0
    %2320 = vmatpush1.bf16.msra.mxu0 %v432
    %2321 = vmatprep.subr.bf16.mxu0 0
    %2322 = vmatpush1.bf16.msra.mxu0 0
    %2323 = vmatprep.subr.bf16.mxu0 0
    %2324 = vmatpush1.bf16.msra.mxu0 0
    %2325 = vmatprep.subr.bf16.mxu0 0
    %2326 = vmatpush1.bf16.msra.mxu0 0
    %2327 = vmatprep.subr.bf16.mxu0 0
    %2328 = vmatpush1.bf16.msra.mxu0 0
    %2329 = vmatprep.subr.bf16.mxu0 0
    %2330 = vmatpush1.bf16.msra.mxu0 0
    %2331 = vmatprep.subr.bf16.mxu0 0
    %2332 = vmatpush1.bf16.msra.mxu0 0
    %2333 = vmatprep.subr.bf16.mxu0 0
    %2334 = vmatpush1.bf16.msra.mxu0 0
    %2335 = vmatprep.subr.bf16.mxu0 0
    %2336 = vmatpush1.bf16.msra.mxu0 0
    %2337 = vmatprep.subr.bf16.mxu0 0
    %2338 = vmatpush1.bf16.msra.mxu0 0
    %2339 = vmatprep.subr.bf16.mxu0 0
    %2340 = vmatpush1.bf16.msra.mxu0 0
    %2341 = vmatprep.subr.bf16.mxu0 0
    %2342 = vmatpush1.bf16.msra.mxu0 0
    %2343 = vmatprep.subr.bf16.mxu0 0
    %2344 = vmatpush1.bf16.msra.mxu0 0
    %2345 = vmatprep.subr.bf16.mxu0 0
    %2346 = vmatpush1.bf16.msra.mxu0 0
    %2347 = vmatprep.subr.bf16.mxu0 0
    %2348 = vmatpush1.bf16.msra.mxu0 0
    %2349 = vmatprep.mubr.bf16.mxu0 0
    %2350 = vmatmul.mubr.bf16.gmra.mrb[0].mxu0 %v2315
    %v2351 = vpop.f32.mrb[0].mxu0
    %v2352 = vadd.f32 %v418, %v2351
    %v2353 = vpop.f32.mrb[0].mxu0
    %v2354 = vpop.f32.mrb[0].mxu0
    %v2355 = vpop.f32.mrb[0].mxu0
    %2356 = vdwg.mxu0
    %v2357 = vpack.c.bf16 %v2352, %v2352
    %v2359 = vsel %vm145, %v2357, 0
    %2361 = vmatprep.subr.bf16.mxu0 0
    %2362 = vmatpush1.bf16.msra.mxu0 %v489
    %2363 = vmatprep.subr.bf16.mxu0 0
    %2364 = vmatpush1.bf16.msra.mxu0 0
    %2365 = vmatprep.subr.bf16.mxu0 0
    %2366 = vmatpush1.bf16.msra.mxu0 0
    %2367 = vmatprep.subr.bf16.mxu0 0
    %2368 = vmatpush1.bf16.msra.mxu0 0
    %2369 = vmatprep.subr.bf16.mxu0 0
    %2370 = vmatpush1.bf16.msra.mxu0 0
    %2371 = vmatprep.subr.bf16.mxu0 0
    %2372 = vmatpush1.bf16.msra.mxu0 0
    %2373 = vmatprep.subr.bf16.mxu0 0
    %2374 = vmatpush1.bf16.msra.mxu0 0
    %2375 = vmatprep.subr.bf16.mxu0 0
    %2376 = vmatpush1.bf16.msra.mxu0 0
    %2377 = vmatprep.subr.bf16.mxu0 0
    %2378 = vmatpush1.bf16.msra.mxu0 0
    %2379 = vmatprep.subr.bf16.mxu0 0
    %2380 = vmatpush1.bf16.msra.mxu0 0
    %2381 = vmatprep.subr.bf16.mxu0 0
    %2382 = vmatpush1.bf16.msra.mxu0 0
    %2383 = vmatprep.subr.bf16.mxu0 0
    %2384 = vmatpush1.bf16.msra.mxu0 0
    %2385 = vmatprep.subr.bf16.mxu0 0
    %2386 = vmatpush1.bf16.msra.mxu0 0
    %2387 = vmatprep.subr.bf16.mxu0 0
    %2388 = vmatpush1.bf16.msra.mxu0 0
    %2389 = vmatprep.subr.bf16.mxu0 0
    %2390 = vmatpush1.bf16.msra.mxu0 0
    %2391 = vmatprep.subr.bf16.mxu0 0
    %2392 = vmatpush1.bf16.msra.mxu0 0
    %2393 = vmatprep.mubr.bf16.mxu0 0
    %2394 = vmatmul.mubr.bf16.gmra.mrb[0].mxu0 %v2359
    %v2395 = vpop.f32.mrb[0].mxu0
    %v2396 = vadd.f32 %v483, %v2395
    %v2397 = vpop.f32.mrb[0].mxu0
    %v2398 = vpop.f32.mrb[0].mxu0
    %v2399 = vpop.f32.mrb[0].mxu0
    %2400 = vdwg.mxu0
    %2401 = vmatprep.subr.bf16.mxu0 0
    %2402 = vmatpush1.bf16.msra.mxu0 %v542
    %2403 = vmatprep.subr.bf16.mxu0 0
    %2404 = vmatpush1.bf16.msra.mxu0 %v543
    %2405 = vmatprep.subr.bf16.mxu0 0
    %2406 = vmatpush1.bf16.msra.mxu0 0
    %2407 = vmatprep.subr.bf16.mxu0 0
    %2408 = vmatpush1.bf16.msra.mxu0 0
    %2409 = vmatprep.subr.bf16.mxu0 0
    %2410 = vmatpush1.bf16.msra.mxu0 0
    %2411 = vmatprep.subr.bf16.mxu0 0
    %2412 = vmatpush1.bf16.msra.mxu0 0
    %2413 = vmatprep.subr.bf16.mxu0 0
    %2414 = vmatpush1.bf16.msra.mxu0 0
    %2415 = vmatprep.subr.bf16.mxu0 0
    %2416 = vmatpush1.bf16.msra.mxu0 0
    %2417 = vmatprep.subr.bf16.mxu0 0
    %2418 = vmatpush1.bf16.msra.mxu0 0
    %2419 = vmatprep.subr.bf16.mxu0 0
    %2420 = vmatpush1.bf16.msra.mxu0 0
    %2421 = vmatprep.subr.bf16.mxu0 0
    %2422 = vmatpush1.bf16.msra.mxu0 0
    %2423 = vmatprep.subr.bf16.mxu0 0
    %2424 = vmatpush1.bf16.msra.mxu0 0
    %2425 = vmatprep.subr.bf16.mxu0 0
    %2426 = vmatpush1.bf16.msra.mxu0 0
    %2427 = vmatprep.subr.bf16.mxu0 0
    %2428 = vmatpush1.bf16.msra.mxu0 0
    %2429 = vmatprep.subr.bf16.mxu0 0
    %2430 = vmatpush1.bf16.msra.mxu0 0
    %2431 = vmatprep.subr.bf16.mxu0 0
    %2432 = vmatpush1.bf16.msra.mxu0 0
    %2433 = vmatprep.mubr.bf16.mxu0 0
    %2434 = vmatmul.mubr.bf16.gmra.mrb[0].mxu0 %v2016
    %v2435 = vpop.f32.mrb[0].mxu0
    %v2436 = vadd.f32 0.0, %v2435
    %v2437 = vpop.f32.mrb[0].mxu0
    %v2438 = vpop.f32.mrb[0].mxu0
    %v2439 = vpop.f32.mrb[0].mxu0
    %2440 = vdwg.mxu0
    %v2441 = vadd.f32 %v2396, %v2436
    %v2442 = vxor.u32 %v2441, 2147483648
    %v2443 = vmul.f32 %v2442, 1.442695
    %v2444 = vpow.pop %v2443
    %v2445 = vadd.f32 %v2444, 1.0
    %v2446 = vrcp.pop %v2445
    %v2447 = vmul.f32 1.0, %v2446
    %v2448 = vtanh.pop %v2441
    %v2449 = vmul.f32 %v2447, %v2004
    %2451 = vrot.lane.b32.xlu0 %v2448, 64
    %v2452 = vpop.permute.xlu0 %2451
    %v2454 = vmul.f32 %v2447, %v2452
    %2456 = vrot.lane.b32.xlu0 %v2454, 32
    %v2457 = vpop.permute.xlu0 %2456
    %v2459 = vadd.f32 %v2449, %v2457
    %v2460 = vtanh.pop %v2459
    %2462 = vrot.lane.b32.xlu0 %v2460, 64
    %v2463 = vpop.permute.xlu0 %2462
    %v2465 = vmul.f32 %v2447, %v2463
    %v2466 = vpack.c.bf16 %v2465, %v2465
    %2468 = vrot.lane.b32.xlu0 %v2466, 32
    %v2469 = vpop.permute.xlu0 %2468
    %v2471 = vsel %vm202, %v2469, 0
    %2473 = vmatprep.subr.bf16.mxu0 0
    %2474 = vmatpush1.bf16.msra.mxu0 %v629
    %2475 = vmatprep.subr.bf16.mxu0 0
    %2476 = vmatpush1.bf16.msra.mxu0 %v630
    %2477 = vmatprep.subr.bf16.mxu0 0
    %2478 = vmatpush1.bf16.msra.mxu0 0
    %2479 = vmatprep.subr.bf16.mxu0 0
    %2480 = vmatpush1.bf16.msra.mxu0 0
    %2481 = vmatprep.subr.bf16.mxu0 0
    %2482 = vmatpush1.bf16.msra.mxu0 0
    %2483 = vmatprep.subr.bf16.mxu0 0
    %2484 = vmatpush1.bf16.msra.mxu0 0
    %2485 = vmatprep.subr.bf16.mxu0 0
    %2486 = vmatpush1.bf16.msra.mxu0 0
    %2487 = vmatprep.subr.bf16.mxu0 0
    %2488 = vmatpush1.bf16.msra.mxu0 0
    %2489 = vmatprep.subr.bf16.mxu0 0
    %2490 = vmatpush1.bf16.msra.mxu0 0
    %2491 = vmatprep.subr.bf16.mxu0 0
    %2492 = vmatpush1.bf16.msra.mxu0 0
    %2493 = vmatprep.subr.bf16.mxu0 0
    %2494 = vmatpush1.bf16.msra.mxu0 0
    %2495 = vmatprep.subr.bf16.mxu0 0
    %2496 = vmatpush1.bf16.msra.mxu0 0
    %2497 = vmatprep.subr.bf16.mxu0 0
    %2498 = vmatpush1.bf16.msra.mxu0 0
    %2499 = vmatprep.subr.bf16.mxu0 0
    %2500 = vmatpush1.bf16.msra.mxu0 0
    %2501 = vmatprep.subr.bf16.mxu0 0
    %2502 = vmatpush1.bf16.msra.mxu0 0
    %2503 = vmatprep.subr.bf16.mxu0 0
    %2504 = vmatpush1.bf16.msra.mxu0 0
    %2505 = vmatprep.mubr.bf16.mxu0 0
    %2506 = vmatmul.mubr.bf16.gmra.mrb[0].mxu0 %v2471
    %v2507 = vpop.f32.mrb[0].mxu0
    %v2508 = vadd.f32 %v616, %v2507
    %v2509 = vpop.f32.mrb[0].mxu0
    %v2510 = vpop.f32.mrb[0].mxu0
    %v2511 = vpop.f32.mrb[0].mxu0
    %2512 = vdwg.mxu0
    %v2513 = vpack.c.bf16 %v2129, %v2129
    %2515 = vrot.lane.b32.xlu0 %v2513, 32
    %v2516 = vpop.permute.xlu0 %2515
    %v2518 = vsel %vm202, %v2516, 0
    %2520 = vmatprep.subr.bf16.mxu0 0
    %2521 = vmatpush1.bf16.msra.mxu0 %v684
    %2522 = vmatprep.subr.bf16.mxu0 0
    %2523 = vmatpush1.bf16.msra.mxu0 %v685
    %2524 = vmatprep.subr.bf16.mxu0 0
    %2525 = vmatpush1.bf16.msra.mxu0 0
    %2526 = vmatprep.subr.bf16.mxu0 0
    %2527 = vmatpush1.bf16.msra.mxu0 0
    %2528 = vmatprep.subr.bf16.mxu0 0
    %2529 = vmatpush1.bf16.msra.mxu0 0
    %2530 = vmatprep.subr.bf16.mxu0 0
    %2531 = vmatpush1.bf16.msra.mxu0 0
    %2532 = vmatprep.subr.bf16.mxu0 0
    %2533 = vmatpush1.bf16.msra.mxu0 0
    %2534 = vmatprep.subr.bf16.mxu0 0
    %2535 = vmatpush1.bf16.msra.mxu0 0
    %2536 = vmatprep.subr.bf16.mxu0 0
    %2537 = vmatpush1.bf16.msra.mxu0 0
    %2538 = vmatprep.subr.bf16.mxu0 0
    %2539 = vmatpush1.bf16.msra.mxu0 0
    %2540 = vmatprep.subr.bf16.mxu0 0
    %2541 = vmatpush1.bf16.msra.mxu0 0
    %2542 = vmatprep.subr.bf16.mxu0 0
    %2543 = vmatpush1.bf16.msra.mxu0 0
    %2544 = vmatprep.subr.bf16.mxu0 0
    %2545 = vmatpush1.bf16.msra.mxu0 0
    %2546 = vmatprep.subr.bf16.mxu0 0
    %2547 = vmatpush1.bf16.msra.mxu0 0
    %2548 = vmatprep.subr.bf16.mxu0 0
    %2549 = vmatpush1.bf16.msra.mxu0 0
    %2550 = vmatprep.subr.bf16.mxu0 0
    %2551 = vmatpush1.bf16.msra.mxu0 0
    %2552 = vmatprep.mubr.bf16.mxu0 0
    %2553 = vmatmul.mubr.bf16.gmra.mrb[0].mxu0 %v2518
    %v2554 = vpop.f32.mrb[0].mxu0
    %v2555 = vadd.f32 0.0, %v2554
    %v2556 = vpop.f32.mrb[0].mxu0
    %v2557 = vpop.f32.mrb[0].mxu0
    %v2558 = vpop.f32.mrb[0].mxu0
    %2559 = vdwg.mxu0
    %v2560 = vadd.f32 %v2508, %v2555
    %v2561 = vxor.u32 %v2560, 2147483648
    %v2562 = vmul.f32 %v2561, 1.442695
    %v2563 = vpow.pop %v2562
    %v2564 = vadd.f32 %v2563, 1.0
    %v2565 = vrcp.pop %v2564
    %v2566 = vmul.f32 1.0, %v2565
    %v2567 = vtanh.pop %v2560
    %v2568 = vmul.f32 %v2566, %v2123
    %2570 = vrot.lane.b32.xlu0 %v2567, 64
    %v2571 = vpop.permute.xlu0 %2570
    %v2573 = vmul.f32 %v2566, %v2571
    %2575 = vrot.lane.b32.xlu0 %v2573, 32
    %v2576 = vpop.permute.xlu0 %2575
    %v2578 = vadd.f32 %v2568, %v2576
    %v2579 = vtanh.pop %v2578
    %2581 = vrot.lane.b32.xlu0 %v2579, 64
    %v2582 = vpop.permute.xlu0 %2581
    %v2584 = vmul.f32 %v2566, %v2582
    %2585 = vmatprep.subr.bf16.mxu0 0
    %2586 = vmatpush1.bf16.msra.mxu0 %v198
    %2587 = vmatprep.subr.bf16.mxu0 0
    %2588 = vmatpush1.bf16.msra.mxu0 %v199
    %2589 = vmatprep.subr.bf16.mxu0 0
    %2590 = vmatpush1.bf16.msra.mxu0 0
    %2591 = vmatprep.subr.bf16.mxu0 0
    %2592 = vmatpush1.bf16.msra.mxu0 0
    %2593 = vmatprep.subr.bf16.mxu0 0
    %2594 = vmatpush1.bf16.msra.mxu0 0
    %2595 = vmatprep.subr.bf16.mxu0 0
    %2596 = vmatpush1.bf16.msra.mxu0 0
    %2597 = vmatprep.subr.bf16.mxu0 0
    %2598 = vmatpush1.bf16.msra.mxu0 0
    %2599 = vmatprep.subr.bf16.mxu0 0
    %2600 = vmatpush1.bf16.msra.mxu0 0
    %2601 = vmatprep.subr.bf16.mxu0 0
    %2602 = vmatpush1.bf16.msra.mxu0 0
    %2603 = vmatprep.subr.bf16.mxu0 0
    %2604 = vmatpush1.bf16.msra.mxu0 0
    %2605 = vmatprep.subr.bf16.mxu0 0
    %2606 = vmatpush1.bf16.msra.mxu0 0
    %2607 = vmatprep.subr.bf16.mxu0 0
    %2608 = vmatpush1.bf16.msra.mxu0 0
    %2609 = vmatprep.subr.bf16.mxu0 0
    %2610 = vmatpush1.bf16.msra.mxu0 0
    %2611 = vmatprep.subr.bf16.mxu0 0
    %2612 = vmatpush1.bf16.msra.mxu0 0
    %2613 = vmatprep.subr.bf16.mxu0 0
    %2614 = vmatpush1.bf16.msra.mxu0 0
    %2615 = vmatprep.subr.bf16.mxu0 0
    %2616 = vmatpush1.bf16.msra.mxu0 0
    %2617 = vmatprep.mubr.bf16.mxu0 0
    %2618 = vmatmul.mubr.bf16.gmra.mrb[0].mxu0 %v2203
    %v2619 = vpop.f32.mrb[0].mxu0
    %v2620 = vadd.f32 0.0, %v2619
    %v2621 = vpop.f32.mrb[0].mxu0
    %v2622 = vpop.f32.mrb[0].mxu0
    %v2623 = vpop.f32.mrb[0].mxu0
    %2624 = vdwg.mxu0
    %v2626 = vrot.slane %v2620, 6
    %v2628 = vadd.f32 %v187, %v2626
    %v2629 = vxor.u32 %v2628, 2147483648
    %v2630 = vmul.f32 %v2629, 1.442695
    %v2631 = vpow.pop %v2630
    %v2632 = vadd.f32 %v2631, 1.0
    %v2633 = vrcp.pop %v2632
    %v2634 = vmul.f32 1.0, %v2633
    %v2635 = vtanh.pop %v2628
    %v2637 = vrot.slane %v2191, 6
    %v2639 = vmul.f32 %v2634, %v2637
    %2641 = vrot.lane.b32.xlu0 %v2635, 64
    %v2642 = vpop.permute.xlu0 %2641
    %v2644 = vmul.f32 %v2634, %v2642
    %2646 = vrot.lane.b32.xlu0 %v2644, 32
    %v2647 = vpop.permute.xlu0 %2646
    %v2649 = vadd.f32 %v2639, %v2647
    %v2650 = vtanh.pop %v2649
    %2652 = vrot.lane.b32.xlu0 %v2650, 64
    %v2653 = vpop.permute.xlu0 %2652
    %v2655 = vmul.f32 %v2634, %v2653
    %v2656 = vpack.c.bf16 %v2655, %v2655
    %v2658 = vrot.slane %v2656, 1
    %2659 = vrot.lane.b32.xlu0 %v2658, 32
    %v2660 = vpop.permute.xlu0 %2659
    %v2662 = vsel %vm202, %v2660, 0
    %2664 = vmatprep.subr.bf16.mxu0 0
    %2665 = vmatpush1.bf16.msra.mxu0 %v289
    %2666 = vmatprep.subr.bf16.mxu0 0
    %2667 = vmatpush1.bf16.msra.mxu0 %v290
    %2668 = vmatprep.subr.bf16.mxu0 0
    %2669 = vmatpush1.bf16.msra.mxu0 0
    %2670 = vmatprep.subr.bf16.mxu0 0
    %2671 = vmatpush1.bf16.msra.mxu0 0
    %2672 = vmatprep.subr.bf16.mxu0 0
    %2673 = vmatpush1.bf16.msra.mxu0 0
    %2674 = vmatprep.subr.bf16.mxu0 0
    %2675 = vmatpush1.bf16.msra.mxu0 0
    %2676 = vmatprep.subr.bf16.mxu0 0
    %2677 = vmatpush1.bf16.msra.mxu0 0
    %2678 = vmatprep.subr.bf16.mxu0 0
    %2679 = vmatpush1.bf16.msra.mxu0 0
    %2680 = vmatprep.subr.bf16.mxu0 0
    %2681 = vmatpush1.bf16.msra.mxu0 0
    %2682 = vmatprep.subr.bf16.mxu0 0
    %2683 = vmatpush1.bf16.msra.mxu0 0
    %2684 = vmatprep.subr.bf16.mxu0 0
    %2685 = vmatpush1.bf16.msra.mxu0 0
    %2686 = vmatprep.subr.bf16.mxu0 0
    %2687 = vmatpush1.bf16.msra.mxu0 0
    %2688 = vmatprep.subr.bf16.mxu0 0
    %2689 = vmatpush1.bf16.msra.mxu0 0
    %2690 = vmatprep.subr.bf16.mxu0 0
    %2691 = vmatpush1.bf16.msra.mxu0 0
    %2692 = vmatprep.subr.bf16.mxu0 0
    %2693 = vmatpush1.bf16.msra.mxu0 0
    %2694 = vmatprep.subr.bf16.mxu0 0
    %2695 = vmatpush1.bf16.msra.mxu0 0
    %2696 = vmatprep.mubr.bf16.mxu0 0
    %2697 = vmatmul.mubr.bf16.gmra.mrb[0].mxu0 %v2662
    %v2698 = vpop.f32.mrb[0].mxu0
    %v2699 = vadd.f32 %v276, %v2698
    %v2700 = vpop.f32.mrb[0].mxu0
    %v2701 = vpop.f32.mrb[0].mxu0
    %v2702 = vpop.f32.mrb[0].mxu0
    %2703 = vdwg.mxu0
    %2704 = vmatprep.subr.bf16.mxu0 0
    %2705 = vmatpush1.bf16.msra.mxu0 %v344
    %2706 = vmatprep.subr.bf16.mxu0 0
    %2707 = vmatpush1.bf16.msra.mxu0 %v345
    %2708 = vmatprep.subr.bf16.mxu0 0
    %2709 = vmatpush1.bf16.msra.mxu0 0
    %2710 = vmatprep.subr.bf16.mxu0 0
    %2711 = vmatpush1.bf16.msra.mxu0 0
    %2712 = vmatprep.subr.bf16.mxu0 0
    %2713 = vmatpush1.bf16.msra.mxu0 0
    %2714 = vmatprep.subr.bf16.mxu0 0
    %2715 = vmatpush1.bf16.msra.mxu0 0
    %2716 = vmatprep.subr.bf16.mxu0 0
    %2717 = vmatpush1.bf16.msra.mxu0 0
    %2718 = vmatprep.subr.bf16.mxu0 0
    %2719 = vmatpush1.bf16.msra.mxu0 0
    %2720 = vmatprep.subr.bf16.mxu0 0
    %2721 = vmatpush1.bf16.msra.mxu0 0
    %2722 = vmatprep.subr.bf16.mxu0 0
    %2723 = vmatpush1.bf16.msra.mxu0 0
    %2724 = vmatprep.subr.bf16.mxu0 0
    %2725 = vmatpush1.bf16.msra.mxu0 0
    %2726 = vmatprep.subr.bf16.mxu0 0
    %2727 = vmatpush1.bf16.msra.mxu0 0
    %2728 = vmatprep.subr.bf16.mxu0 0
    %2729 = vmatpush1.bf16.msra.mxu0 0
    %2730 = vmatprep.subr.bf16.mxu0 0
    %2731 = vmatpush1.bf16.msra.mxu0 0
    %2732 = vmatprep.subr.bf16.mxu0 0
    %2733 = vmatpush1.bf16.msra.mxu0 0
    %2734 = vmatprep.subr.bf16.mxu0 0
    %2735 = vmatpush1.bf16.msra.mxu0 0
    %2736 = vmatprep.mubr.bf16.mxu0 0
    %2737 = vmatmul.mubr.bf16.gmra.mrb[0].mxu0 %v2315
    %v2738 = vpop.f32.mrb[0].mxu0
    %v2739 = vadd.f32 0.0, %v2738
    %v2740 = vpop.f32.mrb[0].mxu0
    %v2741 = vpop.f32.mrb[0].mxu0
    %v2742 = vpop.f32.mrb[0].mxu0
    %2743 = vdwg.mxu0
    %v2744 = vadd.f32 %v2699, %v2739
    %v2745 = vxor.u32 %v2744, 2147483648
    %v2746 = vmul.f32 %v2745, 1.442695
    %v2747 = vpow.pop %v2746
    %v2748 = vadd.f32 %v2747, 1.0
    %v2749 = vrcp.pop %v2748
    %v2750 = vmul.f32 1.0, %v2749
    %v2751 = vtanh.pop %v2744
    %v2752 = vmul.f32 %v2750, %v2303
    %2754 = vrot.lane.b32.xlu0 %v2751, 64
    %v2755 = vpop.permute.xlu0 %2754
    %v2757 = vmul.f32 %v2750, %v2755
    %2759 = vrot.lane.b32.xlu0 %v2757, 32
    %v2760 = vpop.permute.xlu0 %2759
    %v2762 = vadd.f32 %v2752, %v2760
    %v2763 = vtanh.pop %v2762
    %2765 = vrot.lane.b32.xlu0 %v2763, 64
    %v2766 = vpop.permute.xlu0 %2765
    %v2768 = vmul.f32 %v2750, %v2766
    %v2769 = vpack.c.bf16 %v2768, %v2768
    %2771 = vrot.lane.b32.xlu0 %v2769, 32
    %v2772 = vpop.permute.xlu0 %2771
    %v2774 = vsel %vm202, %v2772, 0
    %2776 = vmatprep.subr.bf16.mxu0 0
    %2777 = vmatpush1.bf16.msra.mxu0 %v431
    %2778 = vmatprep.subr.bf16.mxu0 0
    %2779 = vmatpush1.bf16.msra.mxu0 %v432
    %2780 = vmatprep.subr.bf16.mxu0 0
    %2781 = vmatpush1.bf16.msra.mxu0 0
    %2782 = vmatprep.subr.bf16.mxu0 0
    %2783 = vmatpush1.bf16.msra.mxu0 0
    %2784 = vmatprep.subr.bf16.mxu0 0
    %2785 = vmatpush1.bf16.msra.mxu0 0
    %2786 = vmatprep.subr.bf16.mxu0 0
    %2787 = vmatpush1.bf16.msra.mxu0 0
    %2788 = vmatprep.subr.bf16.mxu0 0
    %2789 = vmatpush1.bf16.msra.mxu0 0
    %2790 = vmatprep.subr.bf16.mxu0 0
    %2791 = vmatpush1.bf16.msra.mxu0 0
    %2792 = vmatprep.subr.bf16.mxu0 0
    %2793 = vmatpush1.bf16.msra.mxu0 0
    %2794 = vmatprep.subr.bf16.mxu0 0
    %2795 = vmatpush1.bf16.msra.mxu0 0
    %2796 = vmatprep.subr.bf16.mxu0 0
    %2797 = vmatpush1.bf16.msra.mxu0 0
    %2798 = vmatprep.subr.bf16.mxu0 0
    %2799 = vmatpush1.bf16.msra.mxu0 0
    %2800 = vmatprep.subr.bf16.mxu0 0
    %2801 = vmatpush1.bf16.msra.mxu0 0
    %2802 = vmatprep.subr.bf16.mxu0 0
    %2803 = vmatpush1.bf16.msra.mxu0 0
    %2804 = vmatprep.subr.bf16.mxu0 0
    %2805 = vmatpush1.bf16.msra.mxu0 0
    %2806 = vmatprep.subr.bf16.mxu0 0
    %2807 = vmatpush1.bf16.msra.mxu0 0
    %2808 = vmatprep.mubr.bf16.mxu0 0
    %2809 = vmatmul.mubr.bf16.gmra.mrb[0].mxu0 %v2774
    %v2810 = vpop.f32.mrb[0].mxu0
    %v2811 = vadd.f32 %v418, %v2810
    %v2812 = vpop.f32.mrb[0].mxu0
    %v2813 = vpop.f32.mrb[0].mxu0
    %v2814 = vpop.f32.mrb[0].mxu0
    %2815 = vdwg.mxu0
    %v2816 = vpack.c.bf16 %v2811, %v2811
    %v2818 = vsel %vm145, %v2816, 0
    %2820 = vmatprep.subr.bf16.mxu0 0
    %2821 = vmatpush1.bf16.msra.mxu0 %v489
    %2822 = vmatprep.subr.bf16.mxu0 0
    %2823 = vmatpush1.bf16.msra.mxu0 0
    %2824 = vmatprep.subr.bf16.mxu0 0
    %2825 = vmatpush1.bf16.msra.mxu0 0
    %2826 = vmatprep.subr.bf16.mxu0 0
    %2827 = vmatpush1.bf16.msra.mxu0 0
    %2828 = vmatprep.subr.bf16.mxu0 0
    %2829 = vmatpush1.bf16.msra.mxu0 0
    %2830 = vmatprep.subr.bf16.mxu0 0
    %2831 = vmatpush1.bf16.msra.mxu0 0
    %2832 = vmatprep.subr.bf16.mxu0 0
    %2833 = vmatpush1.bf16.msra.mxu0 0
    %2834 = vmatprep.subr.bf16.mxu0 0
    %2835 = vmatpush1.bf16.msra.mxu0 0
    %2836 = vmatprep.subr.bf16.mxu0 0
    %2837 = vmatpush1.bf16.msra.mxu0 0
    %2838 = vmatprep.subr.bf16.mxu0 0
    %2839 = vmatpush1.bf16.msra.mxu0 0
    %2840 = vmatprep.subr.bf16.mxu0 0
    %2841 = vmatpush1.bf16.msra.mxu0 0
    %2842 = vmatprep.subr.bf16.mxu0 0
    %2843 = vmatpush1.bf16.msra.mxu0 0
    %2844 = vmatprep.subr.bf16.mxu0 0
    %2845 = vmatpush1.bf16.msra.mxu0 0
    %2846 = vmatprep.subr.bf16.mxu0 0
    %2847 = vmatpush1.bf16.msra.mxu0 0
    %2848 = vmatprep.subr.bf16.mxu0 0
    %2849 = vmatpush1.bf16.msra.mxu0 0
    %2850 = vmatprep.subr.bf16.mxu0 0
    %2851 = vmatpush1.bf16.msra.mxu0 0
    %2852 = vmatprep.mubr.bf16.mxu0 0
    %2853 = vmatmul.mubr.bf16.gmra.mrb[0].mxu0 %v2818
    %v2854 = vpop.f32.mrb[0].mxu0
    %v2855 = vadd.f32 %v483, %v2854
    %v2856 = vpop.f32.mrb[0].mxu0
    %v2857 = vpop.f32.mrb[0].mxu0
    %v2858 = vpop.f32.mrb[0].mxu0
    %2859 = vdwg.mxu0
    %2860 = vmatprep.subr.bf16.mxu0 0
    %2861 = vmatpush1.bf16.msra.mxu0 %v542
    %2862 = vmatprep.subr.bf16.mxu0 0
    %2863 = vmatpush1.bf16.msra.mxu0 %v543
    %2864 = vmatprep.subr.bf16.mxu0 0
    %2865 = vmatpush1.bf16.msra.mxu0 0
    %2866 = vmatprep.subr.bf16.mxu0 0
    %2867 = vmatpush1.bf16.msra.mxu0 0
    %2868 = vmatprep.subr.bf16.mxu0 0
    %2869 = vmatpush1.bf16.msra.mxu0 0
    %2870 = vmatprep.subr.bf16.mxu0 0
    %2871 = vmatpush1.bf16.msra.mxu0 0
    %2872 = vmatprep.subr.bf16.mxu0 0
    %2873 = vmatpush1.bf16.msra.mxu0 0
    %2874 = vmatprep.subr.bf16.mxu0 0
    %2875 = vmatpush1.bf16.msra.mxu0 0
    %2876 = vmatprep.subr.bf16.mxu0 0
    %2877 = vmatpush1.bf16.msra.mxu0 0
    %2878 = vmatprep.subr.bf16.mxu0 0
    %2879 = vmatpush1.bf16.msra.mxu0 0
    %2880 = vmatprep.subr.bf16.mxu0 0
    %2881 = vmatpush1.bf16.msra.mxu0 0
    %2882 = vmatprep.subr.bf16.mxu0 0
    %2883 = vmatpush1.bf16.msra.mxu0 0
    %2884 = vmatprep.subr.bf16.mxu0 0
    %2885 = vmatpush1.bf16.msra.mxu0 0
    %2886 = vmatprep.subr.bf16.mxu0 0
    %2887 = vmatpush1.bf16.msra.mxu0 0
    %2888 = vmatprep.subr.bf16.mxu0 0
    %2889 = vmatpush1.bf16.msra.mxu0 0
    %2890 = vmatprep.subr.bf16.mxu0 0
    %2891 = vmatpush1.bf16.msra.mxu0 0
    %2892 = vmatprep.mubr.bf16.mxu0 0
    %2893 = vmatmul.mubr.bf16.gmra.mrb[0].mxu0 %v2471
    %v2894 = vpop.f32.mrb[0].mxu0
    %v2895 = vadd.f32 0.0, %v2894
    %v2896 = vpop.f32.mrb[0].mxu0
    %v2897 = vpop.f32.mrb[0].mxu0
    %v2898 = vpop.f32.mrb[0].mxu0
    %2899 = vdwg.mxu0
    %v2900 = vadd.f32 %v2855, %v2895
    %v2901 = vxor.u32 %v2900, 2147483648
    %v2902 = vmul.f32 %v2901, 1.442695
    %v2903 = vpow.pop %v2902
    %v2904 = vadd.f32 %v2903, 1.0
    %v2905 = vrcp.pop %v2904
    %v2906 = vmul.f32 1.0, %v2905
    %v2907 = vtanh.pop %v2900
    %v2908 = vmul.f32 %v2906, %v2459
    %2910 = vrot.lane.b32.xlu0 %v2907, 64
    %v2911 = vpop.permute.xlu0 %2910
    %v2913 = vmul.f32 %v2906, %v2911
    %2915 = vrot.lane.b32.xlu0 %v2913, 32
    %v2916 = vpop.permute.xlu0 %2915
    %v2918 = vadd.f32 %v2908, %v2916
    %v2919 = vtanh.pop %v2918
    %2921 = vrot.lane.b32.xlu0 %v2919, 64
    %v2922 = vpop.permute.xlu0 %2921
    %v2924 = vmul.f32 %v2906, %v2922
    %v2925 = vpack.c.bf16 %v2924, %v2924
    %2927 = vrot.lane.b32.xlu0 %v2925, 32
    %v2928 = vpop.permute.xlu0 %2927
    %v2930 = vsel %vm202, %v2928, 0
    %2932 = vmatprep.subr.bf16.mxu0 0
    %2933 = vmatpush1.bf16.msra.mxu0 %v629
    %2934 = vmatprep.subr.bf16.mxu0 0
    %2935 = vmatpush1.bf16.msra.mxu0 %v630
    %2936 = vmatprep.subr.bf16.mxu0 0
    %2937 = vmatpush1.bf16.msra.mxu0 0
    %2938 = vmatprep.subr.bf16.mxu0 0
    %2939 = vmatpush1.bf16.msra.mxu0 0
    %2940 = vmatprep.subr.bf16.mxu0 0
    %2941 = vmatpush1.bf16.msra.mxu0 0
    %2942 = vmatprep.subr.bf16.mxu0 0
    %2943 = vmatpush1.bf16.msra.mxu0 0
    %2944 = vmatprep.subr.bf16.mxu0 0
    %2945 = vmatpush1.bf16.msra.mxu0 0
    %2946 = vmatprep.subr.bf16.mxu0 0
    %2947 = vmatpush1.bf16.msra.mxu0 0
    %2948 = vmatprep.subr.bf16.mxu0 0
    %2949 = vmatpush1.bf16.msra.mxu0 0
    %2950 = vmatprep.subr.bf16.mxu0 0
    %2951 = vmatpush1.bf16.msra.mxu0 0
    %2952 = vmatprep.subr.bf16.mxu0 0
    %2953 = vmatpush1.bf16.msra.mxu0 0
    %2954 = vmatprep.subr.bf16.mxu0 0
    %2955 = vmatpush1.bf16.msra.mxu0 0
    %2956 = vmatprep.subr.bf16.mxu0 0
    %2957 = vmatpush1.bf16.msra.mxu0 0
    %2958 = vmatprep.subr.bf16.mxu0 0
    %2959 = vmatpush1.bf16.msra.mxu0 0
    %2960 = vmatprep.subr.bf16.mxu0 0
    %2961 = vmatpush1.bf16.msra.mxu0 0
    %2962 = vmatprep.subr.bf16.mxu0 0
    %2963 = vmatpush1.bf16.msra.mxu0 0
    %2964 = vmatprep.mubr.bf16.mxu0 0
    %2965 = vmatmul.mubr.bf16.gmra.mrb[0].mxu0 %v2930
    %v2966 = vpop.f32.mrb[0].mxu0
    %v2967 = vadd.f32 %v616, %v2966
    %v2968 = vpop.f32.mrb[0].mxu0
    %v2969 = vpop.f32.mrb[0].mxu0
    %v2970 = vpop.f32.mrb[0].mxu0
    %2971 = vdwg.mxu0
    %v2972 = vpack.c.bf16 %v2584, %v2584
    %2974 = vrot.lane.b32.xlu0 %v2972, 32
    %v2975 = vpop.permute.xlu0 %2974
    %v2977 = vsel %vm202, %v2975, 0
    %2979 = vmatprep.subr.bf16.mxu0 0
    %2980 = vmatpush1.bf16.msra.mxu0 %v684
    %2981 = vmatprep.subr.bf16.mxu0 0
    %2982 = vmatpush1.bf16.msra.mxu0 %v685
    %2983 = vmatprep.subr.bf16.mxu0 0
    %2984 = vmatpush1.bf16.msra.mxu0 0
    %2985 = vmatprep.subr.bf16.mxu0 0
    %2986 = vmatpush1.bf16.msra.mxu0 0
    %2987 = vmatprep.subr.bf16.mxu0 0
    %2988 = vmatpush1.bf16.msra.mxu0 0
    %2989 = vmatprep.subr.bf16.mxu0 0
    %2990 = vmatpush1.bf16.msra.mxu0 0
    %2991 = vmatprep.subr.bf16.mxu0 0
    %2992 = vmatpush1.bf16.msra.mxu0 0
    %2993 = vmatprep.subr.bf16.mxu0 0
    %2994 = vmatpush1.bf16.msra.mxu0 0
    %2995 = vmatprep.subr.bf16.mxu0 0
    %2996 = vmatpush1.bf16.msra.mxu0 0
    %2997 = vmatprep.subr.bf16.mxu0 0
    %2998 = vmatpush1.bf16.msra.mxu0 0
    %2999 = vmatprep.subr.bf16.mxu0 0
    %3000 = vmatpush1.bf16.msra.mxu0 0
    %3001 = vmatprep.subr.bf16.mxu0 0
    %3002 = vmatpush1.bf16.msra.mxu0 0
    %3003 = vmatprep.subr.bf16.mxu0 0
    %3004 = vmatpush1.bf16.msra.mxu0 0
    %3005 = vmatprep.subr.bf16.mxu0 0
    %3006 = vmatpush1.bf16.msra.mxu0 0
    %3007 = vmatprep.subr.bf16.mxu0 0
    %3008 = vmatpush1.bf16.msra.mxu0 0
    %3009 = vmatprep.subr.bf16.mxu0 0
    %3010 = vmatpush1.bf16.msra.mxu0 0
    %3011 = vmatprep.mubr.bf16.mxu0 0
    %3012 = vmatmul.mubr.bf16.gmra.mrb[0].mxu0 %v2977
    %v3013 = vpop.f32.mrb[0].mxu0
    %v3014 = vadd.f32 0.0, %v3013
    %v3015 = vpop.f32.mrb[0].mxu0
    %v3016 = vpop.f32.mrb[0].mxu0
    %v3017 = vpop.f32.mrb[0].mxu0
    %3018 = vdwg.mxu0
    %v3019 = vadd.f32 %v2967, %v3014
    %v3020 = vxor.u32 %v3019, 2147483648
    %v3021 = vmul.f32 %v3020, 1.442695
    %v3022 = vpow.pop %v3021
    %v3023 = vadd.f32 %v3022, 1.0
    %v3024 = vrcp.pop %v3023
    %v3025 = vmul.f32 1.0, %v3024
    %v3026 = vtanh.pop %v3019
    %v3027 = vmul.f32 %v3025, %v2578
    %3029 = vrot.lane.b32.xlu0 %v3026, 64
    %v3030 = vpop.permute.xlu0 %3029
    %v3032 = vmul.f32 %v3025, %v3030
    %3034 = vrot.lane.b32.xlu0 %v3032, 32
    %v3035 = vpop.permute.xlu0 %3034
    %v3037 = vadd.f32 %v3027, %v3035
    %v3038 = vtanh.pop %v3037
    %3040 = vrot.lane.b32.xlu0 %v3038, 64
    %v3041 = vpop.permute.xlu0 %3040
    %v3043 = vmul.f32 %v3025, %v3041
    %3044 = vmatprep.subr.bf16.mxu0 0
    %3045 = vmatpush1.bf16.msra.mxu0 %v198
    %3046 = vmatprep.subr.bf16.mxu0 0
    %3047 = vmatpush1.bf16.msra.mxu0 %v199
    %3048 = vmatprep.subr.bf16.mxu0 0
    %3049 = vmatpush1.bf16.msra.mxu0 0
    %3050 = vmatprep.subr.bf16.mxu0 0
    %3051 = vmatpush1.bf16.msra.mxu0 0
    %3052 = vmatprep.subr.bf16.mxu0 0
    %3053 = vmatpush1.bf16.msra.mxu0 0
    %3054 = vmatprep.subr.bf16.mxu0 0
    %3055 = vmatpush1.bf16.msra.mxu0 0
    %3056 = vmatprep.subr.bf16.mxu0 0
    %3057 = vmatpush1.bf16.msra.mxu0 0
    %3058 = vmatprep.subr.bf16.mxu0 0
    %3059 = vmatpush1.bf16.msra.mxu0 0
    %3060 = vmatprep.subr.bf16.mxu0 0
    %3061 = vmatpush1.bf16.msra.mxu0 0
    %3062 = vmatprep.subr.bf16.mxu0 0
    %3063 = vmatpush1.bf16.msra.mxu0 0
    %3064 = vmatprep.subr.bf16.mxu0 0
    %3065 = vmatpush1.bf16.msra.mxu0 0
    %3066 = vmatprep.subr.bf16.mxu0 0
    %3067 = vmatpush1.bf16.msra.mxu0 0
    %3068 = vmatprep.subr.bf16.mxu0 0
    %3069 = vmatpush1.bf16.msra.mxu0 0
    %3070 = vmatprep.subr.bf16.mxu0 0
    %3071 = vmatpush1.bf16.msra.mxu0 0
    %3072 = vmatprep.subr.bf16.mxu0 0
    %3073 = vmatpush1.bf16.msra.mxu0 0
    %3074 = vmatprep.subr.bf16.mxu0 0
    %3075 = vmatpush1.bf16.msra.mxu0 0
    %3076 = vmatprep.mubr.bf16.mxu0 0
    %3077 = vmatmul.mubr.bf16.gmra.mrb[0].mxu0 %v2662
    %v3078 = vpop.f32.mrb[0].mxu0
    %v3079 = vadd.f32 0.0, %v3078
    %v3080 = vpop.f32.mrb[0].mxu0
    %v3081 = vpop.f32.mrb[0].mxu0
    %v3082 = vpop.f32.mrb[0].mxu0
    %3083 = vdwg.mxu0
    %v3085 = vrot.slane %v3079, 4
    %v3087 = vadd.f32 %v187, %v3085
    %v3088 = vxor.u32 %v3087, 2147483648
    %v3089 = vmul.f32 %v3088, 1.442695
    %v3090 = vpow.pop %v3089
    %v3091 = vadd.f32 %v3090, 1.0
    %v3092 = vrcp.pop %v3091
    %v3093 = vmul.f32 1.0, %v3092
    %v3094 = vtanh.pop %v3087
    %v3096 = vrot.slane %v2649, 6
    %v3098 = vmul.f32 %v3093, %v3096
    %3100 = vrot.lane.b32.xlu0 %v3094, 64
    %v3101 = vpop.permute.xlu0 %3100
    %v3103 = vmul.f32 %v3093, %v3101
    %3105 = vrot.lane.b32.xlu0 %v3103, 32
    %v3106 = vpop.permute.xlu0 %3105
    %v3108 = vadd.f32 %v3098, %v3106
    %v3109 = vtanh.pop %v3108
    %3111 = vrot.lane.b32.xlu0 %v3109, 64
    %v3112 = vpop.permute.xlu0 %3111
    %v3114 = vmul.f32 %v3093, %v3112
    %v3115 = vpack.c.bf16 %v3114, %v3114
    %v3117 = vrot.slane %v3115, 2
    %3118 = vrot.lane.b32.xlu0 %v3117, 32
    %v3119 = vpop.permute.xlu0 %3118
    %v3121 = vsel %vm202, %v3119, 0
    %3123 = vmatprep.subr.bf16.mxu0 0
    %3124 = vmatpush1.bf16.msra.mxu0 %v289
    %3125 = vmatprep.subr.bf16.mxu0 0
    %3126 = vmatpush1.bf16.msra.mxu0 %v290
    %3127 = vmatprep.subr.bf16.mxu0 0
    %3128 = vmatpush1.bf16.msra.mxu0 0
    %3129 = vmatprep.subr.bf16.mxu0 0
    %3130 = vmatpush1.bf16.msra.mxu0 0
    %3131 = vmatprep.subr.bf16.mxu0 0
    %3132 = vmatpush1.bf16.msra.mxu0 0
    %3133 = vmatprep.subr.bf16.mxu0 0
    %3134 = vmatpush1.bf16.msra.mxu0 0
    %3135 = vmatprep.subr.bf16.mxu0 0
    %3136 = vmatpush1.bf16.msra.mxu0 0
    %3137 = vmatprep.subr.bf16.mxu0 0
    %3138 = vmatpush1.bf16.msra.mxu0 0
    %3139 = vmatprep.subr.bf16.mxu0 0
    %3140 = vmatpush1.bf16.msra.mxu0 0
    %3141 = vmatprep.subr.bf16.mxu0 0
    %3142 = vmatpush1.bf16.msra.mxu0 0
    %3143 = vmatprep.subr.bf16.mxu0 0
    %3144 = vmatpush1.bf16.msra.mxu0 0
    %3145 = vmatprep.subr.bf16.mxu0 0
    %3146 = vmatpush1.bf16.msra.mxu0 0
    %3147 = vmatprep.subr.bf16.mxu0 0
    %3148 = vmatpush1.bf16.msra.mxu0 0
    %3149 = vmatprep.subr.bf16.mxu0 0
    %3150 = vmatpush1.bf16.msra.mxu0 0
    %3151 = vmatprep.subr.bf16.mxu0 0
    %3152 = vmatpush1.bf16.msra.mxu0 0
    %3153 = vmatprep.subr.bf16.mxu0 0
    %3154 = vmatpush1.bf16.msra.mxu0 0
    %3155 = vmatprep.mubr.bf16.mxu0 0
    %3156 = vmatmul.mubr.bf16.gmra.mrb[0].mxu0 %v3121
    %v3157 = vpop.f32.mrb[0].mxu0
    %v3158 = vadd.f32 %v276, %v3157
    %v3159 = vpop.f32.mrb[0].mxu0
    %v3160 = vpop.f32.mrb[0].mxu0
    %v3161 = vpop.f32.mrb[0].mxu0
    %3162 = vdwg.mxu0
    %3163 = vmatprep.subr.bf16.mxu0 0
    %3164 = vmatpush1.bf16.msra.mxu0 %v344
    %3165 = vmatprep.subr.bf16.mxu0 0
    %3166 = vmatpush1.bf16.msra.mxu0 %v345
    %3167 = vmatprep.subr.bf16.mxu0 0
    %3168 = vmatpush1.bf16.msra.mxu0 0
    %3169 = vmatprep.subr.bf16.mxu0 0
    %3170 = vmatpush1.bf16.msra.mxu0 0
    %3171 = vmatprep.subr.bf16.mxu0 0
    %3172 = vmatpush1.bf16.msra.mxu0 0
    %3173 = vmatprep.subr.bf16.mxu0 0
    %3174 = vmatpush1.bf16.msra.mxu0 0
    %3175 = vmatprep.subr.bf16.mxu0 0
    %3176 = vmatpush1.bf16.msra.mxu0 0
    %3177 = vmatprep.subr.bf16.mxu0 0
    %3178 = vmatpush1.bf16.msra.mxu0 0
    %3179 = vmatprep.subr.bf16.mxu0 0
    %3180 = vmatpush1.bf16.msra.mxu0 0
    %3181 = vmatprep.subr.bf16.mxu0 0
    %3182 = vmatpush1.bf16.msra.mxu0 0
    %3183 = vmatprep.subr.bf16.mxu0 0
    %3184 = vmatpush1.bf16.msra.mxu0 0
    %3185 = vmatprep.subr.bf16.mxu0 0
    %3186 = vmatpush1.bf16.msra.mxu0 0
    %3187 = vmatprep.subr.bf16.mxu0 0
    %3188 = vmatpush1.bf16.msra.mxu0 0
    %3189 = vmatprep.subr.bf16.mxu0 0
    %3190 = vmatpush1.bf16.msra.mxu0 0
    %3191 = vmatprep.subr.bf16.mxu0 0
    %3192 = vmatpush1.bf16.msra.mxu0 0
    %3193 = vmatprep.subr.bf16.mxu0 0
    %3194 = vmatpush1.bf16.msra.mxu0 0
    %3195 = vmatprep.mubr.bf16.mxu0 0
    %3196 = vmatmul.mubr.bf16.gmra.mrb[0].mxu0 %v2774
    %v3197 = vpop.f32.mrb[0].mxu0
    %v3198 = vadd.f32 0.0, %v3197
    %v3199 = vpop.f32.mrb[0].mxu0
    %v3200 = vpop.f32.mrb[0].mxu0
    %v3201 = vpop.f32.mrb[0].mxu0
    %3202 = vdwg.mxu0
    %v3203 = vadd.f32 %v3158, %v3198
    %v3204 = vxor.u32 %v3203, 2147483648
    %v3205 = vmul.f32 %v3204, 1.442695
    %v3206 = vpow.pop %v3205
    %v3207 = vadd.f32 %v3206, 1.0
    %v3208 = vrcp.pop %v3207
    %v3209 = vmul.f32 1.0, %v3208
    %v3210 = vtanh.pop %v3203
    %v3211 = vmul.f32 %v3209, %v2762
    %3213 = vrot.lane.b32.xlu0 %v3210, 64
    %v3214 = vpop.permute.xlu0 %3213
    %v3216 = vmul.f32 %v3209, %v3214
    %3218 = vrot.lane.b32.xlu0 %v3216, 32
    %v3219 = vpop.permute.xlu0 %3218
    %v3221 = vadd.f32 %v3211, %v3219
    %v3222 = vtanh.pop %v3221
    %3224 = vrot.lane.b32.xlu0 %v3222, 64
    %v3225 = vpop.permute.xlu0 %3224
    %v3227 = vmul.f32 %v3209, %v3225
    %v3228 = vpack.c.bf16 %v3227, %v3227
    %3230 = vrot.lane.b32.xlu0 %v3228, 32
    %v3231 = vpop.permute.xlu0 %3230
    %v3233 = vsel %vm202, %v3231, 0
    %3235 = vmatprep.subr.bf16.mxu0 0
    %3236 = vmatpush1.bf16.msra.mxu0 %v431
    %3237 = vmatprep.subr.bf16.mxu0 0
    %3238 = vmatpush1.bf16.msra.mxu0 %v432
    %3239 = vmatprep.subr.bf16.mxu0 0
    %3240 = vmatpush1.bf16.msra.mxu0 0
    %3241 = vmatprep.subr.bf16.mxu0 0
    %3242 = vmatpush1.bf16.msra.mxu0 0
    %3243 = vmatprep.subr.bf16.mxu0 0
    %3244 = vmatpush1.bf16.msra.mxu0 0
    %3245 = vmatprep.subr.bf16.mxu0 0
    %3246 = vmatpush1.bf16.msra.mxu0 0
    %3247 = vmatprep.subr.bf16.mxu0 0
    %3248 = vmatpush1.bf16.msra.mxu0 0
    %3249 = vmatprep.subr.bf16.mxu0 0
    %3250 = vmatpush1.bf16.msra.mxu0 0
    %3251 = vmatprep.subr.bf16.mxu0 0
    %3252 = vmatpush1.bf16.msra.mxu0 0
    %3253 = vmatprep.subr.bf16.mxu0 0
    %3254 = vmatpush1.bf16.msra.mxu0 0
    %3255 = vmatprep.subr.bf16.mxu0 0
    %3256 = vmatpush1.bf16.msra.mxu0 0
    %3257 = vmatprep.subr.bf16.mxu0 0
    %3258 = vmatpush1.bf16.msra.mxu0 0
    %3259 = vmatprep.subr.bf16.mxu0 0
    %3260 = vmatpush1.bf16.msra.mxu0 0
    %3261 = vmatprep.subr.bf16.mxu0 0
    %3262 = vmatpush1.bf16.msra.mxu0 0
    %3263 = vmatprep.subr.bf16.mxu0 0
    %3264 = vmatpush1.bf16.msra.mxu0 0
    %3265 = vmatprep.subr.bf16.mxu0 0
    %3266 = vmatpush1.bf16.msra.mxu0 0
    %3267 = vmatprep.mubr.bf16.mxu0 0
    %3268 = vmatmul.mubr.bf16.gmra.mrb[0].mxu0 %v3233
    %v3269 = vpop.f32.mrb[0].mxu0
    %v3270 = vadd.f32 %v418, %v3269
    %v3271 = vpop.f32.mrb[0].mxu0
    %v3272 = vpop.f32.mrb[0].mxu0
    %v3273 = vpop.f32.mrb[0].mxu0
    %3274 = vdwg.mxu0
    %v3275 = vpack.c.bf16 %v3270, %v3270
    %v3277 = vsel %vm145, %v3275, 0
    %3279 = vmatprep.subr.bf16.mxu0 0
    %3280 = vmatpush1.bf16.msra.mxu0 %v489
    %3281 = vmatprep.subr.bf16.mxu0 0
    %3282 = vmatpush1.bf16.msra.mxu0 0
    %3283 = vmatprep.subr.bf16.mxu0 0
    %3284 = vmatpush1.bf16.msra.mxu0 0
    %3285 = vmatprep.subr.bf16.mxu0 0
    %3286 = vmatpush1.bf16.msra.mxu0 0
    %3287 = vmatprep.subr.bf16.mxu0 0
    %3288 = vmatpush1.bf16.msra.mxu0 0
    %3289 = vmatprep.subr.bf16.mxu0 0
    %3290 = vmatpush1.bf16.msra.mxu0 0
    %3291 = vmatprep.subr.bf16.mxu0 0
    %3292 = vmatpush1.bf16.msra.mxu0 0
    %3293 = vmatprep.subr.bf16.mxu0 0
    %3294 = vmatpush1.bf16.msra.mxu0 0
    %3295 = vmatprep.subr.bf16.mxu0 0
    %3296 = vmatpush1.bf16.msra.mxu0 0
    %3297 = vmatprep.subr.bf16.mxu0 0
    %3298 = vmatpush1.bf16.msra.mxu0 0
    %3299 = vmatprep.subr.bf16.mxu0 0
    %3300 = vmatpush1.bf16.msra.mxu0 0
    %3301 = vmatprep.subr.bf16.mxu0 0
    %3302 = vmatpush1.bf16.msra.mxu0 0
    %3303 = vmatprep.subr.bf16.mxu0 0
    %3304 = vmatpush1.bf16.msra.mxu0 0
    %3305 = vmatprep.subr.bf16.mxu0 0
    %3306 = vmatpush1.bf16.msra.mxu0 0
    %3307 = vmatprep.subr.bf16.mxu0 0
    %3308 = vmatpush1.bf16.msra.mxu0 0
    %3309 = vmatprep.subr.bf16.mxu0 0
    %3310 = vmatpush1.bf16.msra.mxu0 0
    %3311 = vmatprep.mubr.bf16.mxu0 0
    %3312 = vmatmul.mubr.bf16.gmra.mrb[0].mxu0 %v3277
    %v3313 = vpop.f32.mrb[0].mxu0
    %v3314 = vadd.f32 %v483, %v3313
    %v3315 = vpop.f32.mrb[0].mxu0
    %v3316 = vpop.f32.mrb[0].mxu0
    %v3317 = vpop.f32.mrb[0].mxu0
    %3318 = vdwg.mxu0
    %3319 = vmatprep.subr.bf16.mxu0 0
    %3320 = vmatpush1.bf16.msra.mxu0 %v542
    %3321 = vmatprep.subr.bf16.mxu0 0
    %3322 = vmatpush1.bf16.msra.mxu0 %v543
    %3323 = vmatprep.subr.bf16.mxu0 0
    %3324 = vmatpush1.bf16.msra.mxu0 0
    %3325 = vmatprep.subr.bf16.mxu0 0
    %3326 = vmatpush1.bf16.msra.mxu0 0
    %3327 = vmatprep.subr.bf16.mxu0 0
    %3328 = vmatpush1.bf16.msra.mxu0 0
    %3329 = vmatprep.subr.bf16.mxu0 0
    %3330 = vmatpush1.bf16.msra.mxu0 0
    %3331 = vmatprep.subr.bf16.mxu0 0
    %3332 = vmatpush1.bf16.msra.mxu0 0
    %3333 = vmatprep.subr.bf16.mxu0 0
    %3334 = vmatpush1.bf16.msra.mxu0 0
    %3335 = vmatprep.subr.bf16.mxu0 0
    %3336 = vmatpush1.bf16.msra.mxu0 0
    %3337 = vmatprep.subr.bf16.mxu0 0
    %3338 = vmatpush1.bf16.msra.mxu0 0
    %3339 = vmatprep.subr.bf16.mxu0 0
    %3340 = vmatpush1.bf16.msra.mxu0 0
    %3341 = vmatprep.subr.bf16.mxu0 0
    %3342 = vmatpush1.bf16.msra.mxu0 0
    %3343 = vmatprep.subr.bf16.mxu0 0
    %3344 = vmatpush1.bf16.msra.mxu0 0
    %3345 = vmatprep.subr.bf16.mxu0 0
    %3346 = vmatpush1.bf16.msra.mxu0 0
    %3347 = vmatprep.subr.bf16.mxu0 0
    %3348 = vmatpush1.bf16.msra.mxu0 0
    %3349 = vmatprep.subr.bf16.mxu0 0
    %3350 = vmatpush1.bf16.msra.mxu0 0
    %3351 = vmatprep.mubr.bf16.mxu0 0
    %3352 = vmatmul.mubr.bf16.gmra.mrb[0].mxu0 %v2930
    %v3353 = vpop.f32.mrb[0].mxu0
    %v3354 = vadd.f32 0.0, %v3353
    %v3355 = vpop.f32.mrb[0].mxu0
    %v3356 = vpop.f32.mrb[0].mxu0
    %v3357 = vpop.f32.mrb[0].mxu0
    %3358 = vdwg.mxu0
    %v3359 = vadd.f32 %v3314, %v3354
    %v3360 = vxor.u32 %v3359, 2147483648
    %v3361 = vmul.f32 %v3360, 1.442695
    %v3362 = vpow.pop %v3361
    %v3363 = vadd.f32 %v3362, 1.0
    %v3364 = vrcp.pop %v3363
    %v3365 = vmul.f32 1.0, %v3364
    %v3366 = vtanh.pop %v3359
    %v3367 = vmul.f32 %v3365, %v2918
    %3369 = vrot.lane.b32.xlu0 %v3366, 64
    %v3370 = vpop.permute.xlu0 %3369
    %v3372 = vmul.f32 %v3365, %v3370
    %3374 = vrot.lane.b32.xlu0 %v3372, 32
    %v3375 = vpop.permute.xlu0 %3374
    %v3377 = vadd.f32 %v3367, %v3375
    %v3378 = vtanh.pop %v3377
    %3380 = vrot.lane.b32.xlu0 %v3378, 64
    %v3381 = vpop.permute.xlu0 %3380
    %v3383 = vmul.f32 %v3365, %v3381
    %v3384 = vpack.c.bf16 %v3383, %v3383
    %3386 = vrot.lane.b32.xlu0 %v3384, 32
    %v3387 = vpop.permute.xlu0 %3386
    %v3389 = vsel %vm202, %v3387, 0
    %3391 = vmatprep.subr.bf16.mxu0 0
    %3392 = vmatpush1.bf16.msra.mxu0 %v629
    %3393 = vmatprep.subr.bf16.mxu0 0
    %3394 = vmatpush1.bf16.msra.mxu0 %v630
    %3395 = vmatprep.subr.bf16.mxu0 0
    %3396 = vmatpush1.bf16.msra.mxu0 0
    %3397 = vmatprep.subr.bf16.mxu0 0
    %3398 = vmatpush1.bf16.msra.mxu0 0
    %3399 = vmatprep.subr.bf16.mxu0 0
    %3400 = vmatpush1.bf16.msra.mxu0 0
    %3401 = vmatprep.subr.bf16.mxu0 0
    %3402 = vmatpush1.bf16.msra.mxu0 0
    %3403 = vmatprep.subr.bf16.mxu0 0
    %3404 = vmatpush1.bf16.msra.mxu0 0
    %3405 = vmatprep.subr.bf16.mxu0 0
    %3406 = vmatpush1.bf16.msra.mxu0 0
    %3407 = vmatprep.subr.bf16.mxu0 0
    %3408 = vmatpush1.bf16.msra.mxu0 0
    %3409 = vmatprep.subr.bf16.mxu0 0
    %3410 = vmatpush1.bf16.msra.mxu0 0
    %3411 = vmatprep.subr.bf16.mxu0 0
    %3412 = vmatpush1.bf16.msra.mxu0 0
    %3413 = vmatprep.subr.bf16.mxu0 0
    %3414 = vmatpush1.bf16.msra.mxu0 0
    %3415 = vmatprep.subr.bf16.mxu0 0
    %3416 = vmatpush1.bf16.msra.mxu0 0
    %3417 = vmatprep.subr.bf16.mxu0 0
    %3418 = vmatpush1.bf16.msra.mxu0 0
    %3419 = vmatprep.subr.bf16.mxu0 0
    %3420 = vmatpush1.bf16.msra.mxu0 0
    %3421 = vmatprep.subr.bf16.mxu0 0
    %3422 = vmatpush1.bf16.msra.mxu0 0
    %3423 = vmatprep.mubr.bf16.mxu0 0
    %3424 = vmatmul.mubr.bf16.gmra.mrb[0].mxu0 %v3389
    %v3425 = vpop.f32.mrb[0].mxu0
    %v3426 = vadd.f32 %v616, %v3425
    %v3427 = vpop.f32.mrb[0].mxu0
    %v3428 = vpop.f32.mrb[0].mxu0
    %v3429 = vpop.f32.mrb[0].mxu0
    %3430 = vdwg.mxu0
    %v3431 = vpack.c.bf16 %v3043, %v3043
    %3433 = vrot.lane.b32.xlu0 %v3431, 32
    %v3434 = vpop.permute.xlu0 %3433
    %v3436 = vsel %vm202, %v3434, 0
    %3438 = vmatprep.subr.bf16.mxu0 0
    %3439 = vmatpush1.bf16.msra.mxu0 %v684
    %3440 = vmatprep.subr.bf16.mxu0 0
    %3441 = vmatpush1.bf16.msra.mxu0 %v685
    %3442 = vmatprep.subr.bf16.mxu0 0
    %3443 = vmatpush1.bf16.msra.mxu0 0
    %3444 = vmatprep.subr.bf16.mxu0 0
    %3445 = vmatpush1.bf16.msra.mxu0 0
    %3446 = vmatprep.subr.bf16.mxu0 0
    %3447 = vmatpush1.bf16.msra.mxu0 0
    %3448 = vmatprep.subr.bf16.mxu0 0
    %3449 = vmatpush1.bf16.msra.mxu0 0
    %3450 = vmatprep.subr.bf16.mxu0 0
    %3451 = vmatpush1.bf16.msra.mxu0 0
    %3452 = vmatprep.subr.bf16.mxu0 0
    %3453 = vmatpush1.bf16.msra.mxu0 0
    %3454 = vmatprep.subr.bf16.mxu0 0
    %3455 = vmatpush1.bf16.msra.mxu0 0
    %3456 = vmatprep.subr.bf16.mxu0 0
    %3457 = vmatpush1.bf16.msra.mxu0 0
    %3458 = vmatprep.subr.bf16.mxu0 0
    %3459 = vmatpush1.bf16.msra.mxu0 0
    %3460 = vmatprep.subr.bf16.mxu0 0
    %3461 = vmatpush1.bf16.msra.mxu0 0
    %3462 = vmatprep.subr.bf16.mxu0 0
    %3463 = vmatpush1.bf16.msra.mxu0 0
    %3464 = vmatprep.subr.bf16.mxu0 0
    %3465 = vmatpush1.bf16.msra.mxu0 0
    %3466 = vmatprep.subr.bf16.mxu0 0
    %3467 = vmatpush1.bf16.msra.mxu0 0
    %3468 = vmatprep.subr.bf16.mxu0 0
    %3469 = vmatpush1.bf16.msra.mxu0 0
    %3470 = vmatprep.mubr.bf16.mxu0 0
    %3471 = vmatmul.mubr.bf16.gmra.mrb[0].mxu0 %v3436
    %v3472 = vpop.f32.mrb[0].mxu0
    %v3473 = vadd.f32 0.0, %v3472
    %v3474 = vpop.f32.mrb[0].mxu0
    %v3475 = vpop.f32.mrb[0].mxu0
    %v3476 = vpop.f32.mrb[0].mxu0
    %3477 = vdwg.mxu0
    %v3478 = vadd.f32 %v3426, %v3473
    %v3479 = vxor.u32 %v3478, 2147483648
    %v3480 = vmul.f32 %v3479, 1.442695
    %v3481 = vpow.pop %v3480
    %v3482 = vadd.f32 %v3481, 1.0
    %v3483 = vrcp.pop %v3482
    %v3484 = vmul.f32 1.0, %v3483
    %v3485 = vtanh.pop %v3478
    %v3486 = vmul.f32 %v3484, %v3037
    %3488 = vrot.lane.b32.xlu0 %v3485, 64
    %v3489 = vpop.permute.xlu0 %3488
    %v3491 = vmul.f32 %v3484, %v3489
    %3493 = vrot.lane.b32.xlu0 %v3491, 32
    %v3494 = vpop.permute.xlu0 %3493
    %v3496 = vadd.f32 %v3486, %v3494
    %v3497 = vtanh.pop %v3496
    %3499 = vrot.lane.b32.xlu0 %v3497, 64
    %v3500 = vpop.permute.xlu0 %3499
    %v3502 = vmul.f32 %v3484, %v3500
    %3503 = vmatprep.subr.bf16.mxu0 0
    %3504 = vmatpush1.bf16.msra.mxu0 %v198
    %3505 = vmatprep.subr.bf16.mxu0 0
    %3506 = vmatpush1.bf16.msra.mxu0 %v199
    %3507 = vmatprep.subr.bf16.mxu0 0
    %3508 = vmatpush1.bf16.msra.mxu0 0
    %3509 = vmatprep.subr.bf16.mxu0 0
    %3510 = vmatpush1.bf16.msra.mxu0 0
    %3511 = vmatprep.subr.bf16.mxu0 0
    %3512 = vmatpush1.bf16.msra.mxu0 0
    %3513 = vmatprep.subr.bf16.mxu0 0
    %3514 = vmatpush1.bf16.msra.mxu0 0
    %3515 = vmatprep.subr.bf16.mxu0 0
    %3516 = vmatpush1.bf16.msra.mxu0 0
    %3517 = vmatprep.subr.bf16.mxu0 0
    %3518 = vmatpush1.bf16.msra.mxu0 0
    %3519 = vmatprep.subr.bf16.mxu0 0
    %3520 = vmatpush1.bf16.msra.mxu0 0
    %3521 = vmatprep.subr.bf16.mxu0 0
    %3522 = vmatpush1.bf16.msra.mxu0 0
    %3523 = vmatprep.subr.bf16.mxu0 0
    %3524 = vmatpush1.bf16.msra.mxu0 0
    %3525 = vmatprep.subr.bf16.mxu0 0
    %3526 = vmatpush1.bf16.msra.mxu0 0
    %3527 = vmatprep.subr.bf16.mxu0 0
    %3528 = vmatpush1.bf16.msra.mxu0 0
    %3529 = vmatprep.subr.bf16.mxu0 0
    %3530 = vmatpush1.bf16.msra.mxu0 0
    %3531 = vmatprep.subr.bf16.mxu0 0
    %3532 = vmatpush1.bf16.msra.mxu0 0
    %3533 = vmatprep.subr.bf16.mxu0 0
    %3534 = vmatpush1.bf16.msra.mxu0 0
    %3535 = vmatprep.mubr.bf16.mxu0 0
    %3536 = vmatmul.mubr.bf16.gmra.mrb[0].mxu0 %v3121
    %v3537 = vpop.f32.mrb[0].mxu0
    %v3538 = vadd.f32 0.0, %v3537
    %v3539 = vpop.f32.mrb[0].mxu0
    %v3540 = vpop.f32.mrb[0].mxu0
    %v3541 = vpop.f32.mrb[0].mxu0
    %3542 = vdwg.mxu0
    %v3544 = vrot.slane %v3538, 2
    %v3546 = vadd.f32 %v187, %v3544
    %v3547 = vxor.u32 %v3546, 2147483648
    %v3548 = vmul.f32 %v3547, 1.442695
    %v3549 = vpow.pop %v3548
    %v3550 = vadd.f32 %v3549, 1.0
    %v3551 = vrcp.pop %v3550
    %v3552 = vmul.f32 1.0, %v3551
    %v3553 = vtanh.pop %v3546
    %v3555 = vrot.slane %v3108, 6
    %v3557 = vmul.f32 %v3552, %v3555
    %3559 = vrot.lane.b32.xlu0 %v3553, 64
    %v3560 = vpop.permute.xlu0 %3559
    %v3562 = vmul.f32 %v3552, %v3560
    %3564 = vrot.lane.b32.xlu0 %v3562, 32
    %v3565 = vpop.permute.xlu0 %3564
    %v3567 = vadd.f32 %v3557, %v3565
    %v3568 = vtanh.pop %v3567
    %3570 = vrot.lane.b32.xlu0 %v3568, 64
    %v3571 = vpop.permute.xlu0 %3570
    %v3573 = vmul.f32 %v3552, %v3571
    %v3574 = vpack.c.bf16 %v3573, %v3573
    %v3576 = vrot.slane %v3574, 3
    %3577 = vrot.lane.b32.xlu0 %v3576, 32
    %v3578 = vpop.permute.xlu0 %3577
    %v3580 = vsel %vm202, %v3578, 0
    %3582 = vmatprep.subr.bf16.mxu0 0
    %3583 = vmatpush1.bf16.msra.mxu0 %v289
    %3584 = vmatprep.subr.bf16.mxu0 0
    %3585 = vmatpush1.bf16.msra.mxu0 %v290
    %3586 = vmatprep.subr.bf16.mxu0 0
    %3587 = vmatpush1.bf16.msra.mxu0 0
    %3588 = vmatprep.subr.bf16.mxu0 0
    %3589 = vmatpush1.bf16.msra.mxu0 0
    %3590 = vmatprep.subr.bf16.mxu0 0
    %3591 = vmatpush1.bf16.msra.mxu0 0
    %3592 = vmatprep.subr.bf16.mxu0 0
    %3593 = vmatpush1.bf16.msra.mxu0 0
    %3594 = vmatprep.subr.bf16.mxu0 0
    %3595 = vmatpush1.bf16.msra.mxu0 0
    %3596 = vmatprep.subr.bf16.mxu0 0
    %3597 = vmatpush1.bf16.msra.mxu0 0
    %3598 = vmatprep.subr.bf16.mxu0 0
    %3599 = vmatpush1.bf16.msra.mxu0 0
    %3600 = vmatprep.subr.bf16.mxu0 0
    %3601 = vmatpush1.bf16.msra.mxu0 0
    %3602 = vmatprep.subr.bf16.mxu0 0
    %3603 = vmatpush1.bf16.msra.mxu0 0
    %3604 = vmatprep.subr.bf16.mxu0 0
    %3605 = vmatpush1.bf16.msra.mxu0 0
    %3606 = vmatprep.subr.bf16.mxu0 0
    %3607 = vmatpush1.bf16.msra.mxu0 0
    %3608 = vmatprep.subr.bf16.mxu0 0
    %3609 = vmatpush1.bf16.msra.mxu0 0
    %3610 = vmatprep.subr.bf16.mxu0 0
    %3611 = vmatpush1.bf16.msra.mxu0 0
    %3612 = vmatprep.subr.bf16.mxu0 0
    %3613 = vmatpush1.bf16.msra.mxu0 0
    %3614 = vmatprep.mubr.bf16.mxu0 0
    %3615 = vmatmul.mubr.bf16.gmra.mrb[0].mxu0 %v3580
    %v3616 = vpop.f32.mrb[0].mxu0
    %v3617 = vadd.f32 %v276, %v3616
    %v3618 = vpop.f32.mrb[0].mxu0
    %v3619 = vpop.f32.mrb[0].mxu0
    %v3620 = vpop.f32.mrb[0].mxu0
    %3621 = vdwg.mxu0
    %3622 = vmatprep.subr.bf16.mxu0 0
    %3623 = vmatpush1.bf16.msra.mxu0 %v344
    %3624 = vmatprep.subr.bf16.mxu0 0
    %3625 = vmatpush1.bf16.msra.mxu0 %v345
    %3626 = vmatprep.subr.bf16.mxu0 0
    %3627 = vmatpush1.bf16.msra.mxu0 0
    %3628 = vmatprep.subr.bf16.mxu0 0
    %3629 = vmatpush1.bf16.msra.mxu0 0
    %3630 = vmatprep.subr.bf16.mxu0 0
    %3631 = vmatpush1.bf16.msra.mxu0 0
    %3632 = vmatprep.subr.bf16.mxu0 0
    %3633 = vmatpush1.bf16.msra.mxu0 0
    %3634 = vmatprep.subr.bf16.mxu0 0
    %3635 = vmatpush1.bf16.msra.mxu0 0
    %3636 = vmatprep.subr.bf16.mxu0 0
    %3637 = vmatpush1.bf16.msra.mxu0 0
    %3638 = vmatprep.subr.bf16.mxu0 0
    %3639 = vmatpush1.bf16.msra.mxu0 0
    %3640 = vmatprep.subr.bf16.mxu0 0
    %3641 = vmatpush1.bf16.msra.mxu0 0
    %3642 = vmatprep.subr.bf16.mxu0 0
    %3643 = vmatpush1.bf16.msra.mxu0 0
    %3644 = vmatprep.subr.bf16.mxu0 0
    %3645 = vmatpush1.bf16.msra.mxu0 0
    %3646 = vmatprep.subr.bf16.mxu0 0
    %3647 = vmatpush1.bf16.msra.mxu0 0
    %3648 = vmatprep.subr.bf16.mxu0 0
    %3649 = vmatpush1.bf16.msra.mxu0 0
    %3650 = vmatprep.subr.bf16.mxu0 0
    %3651 = vmatpush1.bf16.msra.mxu0 0
    %3652 = vmatprep.subr.bf16.mxu0 0
    %3653 = vmatpush1.bf16.msra.mxu0 0
    %3654 = vmatprep.mubr.bf16.mxu0 0
    %3655 = vmatmul.mubr.bf16.gmra.mrb[0].mxu0 %v3233
    %v3656 = vpop.f32.mrb[0].mxu0
    %v3657 = vadd.f32 0.0, %v3656
    %v3658 = vpop.f32.mrb[0].mxu0
    %v3659 = vpop.f32.mrb[0].mxu0
    %v3660 = vpop.f32.mrb[0].mxu0
    %3661 = vdwg.mxu0
    %v3662 = vadd.f32 %v3617, %v3657
    %v3663 = vxor.u32 %v3662, 2147483648
    %v3664 = vmul.f32 %v3663, 1.442695
    %v3665 = vpow.pop %v3664
    %v3666 = vadd.f32 %v3665, 1.0
    %v3667 = vrcp.pop %v3666
    %v3668 = vmul.f32 1.0, %v3667
    %v3669 = vtanh.pop %v3662
    %v3670 = vmul.f32 %v3668, %v3221
    %3672 = vrot.lane.b32.xlu0 %v3669, 64
    %v3673 = vpop.permute.xlu0 %3672
    %v3675 = vmul.f32 %v3668, %v3673
    %3677 = vrot.lane.b32.xlu0 %v3675, 32
    %v3678 = vpop.permute.xlu0 %3677
    %v3680 = vadd.f32 %v3670, %v3678
    %v3681 = vtanh.pop %v3680
    %3683 = vrot.lane.b32.xlu0 %v3681, 64
    %v3684 = vpop.permute.xlu0 %3683
    %v3686 = vmul.f32 %v3668, %v3684
    %v3687 = vpack.c.bf16 %v3686, %v3686
    %3689 = vrot.lane.b32.xlu0 %v3687, 32
    %v3690 = vpop.permute.xlu0 %3689
    %v3692 = vsel %vm202, %v3690, 0
    %3694 = vmatprep.subr.bf16.mxu0 0
    %3695 = vmatpush1.bf16.msra.mxu0 %v431
    %3696 = vmatprep.subr.bf16.mxu0 0
    %3697 = vmatpush1.bf16.msra.mxu0 %v432
    %3698 = vmatprep.subr.bf16.mxu0 0
    %3699 = vmatpush1.bf16.msra.mxu0 0
    %3700 = vmatprep.subr.bf16.mxu0 0
    %3701 = vmatpush1.bf16.msra.mxu0 0
    %3702 = vmatprep.subr.bf16.mxu0 0
    %3703 = vmatpush1.bf16.msra.mxu0 0
    %3704 = vmatprep.subr.bf16.mxu0 0
    %3705 = vmatpush1.bf16.msra.mxu0 0
    %3706 = vmatprep.subr.bf16.mxu0 0
    %3707 = vmatpush1.bf16.msra.mxu0 0
    %3708 = vmatprep.subr.bf16.mxu0 0
    %3709 = vmatpush1.bf16.msra.mxu0 0
    %3710 = vmatprep.subr.bf16.mxu0 0
    %3711 = vmatpush1.bf16.msra.mxu0 0
    %3712 = vmatprep.subr.bf16.mxu0 0
    %3713 = vmatpush1.bf16.msra.mxu0 0
    %3714 = vmatprep.subr.bf16.mxu0 0
    %3715 = vmatpush1.bf16.msra.mxu0 0
    %3716 = vmatprep.subr.bf16.mxu0 0
    %3717 = vmatpush1.bf16.msra.mxu0 0
    %3718 = vmatprep.subr.bf16.mxu0 0
    %3719 = vmatpush1.bf16.msra.mxu0 0
    %3720 = vmatprep.subr.bf16.mxu0 0
    %3721 = vmatpush1.bf16.msra.mxu0 0
    %3722 = vmatprep.subr.bf16.mxu0 0
    %3723 = vmatpush1.bf16.msra.mxu0 0
    %3724 = vmatprep.subr.bf16.mxu0 0
    %3725 = vmatpush1.bf16.msra.mxu0 0
    %3726 = vmatprep.mubr.bf16.mxu0 0
    %3727 = vmatmul.mubr.bf16.gmra.mrb[0].mxu0 %v3692
    %v3728 = vpop.f32.mrb[0].mxu0
    %v3729 = vadd.f32 %v418, %v3728
    %v3730 = vpop.f32.mrb[0].mxu0
    %v3731 = vpop.f32.mrb[0].mxu0
    %v3732 = vpop.f32.mrb[0].mxu0
    %3733 = vdwg.mxu0
    %v3734 = vpack.c.bf16 %v3729, %v3729
    %v3736 = vsel %vm145, %v3734, 0
    %3738 = vmatprep.subr.bf16.mxu0 0
    %3739 = vmatpush1.bf16.msra.mxu0 %v489
    %3740 = vmatprep.subr.bf16.mxu0 0
    %3741 = vmatpush1.bf16.msra.mxu0 0
    %3742 = vmatprep.subr.bf16.mxu0 0
    %3743 = vmatpush1.bf16.msra.mxu0 0
    %3744 = vmatprep.subr.bf16.mxu0 0
    %3745 = vmatpush1.bf16.msra.mxu0 0
    %3746 = vmatprep.subr.bf16.mxu0 0
    %3747 = vmatpush1.bf16.msra.mxu0 0
    %3748 = vmatprep.subr.bf16.mxu0 0
    %3749 = vmatpush1.bf16.msra.mxu0 0
    %3750 = vmatprep.subr.bf16.mxu0 0
    %3751 = vmatpush1.bf16.msra.mxu0 0
    %3752 = vmatprep.subr.bf16.mxu0 0
    %3753 = vmatpush1.bf16.msra.mxu0 0
    %3754 = vmatprep.subr.bf16.mxu0 0
    %3755 = vmatpush1.bf16.msra.mxu0 0
    %3756 = vmatprep.subr.bf16.mxu0 0
    %3757 = vmatpush1.bf16.msra.mxu0 0
    %3758 = vmatprep.subr.bf16.mxu0 0
    %3759 = vmatpush1.bf16.msra.mxu0 0
    %3760 = vmatprep.subr.bf16.mxu0 0
    %3761 = vmatpush1.bf16.msra.mxu0 0
    %3762 = vmatprep.subr.bf16.mxu0 0
    %3763 = vmatpush1.bf16.msra.mxu0 0
    %3764 = vmatprep.subr.bf16.mxu0 0
    %3765 = vmatpush1.bf16.msra.mxu0 0
    %3766 = vmatprep.subr.bf16.mxu0 0
    %3767 = vmatpush1.bf16.msra.mxu0 0
    %3768 = vmatprep.subr.bf16.mxu0 0
    %3769 = vmatpush1.bf16.msra.mxu0 0
    %3770 = vmatprep.mubr.bf16.mxu0 0
    %3771 = vmatmul.mubr.bf16.gmra.mrb[0].mxu0 %v3736
    %v3772 = vpop.f32.mrb[0].mxu0
    %v3773 = vadd.f32 %v483, %v3772
    %v3774 = vpop.f32.mrb[0].mxu0
    %v3775 = vpop.f32.mrb[0].mxu0
    %v3776 = vpop.f32.mrb[0].mxu0
    %3777 = vdwg.mxu0
    %3778 = vmatprep.subr.bf16.mxu0 0
    %3779 = vmatpush1.bf16.msra.mxu0 %v542
    %3780 = vmatprep.subr.bf16.mxu0 0
    %3781 = vmatpush1.bf16.msra.mxu0 %v543
    %3782 = vmatprep.subr.bf16.mxu0 0
    %3783 = vmatpush1.bf16.msra.mxu0 0
    %3784 = vmatprep.subr.bf16.mxu0 0
    %3785 = vmatpush1.bf16.msra.mxu0 0
    %3786 = vmatprep.subr.bf16.mxu0 0
    %3787 = vmatpush1.bf16.msra.mxu0 0
    %3788 = vmatprep.subr.bf16.mxu0 0
    %3789 = vmatpush1.bf16.msra.mxu0 0
    %3790 = vmatprep.subr.bf16.mxu0 0
    %3791 = vmatpush1.bf16.msra.mxu0 0
    %3792 = vmatprep.subr.bf16.mxu0 0
    %3793 = vmatpush1.bf16.msra.mxu0 0
    %3794 = vmatprep.subr.bf16.mxu0 0
    %3795 = vmatpush1.bf16.msra.mxu0 0
    %3796 = vmatprep.subr.bf16.mxu0 0
    %3797 = vmatpush1.bf16.msra.mxu0 0
    %3798 = vmatprep.subr.bf16.mxu0 0
    %3799 = vmatpush1.bf16.msra.mxu0 0
    %3800 = vmatprep.subr.bf16.mxu0 0
    %3801 = vmatpush1.bf16.msra.mxu0 0
    %3802 = vmatprep.subr.bf16.mxu0 0
    %3803 = vmatpush1.bf16.msra.mxu0 0
    %3804 = vmatprep.subr.bf16.mxu0 0
    %3805 = vmatpush1.bf16.msra.mxu0 0
    %3806 = vmatprep.subr.bf16.mxu0 0
    %3807 = vmatpush1.bf16.msra.mxu0 0
    %3808 = vmatprep.subr.bf16.mxu0 0
    %3809 = vmatpush1.bf16.msra.mxu0 0
    %3810 = vmatprep.mubr.bf16.mxu0 0
    %3811 = vmatmul.mubr.bf16.gmra.mrb[0].mxu0 %v3389
    %v3812 = vpop.f32.mrb[0].mxu0
    %v3813 = vadd.f32 0.0, %v3812
    %v3814 = vpop.f32.mrb[0].mxu0
    %v3815 = vpop.f32.mrb[0].mxu0
    %v3816 = vpop.f32.mrb[0].mxu0
    %3817 = vdwg.mxu0
    %v3818 = vadd.f32 %v3773, %v3813
    %v3819 = vxor.u32 %v3818, 2147483648
    %v3820 = vmul.f32 %v3819, 1.442695
    %v3821 = vpow.pop %v3820
    %v3822 = vadd.f32 %v3821, 1.0
    %v3823 = vrcp.pop %v3822
    %v3824 = vmul.f32 1.0, %v3823
    %v3825 = vtanh.pop %v3818
    %v3826 = vmul.f32 %v3824, %v3377
    %3828 = vrot.lane.b32.xlu0 %v3825, 64
    %v3829 = vpop.permute.xlu0 %3828
    %v3831 = vmul.f32 %v3824, %v3829
    %3833 = vrot.lane.b32.xlu0 %v3831, 32
    %v3834 = vpop.permute.xlu0 %3833
    %v3836 = vadd.f32 %v3826, %v3834
    %v3837 = vtanh.pop %v3836
    %3839 = vrot.lane.b32.xlu0 %v3837, 64
    %v3840 = vpop.permute.xlu0 %3839
    %v3842 = vmul.f32 %v3824, %v3840
    %v3843 = vpack.c.bf16 %v3842, %v3842
    %3845 = vrot.lane.b32.xlu0 %v3843, 32
    %v3846 = vpop.permute.xlu0 %3845
    %v3848 = vsel %vm202, %v3846, 0
    %3850 = vmatprep.subr.bf16.mxu0 0
    %3851 = vmatpush1.bf16.msra.mxu0 %v629
    %3852 = vmatprep.subr.bf16.mxu0 0
    %3853 = vmatpush1.bf16.msra.mxu0 %v630
    %3854 = vmatprep.subr.bf16.mxu0 0
    %3855 = vmatpush1.bf16.msra.mxu0 0
    %3856 = vmatprep.subr.bf16.mxu0 0
    %3857 = vmatpush1.bf16.msra.mxu0 0
    %3858 = vmatprep.subr.bf16.mxu0 0
    %3859 = vmatpush1.bf16.msra.mxu0 0
    %3860 = vmatprep.subr.bf16.mxu0 0
    %3861 = vmatpush1.bf16.msra.mxu0 0
    %3862 = vmatprep.subr.bf16.mxu0 0
    %3863 = vmatpush1.bf16.msra.mxu0 0
    %3864 = vmatprep.subr.bf16.mxu0 0
    %3865 = vmatpush1.bf16.msra.mxu0 0
    %3866 = vmatprep.subr.bf16.mxu0 0
    %3867 = vmatpush1.bf16.msra.mxu0 0
    %3868 = vmatprep.subr.bf16.mxu0 0
    %3869 = vmatpush1.bf16.msra.mxu0 0
    %3870 = vmatprep.subr.bf16.mxu0 0
    %3871 = vmatpush1.bf16.msra.mxu0 0
    %3872 = vmatprep.subr.bf16.mxu0 0
    %3873 = vmatpush1.bf16.msra.mxu0 0
    %3874 = vmatprep.subr.bf16.mxu0 0
    %3875 = vmatpush1.bf16.msra.mxu0 0
    %3876 = vmatprep.subr.bf16.mxu0 0
    %3877 = vmatpush1.bf16.msra.mxu0 0
    %3878 = vmatprep.subr.bf16.mxu0 0
    %3879 = vmatpush1.bf16.msra.mxu0 0
    %3880 = vmatprep.subr.bf16.mxu0 0
    %3881 = vmatpush1.bf16.msra.mxu0 0
    %3882 = vmatprep.mubr.bf16.mxu0 0
    %3883 = vmatmul.mubr.bf16.gmra.mrb[0].mxu0 %v3848
    %v3884 = vpop.f32.mrb[0].mxu0
    %v3885 = vadd.f32 %v616, %v3884
    %v3886 = vpop.f32.mrb[0].mxu0
    %v3887 = vpop.f32.mrb[0].mxu0
    %v3888 = vpop.f32.mrb[0].mxu0
    %3889 = vdwg.mxu0
    %v3890 = vpack.c.bf16 %v3502, %v3502
    %3892 = vrot.lane.b32.xlu0 %v3890, 32
    %v3893 = vpop.permute.xlu0 %3892
    %v3895 = vsel %vm202, %v3893, 0
    %3897 = vmatprep.subr.bf16.mxu0 0
    %3898 = vmatpush1.bf16.msra.mxu0 %v684
    %3899 = vmatprep.subr.bf16.mxu0 0
    %3900 = vmatpush1.bf16.msra.mxu0 %v685
    %3901 = vmatprep.subr.bf16.mxu0 0
    %3902 = vmatpush1.bf16.msra.mxu0 0
    %3903 = vmatprep.subr.bf16.mxu0 0
    %3904 = vmatpush1.bf16.msra.mxu0 0
    %3905 = vmatprep.subr.bf16.mxu0 0
    %3906 = vmatpush1.bf16.msra.mxu0 0
    %3907 = vmatprep.subr.bf16.mxu0 0
    %3908 = vmatpush1.bf16.msra.mxu0 0
    %3909 = vmatprep.subr.bf16.mxu0 0
    %3910 = vmatpush1.bf16.msra.mxu0 0
    %3911 = vmatprep.subr.bf16.mxu0 0
    %3912 = vmatpush1.bf16.msra.mxu0 0
    %3913 = vmatprep.subr.bf16.mxu0 0
    %3914 = vmatpush1.bf16.msra.mxu0 0
    %3915 = vmatprep.subr.bf16.mxu0 0
    %3916 = vmatpush1.bf16.msra.mxu0 0
    %3917 = vmatprep.subr.bf16.mxu0 0
    %3918 = vmatpush1.bf16.msra.mxu0 0
    %3919 = vmatprep.subr.bf16.mxu0 0
    %3920 = vmatpush1.bf16.msra.mxu0 0
    %3921 = vmatprep.subr.bf16.mxu0 0
    %3922 = vmatpush1.bf16.msra.mxu0 0
    %3923 = vmatprep.subr.bf16.mxu0 0
    %3924 = vmatpush1.bf16.msra.mxu0 0
    %3925 = vmatprep.subr.bf16.mxu0 0
    %3926 = vmatpush1.bf16.msra.mxu0 0
    %3927 = vmatprep.subr.bf16.mxu0 0
    %3928 = vmatpush1.bf16.msra.mxu0 0
    %3929 = vmatprep.mubr.bf16.mxu0 0
    %3930 = vmatmul.mubr.bf16.gmra.mrb[0].mxu0 %v3895
    %v3931 = vpop.f32.mrb[0].mxu0
    %v3932 = vadd.f32 0.0, %v3931
    %v3933 = vpop.f32.mrb[0].mxu0
    %v3934 = vpop.f32.mrb[0].mxu0
    %v3935 = vpop.f32.mrb[0].mxu0
    %3936 = vdwg.mxu0
    %v3937 = vadd.f32 %v3885, %v3932
    %v3938 = vxor.u32 %v3937, 2147483648
    %v3939 = vmul.f32 %v3938, 1.442695
    %v3940 = vpow.pop %v3939
    %v3941 = vadd.f32 %v3940, 1.0
    %v3942 = vrcp.pop %v3941
    %v3943 = vmul.f32 1.0, %v3942
    %v3944 = vtanh.pop %v3937
    %v3945 = vmul.f32 %v3943, %v3496
    %3947 = vrot.lane.b32.xlu0 %v3944, 64
    %v3948 = vpop.permute.xlu0 %3947
    %v3950 = vmul.f32 %v3943, %v3948
    %3952 = vrot.lane.b32.xlu0 %v3950, 32
    %v3953 = vpop.permute.xlu0 %3952
    %v3955 = vadd.f32 %v3945, %v3953
    %v3956 = vtanh.pop %v3955
    %3958 = vrot.lane.b32.xlu0 %v3956, 64
    %v3959 = vpop.permute.xlu0 %3958
    %v3961 = vmul.f32 %v3943, %v3959
    %v3962 = vpack.c.bf16 %v3961, %v3961
    %v3964 = vlaneseq
    %v3965 = vshrl.u32 %v3964, 7
    %v3966 = vsub.s32 0, %v3965
    %v3967 = vrot.slane %v125, %v3966
    %3970 = vrot.lane.b32.xlu0 %v3962, 32
    %v3971 = vpop.permute.xlu0 %3970
    %v3976 = vunpack.c.l.b16 %v121
    %v3977 = vunpack.c.l.b16 %v122
    %v3978 = vunpack.c.l.b16 %v123
    %v3979 = vunpack.c.l.b16 %v124
    %v3980 = vpack.c.b16 %v3977, %v3976
    %v3981 = vpack.c.b16 %v3979, %v3978
    %v3985 = vsel %vm202, %v3971, 0
    %3987 = vmatprep.subr.bf16.mxu0 0
    %3988 = vmatpush1.bf16.msra.mxu0 %v3980
    %3989 = vmatprep.subr.bf16.mxu0 0
    %3990 = vmatpush1.bf16.msra.mxu0 %v3981
    %3991 = vmatprep.subr.bf16.mxu0 0
    %3992 = vmatpush1.bf16.msra.mxu0 0
    %3993 = vmatprep.subr.bf16.mxu0 0
    %3994 = vmatpush1.bf16.msra.mxu0 0
    %3995 = vmatprep.subr.bf16.mxu0 0
    %3996 = vmatpush1.bf16.msra.mxu0 0
    %3997 = vmatprep.subr.bf16.mxu0 0
    %3998 = vmatpush1.bf16.msra.mxu0 0
    %3999 = vmatprep.subr.bf16.mxu0 0
    %4000 = vmatpush1.bf16.msra.mxu0 0
    %4001 = vmatprep.subr.bf16.mxu0 0
    %4002 = vmatpush1.bf16.msra.mxu0 0
    %4003 = vmatprep.subr.bf16.mxu0 0
    %4004 = vmatpush1.bf16.msra.mxu0 0
    %4005 = vmatprep.subr.bf16.mxu0 0
    %4006 = vmatpush1.bf16.msra.mxu0 0
    %4007 = vmatprep.subr.bf16.mxu0 0
    %4008 = vmatpush1.bf16.msra.mxu0 0
    %4009 = vmatprep.subr.bf16.mxu0 0
    %4010 = vmatpush1.bf16.msra.mxu0 0
    %4011 = vmatprep.subr.bf16.mxu0 0
    %4012 = vmatpush1.bf16.msra.mxu0 0
    %4013 = vmatprep.subr.bf16.mxu0 0
    %4014 = vmatpush1.bf16.msra.mxu0 0
    %4015 = vmatprep.subr.bf16.mxu0 0
    %4016 = vmatpush1.bf16.msra.mxu0 0
    %4017 = vmatprep.subr.bf16.mxu0 0
    %4018 = vmatpush1.bf16.msra.mxu0 0
    %4019 = vmatprep.mubr.bf16.mxu0 0
    %4020 = vmatmul.mubr.bf16.gmra.mrb[0].mxu0 %v3985
    %v4021 = vpop.f32.mrb[0].mxu0
    %v4022 = vadd.f32 %v3967, %v4021
    %v4023 = vpop.f32.mrb[0].mxu0
    %v4024 = vpop.f32.mrb[0].mxu0
    %v4025 = vpop.f32.mrb[0].mxu0
    %4026 = vdwg.mxu0
    %vm4027 = vcmask 123904
    %4028 = vst.msk [vmem:[#allocation7] sm:$0x3] %vm4027, %v4022
    // Predicated region
    $region78: #{lstm_encoder_decoder.1} parent=1 // pred_check
      _
    $region79: #{lstm_encoder_decoder.1} parent=1 // pred_check_branch
      %4030 = sbr.rel (0) target = $region81
    $region80: #{lstm_encoder_decoder.1} parent=1 // pred_region
      %s4032 = ssub.s32 32, 32
      %4033 = vsyncadd [#allocation4], %s4032
      %s4035 = sshll.u32 [#allocation7], 4
      %s4036 = int_to_ptr.vmem [resolvable:$true] %s4035
      %4038 = dma.vmem_to_hbm [thread:$0]  %s4036, 32, %s17, [#allocation4]
    $region81: #{lstm_encoder_decoder.1} parent=1 // pred_fallthru
      _
    // Predicated region
    $region82: #{lstm_encoder_decoder.1} parent=1 // pred_check
      _
    $region83: #{lstm_encoder_decoder.1} parent=1 // pred_check_branch
      %4040 = sbr.rel (0) target = $region85
    $region84: #{lstm_encoder_decoder.1} parent=1 // pred_region
      %4041 = dma.done [#allocation4], 32
    $region85: #{lstm_encoder_decoder.1} parent=1 // pred_fallthru
      _
    %4042 = vsyncpa [#allocation3], 1
    %4043 = vsyncpa [#allocation6], 1
    %4044 = vsyncpa [#allocation4], 1

</llo_original>
